<compile_context>
chip_gen: v6e
topology: v6e:2x2x1
jax: 0.10.0
libtpu: 0.0.40
codegen_flags: <defaults>
</compile_context>

<pallas_src>
import math

import jax
import jax.numpy as jnp
from jax import lax
from jax.experimental import pallas as pl
from jax.experimental.pallas import tpu as pltpu


# ----------------------------------------------------------------------------
# Small helpers
# ----------------------------------------------------------------------------
def _round_up(v, m):
    return ((v + m - 1) // m) * m


def _pad_to(x, shape):
    pads = [(0, t - s) for s, t in zip(x.shape, shape)]
    if any(p[1] for p in pads):
        x = jnp.pad(x, pads)
    return x


def _pick_tile(size, cap, align):
    """Largest multiple of `align` dividing `size`, <= max(cap, align)."""
    t = min(size, max(cap, align))
    t -= t % align
    t = max(t, align)
    while size % t:
        t -= align
    return t


def _dense_adj(edge_index, num_nodes):
    """edge_index (2, E) -> dense adjacency A[dst, src] = 1 (pure scatter, XLA)."""
    src, dst = edge_index[0], edge_index[1]
    return jnp.zeros((num_nodes, num_nodes), jnp.float32).at[dst, src].set(1.0)


def _dinv(adj, mask):
    """deg^{-1/2} of the masked adjacency with self-loops on active nodes (f32)."""
    deg = mask * (adj @ mask + 1.0)
    return jnp.where(deg > 0, lax.rsqrt(jnp.maximum(deg, 1e-12)), 0.0)


# ----------------------------------------------------------------------------
# Pallas kernel 1: fused GCN layer
#   h_new = relu( A_hat @ (h @ W) + b ) + res_scale * residual
#   A_hat[r, c] = (adj[r, c] + delta_rc) * dinv[r] * dinv[c]   (built per tile)
# ----------------------------------------------------------------------------
def _make_gcn_kernel(tk, res_scale):
    def kernel(adj_ref, dr_ref, dc_ref, h_ref, w_ref, b_ref, res_ref,
               o_ref, hw_ref, acc_ref):
        i = pl.program_id(0)          # output row tile
        k = pl.program_id(1)          # contraction (node-column) tile

        # Feature transform h @ W: computed once per column block on the first
        # row-tile pass, held resident in VMEM for every later row tile.
        @pl.when(i == 0)
        def _():
            hw = jnp.dot(h_ref[...], w_ref[...],
                         preferred_element_type=jnp.float32)
            hw_ref[pl.ds(pl.multiple_of(k * tk, tk), tk), :] = (
                hw.astype(hw_ref.dtype))

        @pl.when(k == 0)
        def _():
            acc_ref[...] = jnp.zeros_like(acc_ref)

        # Normalize the adjacency tile on the VPU (dinv is 0 for masked/padded
        # nodes, so masking is implicit), cast to bf16 and feed the MXU.
        a = adj_ref[...].astype(jnp.float32)
        a = a * dr_ref[...]           # (tm, tk) * (tm, 1)
        a = a * dc_ref[...]           # (tm, tk) * (1, tk)
        hw_blk = hw_ref[pl.ds(pl.multiple_of(k * tk, tk), tk), :]
        acc_ref[...] += jnp.dot(a.astype(jnp.bfloat16), hw_blk,
                                preferred_element_type=jnp.float32)

        @pl.when(k == pl.num_programs(1) - 1)
        def _():
            out = jnp.maximum(acc_ref[...] + b_ref[...], 0.0)
            out = out + res_scale * res_ref[...]
            o_ref[...] = out.astype(o_ref.dtype)

    return kernel


def pallas_gcn_layer(adj_pi, dinv, h, w, b, residual, res_scale,
                     tm_cap=256, tk_cap=512):
    """One fused GCN layer.

    adj_pi  : (Np, Np) bf16  adjacency + I (padded, stored once)
    dinv    : (Np,)    f32   deg^{-1/2}, 0 for masked / padded nodes
    h       : (Np, Fp) bf16  node features (padded)
    w       : (Fp, Dp) bf16, b: (1, Dp) f32
    residual: (Np, Dp) f32
    returns : (Np, Dp) bf16
    """
    np_ = adj_pi.shape[0]
    fp = h.shape[1]
    dp = w.shape[1]
    # >= 2 row tiles when possible (v7x second-core headroom), capped at 256.
    row_cap = min(tm_cap, max(np_ // 2, 128))
    tm = _pick_tile(np_, row_cap, 128)
    tk = _pick_tile(np_, tk_cap, 128)
    grid = (np_ // tm, np_ // tk)

    dr = dinv.reshape(np_, 1)
    dc = dinv.reshape(1, np_)

    return pl.pallas_call(
        _make_gcn_kernel(tk, float(res_scale)),
        out_shape=jax.ShapeDtypeStruct((np_, dp), jnp.bfloat16),
        grid_spec=pltpu.PrefetchScalarGridSpec(
            num_scalar_prefetch=0,
            grid=grid,
            in_specs=[
                pl.BlockSpec((tm, tk), lambda i, k: (i, k)),   # adj + I (bf16)
                pl.BlockSpec((tm, 1), lambda i, k: (i, 0)),    # dinv rows
                pl.BlockSpec((1, tk), lambda i, k: (0, k)),    # dinv cols
                pl.BlockSpec((tk, fp), lambda i, k: (k, 0)),   # h rows (for hW)
                pl.BlockSpec((fp, dp), lambda i, k: (0, 0)),   # W
                pl.BlockSpec((1, dp), lambda i, k: (0, 0)),    # bias
                pl.BlockSpec((tm, dp), lambda i, k: (i, 0)),   # residual
            ],
            out_specs=pl.BlockSpec((tm, dp), lambda i, k: (i, 0)),
            scratch_shapes=[pltpu.VMEM((np_, dp), jnp.bfloat16),   # resident hW
                            pltpu.VMEM((tm, dp), jnp.float32)],    # accumulator
        ),
        compiler_params=pltpu.CompilerParams(
            # Row axis carries the hW scratch across iterations -> "arbitrary".
            dimension_semantics=("arbitrary", "arbitrary")),
    )(adj_pi, dr, dc, h, w, b, residual)


# ----------------------------------------------------------------------------
# Pallas kernel 2: fused TopK gate + masked global max / sum pooling
#   hg = h * gate ; gmax = max over active nodes ; gsum = sum of gated features
# ----------------------------------------------------------------------------
def _gate_pool_kernel(x_ref, g_ref, m_ref, o_ref, max_ref, sum_ref,
                      max_sc, sum_sc):
    i = pl.program_id(0)

    @pl.when(i == 0)
    def _():
        max_sc[...] = jnp.full_like(max_sc, -jnp.inf)
        sum_sc[...] = jnp.zeros_like(sum_sc)

    x = x_ref[...].astype(jnp.float32)      # (tile_n, D) bf16 -> f32
    g = g_ref[...]                          # (tile_n, 1) gate = tanh(score)*mask
    m = m_ref[...]                          # (tile_n, 1) node mask (for -inf max)
    hg = x * g
    o_ref[...] = hg.astype(o_ref.dtype)
    xm = jnp.where(m > 0.0, hg, -jnp.inf)
    max_sc[...] = jnp.maximum(max_sc[...], jnp.max(xm, axis=0, keepdims=True))
    sum_sc[...] = sum_sc[...] + jnp.sum(hg, axis=0, keepdims=True)

    @pl.when(i == pl.num_programs(0) - 1)
    def _():
        max_ref[...] = max_sc[...]
        sum_ref[...] = sum_sc[...]


def pallas_gate_pool(h, gate, mask, tile_cap=2048):
    """h (Np, Dp) bf16; gate/mask (Np, 1) f32 -> gated h (bf16), max, sum (f32)."""
    npad, dpad = h.shape
    # One grid step whenever the whole padded graph fits (removes per-step overhead).
    tile_n = npad if npad <= tile_cap else _pick_tile(npad, tile_cap, 128)
    grid = (npad // tile_n,)
    return pl.pallas_call(
        _gate_pool_kernel,
        out_shape=(jax.ShapeDtypeStruct((npad, dpad), h.dtype),
                   jax.ShapeDtypeStruct((1, dpad), jnp.float32),
                   jax.ShapeDtypeStruct((1, dpad), jnp.float32)),
        grid_spec=pltpu.PrefetchScalarGridSpec(
            num_scalar_prefetch=0,
            grid=grid,
            in_specs=[pl.BlockSpec((tile_n, dpad), lambda i: (i, 0)),
                      pl.BlockSpec((tile_n, 1), lambda i: (i, 0)),
                      pl.BlockSpec((tile_n, 1), lambda i: (i, 0))],
            out_specs=(pl.BlockSpec((tile_n, dpad), lambda i: (i, 0)),
                       pl.BlockSpec((1, dpad), lambda i: (0, 0)),
                       pl.BlockSpec((1, dpad), lambda i: (0, 0))),
            scratch_shapes=[pltpu.VMEM((1, dpad), jnp.float32),
                            pltpu.VMEM((1, dpad), jnp.float32)],
        ),
        compiler_params=pltpu.CompilerParams(dimension_semantics=("arbitrary",)),
    )(h, gate, mask)


# ----------------------------------------------------------------------------
# Pallas kernel 3: readout MLP head  out = lin2(relu(lin1(summation)))
# ----------------------------------------------------------------------------
def _mlp_kernel(s_ref, w1_ref, b1_ref, w2_ref, b2_ref, o_ref):
    z = jnp.dot(s_ref[...], w1_ref[...],
                preferred_element_type=jnp.float32) + b1_ref[...]
    z = jnp.maximum(z, 0.0)
    o_ref[...] = (jnp.dot(z.astype(w2_ref.dtype), w2_ref[...],
                          preferred_element_type=jnp.float32) + b2_ref[...])


def pallas_mlp_head(s, w1, b1, w2, b2):
    d2, dh, dout = s.shape[1], w1.shape[1], w2.shape[1]
    d2p, dhp, dop = _round_up(d2, 128), _round_up(dh, 128), _round_up(dout, 128)
    s_p = _pad_to(s, (8, d2p)).astype(jnp.bfloat16)
    w1_p = _pad_to(w1, (d2p, dhp)).astype(jnp.bfloat16)
    b1_p = _pad_to(b1.reshape(1, dh), (1, dhp))
    w2_p = _pad_to(w2, (dhp, dop)).astype(jnp.bfloat16)
    b2_p = _pad_to(b2.reshape(1, dout), (1, dop))
    out = pl.pallas_call(
        _mlp_kernel,
        out_shape=jax.ShapeDtypeStruct((8, dop), jnp.float32),
        grid_spec=pltpu.PrefetchScalarGridSpec(
            num_scalar_prefetch=0,
            grid=(1,),
            in_specs=[pl.BlockSpec((8, d2p), lambda i: (0, 0)),
                      pl.BlockSpec((d2p, dhp), lambda i: (0, 0)),
                      pl.BlockSpec((1, dhp), lambda i: (0, 0)),
                      pl.BlockSpec((dhp, dop), lambda i: (0, 0)),
                      pl.BlockSpec((1, dop), lambda i: (0, 0))],
            out_specs=pl.BlockSpec((8, dop), lambda i: (0, 0)),
        ),
    )(s_p, w1_p, b1_p, w2_p, b2_p)
    return out[:1, :dout]


# ----------------------------------------------------------------------------
# GNN forward (Pallas) and numerics-matched pure-JAX reference
# ----------------------------------------------------------------------------
def gnn_forward(params, x, edge_index, edge_attr, batch, *, num_layers,
                lookback, dim, output_size, res_factors, ratio=0.8):
    # edge_attr is unused by GCNConv (same as the PyTorch module's data flow).
    # TODO(synk): multi-graph `batch` segmented pooling not implemented; the
    #             forward assumes a single graph (batch == 0 everywhere).
    # TODO(synk): dropout_adj is train-time-only edge dropout; inference no-op.
    del edge_attr, batch, output_size
    f32, bf = jnp.float32, jnp.bfloat16

    n = x.shape[0]
    npad = _round_up(n, 128)
    dpad = _round_up(dim, 128)

    adj = _dense_adj(edge_index, n)                                 # (n, n) f32
    adj_pi_pad = _pad_to(adj + jnp.eye(n, dtype=f32),
                         (npad, npad)).astype(bf)                   # stored once

    mask = jnp.ones((n,), f32)
    count = n
    summation = None

    x_f32 = x.astype(f32)
    h_pad = _pad_to(x_f32, (npad, _round_up(lookback, 128))).astype(bf)
    res_pad = _pad_to(jnp.pad(x_f32, ((0, 0), (0, dim - lookback))),
                      (npad, dpad))                                  # f32

    for layer in range(num_layers):
        w, b, p = (params["conv_w"][layer], params["conv_b"][layer],
                   params["pool_p"][layer])
        fin = lookback if layer == 0 else dim
        fpad = _round_up(fin, 128)
        w_pad = _pad_to(w, (fpad, dpad)).astype(bf)
        b_pad = _pad_to(b.reshape(1, dim), (1, dpad))

        # GCN normalization vector (f32, XLA glue; zero for inactive nodes).
        dinv_pad = jnp.pad(_dinv(adj, mask), (0, npad - n))

        # Fused GCNConv + ReLU + scaled residual (single pallas_call).
        h_pad = pallas_gcn_layer(adj_pi_pad, dinv_pad, h_pad, w_pad, b_pad,
                                 res_pad, res_factors[layer])

        # TopKPooling (ratio=0.8): score / selection are tiny XLA glue.
        h_real = h_pad[:n, :dim].astype(f32)
        score = jnp.dot(h_real, p) / (jnp.linalg.norm(p) + 1e-16)
        k = int(math.ceil(ratio * count))
        # TODO(synk): lax.top_k tie-breaking may differ from torch.topk on ties.
        _, idx = lax.top_k(jnp.where(mask > 0, score, -jnp.inf), k)
        mask = jnp.zeros((n,), f32).at[idx].set(1.0)
        count = k
        gate = jnp.tanh(score) * mask
        gate_pad = jnp.pad(gate, (0, npad - n)).reshape(npad, 1)
        mask_pad = jnp.pad(mask, (0, npad - n)).reshape(npad, 1)

        # Fused tanh-gating + masked global max / mean pooling (one pallas_call).
        h_pad, gmax, gsum = pallas_gate_pool(h_pad, gate_pad, mask_pad)
        readout = jnp.concatenate([gmax[:, :dim], gsum[:, :dim] / float(count)],
                                  axis=1)
        summation = readout if summation is None else summation + readout

        res_pad = h_pad.astype(f32)           # residual for the next layer

    return pallas_mlp_head(summation, params["lin1_w"], params["lin1_b"],
                           params["lin2_w"], params["lin2_b"])


def reference_forward(params, x, edge_index, *, num_layers, lookback, dim,
                      output_size, res_factors, ratio=0.8):
    """Pure-JAX reference of the module's forward.

    Same math as the PyTorch module; matmul operands are cast to bf16 with f32
    accumulation (mirroring the kernel's MXU dtype policy) so that the
    data-dependent top-k node selection follows the same path in both
    implementations.
    """
    del output_size
    f32, bf = jnp.float32, jnp.bfloat16
    n = x.shape[0]
    adj = _dense_adj(edge_index, n)
    adj_pi = adj + jnp.eye(n, dtype=f32)
    mask = jnp.ones((n,), f32)
    count = n
    summation = None
    h = x.astype(f32)
    for layer in range(num_layers):
        w, b, p = (params["conv_w"][layer], params["conv_b"][layer],
                   params["pool_p"][layer])
        residual = jnp.pad(h, ((0, 0), (0, dim - lookback))) if layer == 0 else h
        dinv = _dinv(adj, mask)
        a_hat = ((adj_pi * dinv[:, None]) * dinv[None, :]).astype(bf)
        hw = jnp.dot(h.astype(bf), w.astype(bf),
                     preferred_element_type=f32).astype(bf)
        conv = jnp.dot(a_hat, hw, preferred_element_type=f32) + b
        h = (res_factors[layer] * residual
             + jnp.maximum(conv, 0.0)).astype(bf).astype(f32)
        score = jnp.dot(h, p) / (jnp.linalg.norm(p) + 1e-16)
        k = int(math.ceil(ratio * count))
        _, idx = lax.top_k(jnp.where(mask > 0, score, -jnp.inf), k)
        mask = jnp.zeros((n,), f32).at[idx].set(1.0)
        count = k
        gate = jnp.tanh(score) * mask
        hg = h * gate[:, None]
        gmp = jnp.max(jnp.where(mask[:, None] > 0, hg, -jnp.inf),
                      axis=0, keepdims=True)
        gap = jnp.sum(hg, axis=0, keepdims=True) / float(count)
        readout = jnp.concatenate([gmp, gap], axis=1)
        summation = readout if summation is None else summation + readout
        h = hg.astype(bf).astype(f32)
    s = summation.astype(bf)
    z = jnp.maximum(jnp.dot(s, params["lin1_w"].astype(bf),
                            preferred_element_type=f32) + params["lin1_b"], 0.0)
    return jnp.dot(z.astype(bf), params["lin2_w"].astype(bf),
                   preferred_element_type=f32) + params["lin2_b"]


def init_params(key, num_layers, lookback, dim, output_size):
    ks = iter(jax.random.split(key, 3 * num_layers + 4))
    conv_w, conv_b, pool_p = [], [], []
    for n in range(num_layers):
        fan_in = lookback if n == 0 else dim
        conv_w.append(0.2 * jax.random.normal(next(ks), (fan_in, dim), jnp.float32))
        conv_b.append(0.05 * jax.random.normal(next(ks), (dim,), jnp.float32))
        pool_p.append(jax.random.normal(next(ks), (dim,), jnp.float32))
    return {
        "conv_w": conv_w, "conv_b": conv_b, "pool_p": pool_p,
        "lin1_w": 0.1 * jax.random.normal(next(ks), (2 * dim, dim), jnp.float32),
        "lin1_b": 0.05 * jax.random.normal(next(ks), (dim,), jnp.float32),
        "lin2_w": 0.1 * jax.random.normal(next(ks), (dim, output_size), jnp.float32),
        "lin2_b": 0.05 * jax.random.normal(next(ks), (output_size,), jnp.float32),
    }


if __name__ == "__main__":
    key = jax.random.PRNGKey(0)
    k_feat, k_e1, k_e2, k_par = jax.random.split(key, 4)

    # Small but multi-tile config: 200 nodes (padded to 256 -> 2 row tiles),
    # lookback 16, hidden dim 128 (lane-dense), 2 layers.
    N, LOOKBACK, DIM, OUT_SIZE, NUM_LAYERS = 200, 16, 128, 8, 2
    RES_FACTORS = (0.5, 0.25)

    x = jax.random.normal(k_feat, (N, LOOKBACK), dtype=jnp.float32)

    # Random undirected graph (both edge directions present, no self loops).
    num_edges = 600
    src = jax.random.randint(k_e1, (num_edges,), 0, N, dtype=jnp.int32)
    dst = jax.random.randint(k_e2, (num_edges,), 0, N, dtype=jnp.int32)
    dst = jnp.where(dst == src, (dst + 1) % N, dst)
    edge_index = jnp.concatenate(
        [jnp.stack([src, dst]), jnp.stack([dst, src])], axis=1)      # (2, 1200)
    edge_attr = jnp.ones((edge_index.shape[1], 1), jnp.float32)      # unused by GCNConv
    batch = jnp.zeros((N,), jnp.int32)                               # single graph

    params = init_params(k_par, NUM_LAYERS, LOOKBACK, DIM, OUT_SIZE)

    fwd = jax.jit(lambda p, xx, ei, ea, bt: gnn_forward(
        p, xx, ei, ea, bt, num_layers=NUM_LAYERS, lookback=LOOKBACK, dim=DIM,
        output_size=OUT_SIZE, res_factors=RES_FACTORS))
    out = jax.block_until_ready(fwd(params, x, edge_index, edge_attr, batch))

    ref = reference_forward(params, x, edge_index, num_layers=NUM_LAYERS,
                            lookback=LOOKBACK, dim=DIM, output_size=OUT_SIZE,
                            res_factors=RES_FACTORS)

    assert out.shape == (1, OUT_SIZE)
    assert bool(jnp.all(jnp.isfinite(out)))
    assert jnp.allclose(out, ref, rtol=2e-2, atol=2e-2), (out, ref)
    print("KERNEL_OK")
</pallas_src>

<mosaic_0001>
module attributes {stable_mosaic.version = 11 : i64} {
  func.func @kernel(%arg0: i32, %arg1: i32, %arg2: memref<128x256xbf16, #tpu.memory_space<vmem>>, %arg3: memref<128x1xf32, #tpu.memory_space<vmem>>, %arg4: memref<1x256xf32, #tpu.memory_space<vmem>>, %arg5: memref<256x128xbf16, #tpu.memory_space<vmem>>, %arg6: memref<128x128xbf16, #tpu.memory_space<vmem>>, %arg7: memref<1x128xf32, #tpu.memory_space<vmem>>, %arg8: memref<128x128xf32, #tpu.memory_space<vmem>>, %arg9: memref<128x128xbf16, #tpu.memory_space<vmem>>, %arg10: memref<256x128xbf16, #tpu.memory_space<vmem>>, %arg11: memref<128x128xf32, #tpu.memory_space<vmem>>) attributes {dimension_semantics = [#tpu.dimension_semantics<arbitrary>, #tpu.dimension_semantics<arbitrary>], iteration_bounds = array<i64: 2, 1>, scalar_prefetch = 0 : i64, scratch_operands = 2 : i64, tpu.core_type = #tpu.core_type<tc>, window_params = [{transform_indices = @transform_0, window_bounds = array<i64: 128, 256>}, {transform_indices = @transform_1, window_bounds = array<i64: 128, 1>}, {transform_indices = @transform_2, window_bounds = array<i64: 1, 256>}, {transform_indices = @transform_3, window_bounds = array<i64: 256, 128>}, {pipeline_mode = #tpu.pipeline_mode<synchronous>, transform_indices = @transform_4, window_bounds = array<i64: 128, 128>}, {pipeline_mode = #tpu.pipeline_mode<synchronous>, transform_indices = @transform_5, window_bounds = array<i64: 1, 128>}, {transform_indices = @transform_6, window_bounds = array<i64: 128, 128>}, {transform_indices = @transform_7, window_bounds = array<i64: 128, 128>}]} {
    %c0_i32 = arith.constant 0 : i32
    %0 = arith.cmpi eq, %arg0, %c0_i32 : i32
    %1 = arith.extui %0 : i1 to i32
    %c0_i32_0 = arith.constant 0 : i32
    %2 = arith.cmpi ne, %1, %c0_i32_0 : i32
    scf.if %2 {
      %c0_15 = arith.constant 0 : index
      %c0_16 = arith.constant 0 : index
      %26 = vector.load %arg5[%c0_15, %c0_16] : memref<256x128xbf16, #tpu.memory_space<vmem>>, vector<256x128xbf16>
      %c0_17 = arith.constant 0 : index
      %c0_18 = arith.constant 0 : index
      %27 = vector.load %arg6[%c0_17, %c0_18] : memref<128x128xbf16, #tpu.memory_space<vmem>>, vector<128x128xbf16>
      %cst_19 = arith.constant dense<0.000000e+00> : vector<256x128xf32>
      %28 = tpu.matmul %26, %27, %cst_19 {dimension_numbers = #tpu.dot_dimension_numbers<[1], [0], [0], [1], [0, 0, 1, 1], [], []>} : vector<256x128xbf16>, vector<128x128xbf16>, vector<256x128xf32> -> vector<256x128xf32>
      %29 = arith.truncf %28 : vector<256x128xf32> to vector<256x128xbf16>
      %c256_i32_20 = arith.constant 256 : i32
      %30 = arith.muli %arg1, %c256_i32_20 : i32
      %31 = tpu.assume_multiple %30, 256 : i32
      %32 = arith.index_cast %31 : i32 to index
      %c0_21 = arith.constant 0 : index
      %33 = vector.load %arg10[%32, %c0_21] : memref<256x128xbf16, #tpu.memory_space<vmem>>, vector<256x128xbf16>
      tpu.vector_store %arg10[%32, %c0_21], %29 {strides = array<i32>} : memref<256x128xbf16, #tpu.memory_space<vmem>>, vector<256x128xbf16>,
    } else {
    }
    %c0_i32_1 = arith.constant 0 : i32
    %3 = arith.cmpi eq, %arg1, %c0_i32_1 : i32
    %4 = arith.extui %3 : i1 to i32
    %c0_i32_2 = arith.constant 0 : i32
    %5 = arith.cmpi ne, %4, %c0_i32_2 : i32
    scf.if %5 {
      %cst_15 = arith.constant 0.000000e+00 : f32
      %26 = vector.broadcast %cst_15 : f32 to vector<128x128xf32>
      %c0_16 = arith.constant 0 : index
      %c0_17 = arith.constant 0 : index
      %27 = vector.load %arg11[%c0_16, %c0_17] : memref<128x128xf32, #tpu.memory_space<vmem>>, vector<128x128xf32>
      tpu.vector_store %arg11[%c0_16, %c0_17], %26 {strides = array<i32>} : memref<128x128xf32, #tpu.memory_space<vmem>>, vector<128x128xf32>,
    } else {
    }
    %c0 = arith.constant 0 : index
    %c0_3 = arith.constant 0 : index
    %6 = vector.load %arg2[%c0, %c0_3] : memref<128x256xbf16, #tpu.memory_space<vmem>>, vector<128x256xbf16>
    %7 = arith.extf %6 : vector<128x256xbf16> to vector<128x256xf32>
    %c0_4 = arith.constant 0 : index
    %c0_5 = arith.constant 0 : index
    %8 = vector.load %arg3[%c0_4, %c0_5] : memref<128x1xf32, #tpu.memory_space<vmem>>, vector<128x1xf32>
    %9 = vector.broadcast %8 : vector<128x1xf32> to vector<128x256xf32>
    %10 = arith.mulf %7, %9 : vector<128x256xf32>
    %c0_6 = arith.constant 0 : index
    %c0_7 = arith.constant 0 : index
    %11 = vector.load %arg4[%c0_6, %c0_7] : memref<1x256xf32, #tpu.memory_space<vmem>>, vector<1x256xf32>
    %12 = vector.broadcast %11 : vector<1x256xf32> to vector<128x256xf32>
    %13 = arith.mulf %10, %12 : vector<128x256xf32>
    %c256_i32 = arith.constant 256 : i32
    %14 = arith.muli %arg1, %c256_i32 : i32
    %15 = tpu.assume_multiple %14, 256 : i32
    %16 = arith.index_cast %15 : i32 to index
    %c0_8 = arith.constant 0 : index
    %17 = vector.load %arg10[%16, %c0_8] : memref<256x128xbf16, #tpu.memory_space<vmem>>, vector<256x128xbf16>
    %c0_9 = arith.constant 0 : index
    %c0_10 = arith.constant 0 : index
    %18 = vector.load %arg11[%c0_9, %c0_10] : memref<128x128xf32, #tpu.memory_space<vmem>>, vector<128x128xf32>
    %19 = arith.truncf %13 : vector<128x256xf32> to vector<128x256xbf16>
    %cst = arith.constant dense<0.000000e+00> : vector<128x128xf32>
    %20 = tpu.matmul %19, %17, %cst {dimension_numbers = #tpu.dot_dimension_numbers<[1], [0], [0], [1], [0, 0, 1, 1], [], []>} : vector<128x256xbf16>, vector<256x128xbf16>, vector<128x128xf32> -> vector<128x128xf32>
    %21 = arith.addf %18, %20 : vector<128x128xf32>
    %c0_11 = arith.constant 0 : index
    %c0_12 = arith.constant 0 : index
    %22 = vector.load %arg11[%c0_11, %c0_12] : memref<128x128xf32, #tpu.memory_space<vmem>>, vector<128x128xf32>
    tpu.vector_store %arg11[%c0_11, %c0_12], %21 {strides = array<i32>} : memref<128x128xf32, #tpu.memory_space<vmem>>, vector<128x128xf32>,
    %c0_i32_13 = arith.constant 0 : i32
    %23 = arith.cmpi eq, %arg1, %c0_i32_13 : i32
    %24 = arith.extui %23 : i1 to i32
    %c0_i32_14 = arith.constant 0 : i32
    %25 = arith.cmpi ne, %24, %c0_i32_14 : i32
    scf.if %25 {
      %c0_15 = arith.constant 0 : index
      %c0_16 = arith.constant 0 : index
      %26 = vector.load %arg11[%c0_15, %c0_16] : memref<128x128xf32, #tpu.memory_space<vmem>>, vector<128x128xf32>
      %c0_17 = arith.constant 0 : index
      %c0_18 = arith.constant 0 : index
      %27 = vector.load %arg7[%c0_17, %c0_18] : memref<1x128xf32, #tpu.memory_space<vmem>>, vector<1x128xf32>
      %28 = vector.broadcast %27 : vector<1x128xf32> to vector<128x128xf32>
      %29 = arith.addf %26, %28 : vector<128x128xf32>
      %cst_19 = arith.constant 0.000000e+00 : f32
      %30 = vector.broadcast %cst_19 : f32 to vector<128x128xf32>
      %31 = arith.maximumf %29, %30 : vector<128x128xf32>
      %c0_20 = arith.constant 0 : index
      %c0_21 = arith.constant 0 : index
      %32 = vector.load %arg8[%c0_20, %c0_21] : memref<128x128xf32, #tpu.memory_space<vmem>>, vector<128x128xf32>
      %cst_22 = arith.constant 5.000000e-01 : f32
      %33 = vector.broadcast %cst_22 : f32 to vector<128x128xf32>
      %34 = arith.mulf %33, %32 : vector<128x128xf32>
      %35 = arith.addf %31, %34 : vector<128x128xf32>
      %36 = arith.truncf %35 : vector<128x128xf32> to vector<128x128xbf16>
      %c0_23 = arith.constant 0 : index
      %c0_24 = arith.constant 0 : index
      %37 = vector.load %arg9[%c0_23, %c0_24] : memref<128x128xbf16, #tpu.memory_space<vmem>>, vector<128x128xbf16>
      tpu.vector_store %arg9[%c0_23, %c0_24], %36 {strides = array<i32>} : memref<128x128xbf16, #tpu.memory_space<vmem>>, vector<128x128xbf16>,
    } else {
    }
    return
  }
  func.func @transform_0(%arg0: i32, %arg1: i32) -> (i32, i32) {
    %c0_i32 = arith.constant 0 : i32
    return %arg0, %arg1 : i32, i32
  }
  func.func @transform_1(%arg0: i32, %arg1: i32) -> (i32, i32) {
    %c0_i32 = arith.constant 0 : i32
    %c0_i32_0 = arith.constant 0 : i32
    return %arg0, %c0_i32 : i32, i32
  }
  func.func @transform_2(%arg0: i32, %arg1: i32) -> (i32, i32) {
    %c0_i32 = arith.constant 0 : i32
    %c0_i32_0 = arith.constant 0 : i32
    return %c0_i32, %arg1 : i32, i32
  }
  func.func @transform_3(%arg0: i32, %arg1: i32) -> (i32, i32) {
    %c0_i32 = arith.constant 0 : i32
    %c0_i32_0 = arith.constant 0 : i32
    return %arg1, %c0_i32 : i32, i32
  }
  func.func @transform_4(%arg0: i32, %arg1: i32) -> (i32, i32) {
    %c0_i32 = arith.constant 0 : i32
    %c0_i32_0 = arith.constant 0 : i32
    %c0_i32_1 = arith.constant 0 : i32
    return %c0_i32, %c0_i32_0 : i32, i32
  }
  func.func @transform_5(%arg0: i32, %arg1: i32) -> (i32, i32) {
    %c0_i32 = arith.constant 0 : i32
    %c0_i32_0 = arith.constant 0 : i32
    %c0_i32_1 = arith.constant 0 : i32
    return %c0_i32, %c0_i32_0 : i32, i32
  }
  func.func @transform_6(%arg0: i32, %arg1: i32) -> (i32, i32) {
    %c0_i32 = arith.constant 0 : i32
    %c0_i32_0 = arith.constant 0 : i32
    return %arg0, %c0_i32 : i32, i32
  }
  func.func @transform_7(%arg0: i32, %arg1: i32) -> (i32, i32) {
    %c0_i32 = arith.constant 0 : i32
    %c0_i32_0 = arith.constant 0 : i32
    return %arg0, %c0_i32 : i32, i32
  }
}

module attributes {stable_mosaic.version = 11 : i64} {
  func.func @_gate_pool_kernel(%arg0: i32, %arg1: memref<256x128xbf16, #tpu.memory_space<vmem>>, %arg2: memref<256x1xf32, #tpu.memory_space<vmem>>, %arg3: memref<256x1xf32, #tpu.memory_space<vmem>>, %arg4: memref<256x128xbf16, #tpu.memory_space<vmem>>, %arg5: memref<1x128xf32, #tpu.memory_space<vmem>>, %arg6: memref<1x128xf32, #tpu.memory_space<vmem>>, %arg7: memref<1x128xf32, #tpu.memory_space<vmem>>, %arg8: memref<1x128xf32, #tpu.memory_space<vmem>>) attributes {dimension_semantics = [#tpu.dimension_semantics<arbitrary>], iteration_bounds = array<i64: 1>, scalar_prefetch = 0 : i64, scratch_operands = 2 : i64, tpu.core_type = #tpu.core_type<tc>, window_params = [{transform_indices = @transform_0, window_bounds = array<i64: 256, 128>}, {transform_indices = @transform_1, window_bounds = array<i64: 256, 1>}, {transform_indices = @transform_2, window_bounds = array<i64: 256, 1>}, {transform_indices = @transform_3, window_bounds = array<i64: 256, 128>}, {pipeline_mode = #tpu.pipeline_mode<synchronous>, transform_indices = @transform_4, window_bounds = array<i64: 1, 128>}, {pipeline_mode = #tpu.pipeline_mode<synchronous>, transform_indices = @transform_5, window_bounds = array<i64: 1, 128>}]} {
    %c0_i32 = arith.constant 0 : i32
    %0 = arith.cmpi eq, %arg0, %c0_i32 : i32
    %1 = arith.extui %0 : i1 to i32
    %c0_i32_0 = arith.constant 0 : i32
    %2 = arith.cmpi ne, %1, %c0_i32_0 : i32
    scf.if %2 {
      %cst_21 = arith.constant 0xFF800000 : f32
      %30 = vector.broadcast %cst_21 : f32 to vector<1x128xf32>
      %c0_22 = arith.constant 0 : index
      %c0_23 = arith.constant 0 : index
      %31 = vector.load %arg7[%c0_22, %c0_23] : memref<1x128xf32, #tpu.memory_space<vmem>>, vector<1x128xf32>
      tpu.vector_store %arg7[%c0_22, %c0_23], %30 {strides = array<i32>} : memref<1x128xf32, #tpu.memory_space<vmem>>, vector<1x128xf32>,
      %cst_24 = arith.constant 0.000000e+00 : f32
      %32 = vector.broadcast %cst_24 : f32 to vector<1x128xf32>
      %c0_25 = arith.constant 0 : index
      %c0_26 = arith.constant 0 : index
      %33 = vector.load %arg8[%c0_25, %c0_26] : memref<1x128xf32, #tpu.memory_space<vmem>>, vector<1x128xf32>
      tpu.vector_store %arg8[%c0_25, %c0_26], %32 {strides = array<i32>} : memref<1x128xf32, #tpu.memory_space<vmem>>, vector<1x128xf32>,
    } else {
    }
    %c0 = arith.constant 0 : index
    %c0_1 = arith.constant 0 : index
    %3 = vector.load %arg1[%c0, %c0_1] : memref<256x128xbf16, #tpu.memory_space<vmem>>, vector<256x128xbf16>
    %4 = arith.extf %3 : vector<256x128xbf16> to vector<256x128xf32>
    %c0_2 = arith.constant 0 : index
    %c0_3 = arith.constant 0 : index
    %5 = vector.load %arg2[%c0_2, %c0_3] : memref<256x1xf32, #tpu.memory_space<vmem>>, vector<256x1xf32>
    %c0_4 = arith.constant 0 : index
    %c0_5 = arith.constant 0 : index
    %6 = vector.load %arg3[%c0_4, %c0_5] : memref<256x1xf32, #tpu.memory_space<vmem>>, vector<256x1xf32>
    %7 = vector.broadcast %5 : vector<256x1xf32> to vector<256x128xf32>
    %8 = arith.mulf %4, %7 : vector<256x128xf32>
    %9 = arith.truncf %8 : vector<256x128xf32> to vector<256x128xbf16>
    %c0_6 = arith.constant 0 : index
    %c0_7 = arith.constant 0 : index
    %10 = vector.load %arg4[%c0_6, %c0_7] : memref<256x128xbf16, #tpu.memory_space<vmem>>, vector<256x128xbf16>
    tpu.vector_store %arg4[%c0_6, %c0_7], %9 {strides = array<i32>} : memref<256x128xbf16, #tpu.memory_space<vmem>>, vector<256x128xbf16>,
    %cst = arith.constant 0.000000e+00 : f32
    %11 = vector.broadcast %cst : f32 to vector<256x1xf32>
    %12 = arith.cmpf ogt, %6, %11 : vector<256x1xf32>
    %cst_8 = arith.constant 0xFF800000 : f32
    %13 = vector.shape_cast %12 : vector<256x1xi1> to vector<256x1xi1>
    %14 = vector.broadcast %13 : vector<256x1xi1> to vector<256x128xi1>
    %15 = vector.broadcast %cst_8 : f32 to vector<256x128xf32>
    %16 = arith.select %14, %8, %15 : vector<256x128xi1>, vector<256x128xf32>
    %c0_9 = arith.constant 0 : index
    %c0_10 = arith.constant 0 : index
    %17 = vector.load %arg7[%c0_9, %c0_10] : memref<1x128xf32, #tpu.memory_space<vmem>>, vector<1x128xf32>
    %cst_11 = arith.constant dense<0xFF800000> : vector<128xf32>
    %18 = vector.multi_reduction <maximumf>, %16, %cst_11 [0] : vector<256x128xf32> to vector<128xf32>
    %19 = vector.shape_cast %18 : vector<128xf32> to vector<1x128xf32>
    %20 = arith.maximumf %17, %19 : vector<1x128xf32>
    %c0_12 = arith.constant 0 : index
    %c0_13 = arith.constant 0 : index
    %21 = vector.load %arg7[%c0_12, %c0_13] : memref<1x128xf32, #tpu.memory_space<vmem>>, vector<1x128xf32>
    tpu.vector_store %arg7[%c0_12, %c0_13], %20 {strides = array<i32>} : memref<1x128xf32, #tpu.memory_space<vmem>>, vector<1x128xf32>,
    %c0_14 = arith.constant 0 : index
    %c0_15 = arith.constant 0 : index
    %22 = vector.load %arg8[%c0_14, %c0_15] : memref<1x128xf32, #tpu.memory_space<vmem>>, vector<1x128xf32>
    %cst_16 = arith.constant dense<0.000000e+00> : vector<128xf32>
    %23 = vector.multi_reduction <add>, %8, %cst_16 [0] : vector<256x128xf32> to vector<128xf32>
    %24 = vector.shape_cast %23 : vector<128xf32> to vector<1x128xf32>
    %25 = arith.addf %22, %24 : vector<1x128xf32>
    %c0_17 = arith.constant 0 : index
    %c0_18 = arith.constant 0 : index
    %26 = vector.load %arg8[%c0_17, %c0_18] : memref<1x128xf32, #tpu.memory_space<vmem>>, vector<1x128xf32>
    tpu.vector_store %arg8[%c0_17, %c0_18], %25 {strides = array<i32>} : memref<1x128xf32, #tpu.memory_space<vmem>>, vector<1x128xf32>,
    %c0_i32_19 = arith.constant 0 : i32
    %27 = arith.cmpi eq, %arg0, %c0_i32_19 : i32
    %28 = arith.extui %27 : i1 to i32
    %c0_i32_20 = arith.constant 0 : i32
    %29 = arith.cmpi ne, %28, %c0_i32_20 : i32
    scf.if %29 {
      %c0_21 = arith.constant 0 : index
      %c0_22 = arith.constant 0 : index
      %30 = vector.load %arg7[%c0_21, %c0_22] : memref<1x128xf32, #tpu.memory_space<vmem>>, vector<1x128xf32>
      %c0_23 = arith.constant 0 : index
      %c0_24 = arith.constant 0 : index
      %31 = vector.load %arg5[%c0_23, %c0_24] : memref<1x128xf32, #tpu.memory_space<vmem>>, vector<1x128xf32>
      tpu.vector_store %arg5[%c0_23, %c0_24], %30 {strides = array<i32>} : memref<1x128xf32, #tpu.memory_space<vmem>>, vector<1x128xf32>,
      %c0_25 = arith.constant 0 : index
      %c0_26 = arith.constant 0 : index
      %32 = vector.load %arg8[%c0_25, %c0_26] : memref<1x128xf32, #tpu.memory_space<vmem>>, vector<1x128xf32>
      %c0_27 = arith.constant 0 : index
      %c0_28 = arith.constant 0 : index
      %33 = vector.load %arg6[%c0_27, %c0_28] : memref<1x128xf32, #tpu.memory_space<vmem>>, vector<1x128xf32>
      tpu.vector_store %arg6[%c0_27, %c0_28], %32 {strides = array<i32>} : memref<1x128xf32, #tpu.memory_space<vmem>>, vector<1x128xf32>,
    } else {
    }
    return
  }
  func.func @transform_0(%arg0: i32) -> (i32, i32) {
    %c0_i32 = arith.constant 0 : i32
    %c0_i32_0 = arith.constant 0 : i32
    return %arg0, %c0_i32 : i32, i32
  }
  func.func @transform_1(%arg0: i32) -> (i32, i32) {
    %c0_i32 = arith.constant 0 : i32
    %c0_i32_0 = arith.constant 0 : i32
    return %arg0, %c0_i32 : i32, i32
  }
  func.func @transform_2(%arg0: i32) -> (i32, i32) {
    %c0_i32 = arith.constant 0 : i32
    %c0_i32_0 = arith.constant 0 : i32
    return %arg0, %c0_i32 : i32, i32
  }
  func.func @transform_3(%arg0: i32) -> (i32, i32) {
    %c0_i32 = arith.constant 0 : i32
    %c0_i32_0 = arith.constant 0 : i32
    return %arg0, %c0_i32 : i32, i32
  }
  func.func @transform_4(%arg0: i32) -> (i32, i32) {
    %c0_i32 = arith.constant 0 : i32
    %c0_i32_0 = arith.constant 0 : i32
    %c0_i32_1 = arith.constant 0 : i32
    return %c0_i32, %c0_i32_0 : i32, i32
  }
  func.func @transform_5(%arg0: i32) -> (i32, i32) {
    %c0_i32 = arith.constant 0 : i32
    %c0_i32_0 = arith.constant 0 : i32
    %c0_i32_1 = arith.constant 0 : i32
    return %c0_i32, %c0_i32_0 : i32, i32
  }
}

module attributes {stable_mosaic.version = 11 : i64} {
  func.func @kernel(%arg0: i32, %arg1: i32, %arg2: memref<128x256xbf16, #tpu.memory_space<vmem>>, %arg3: memref<128x1xf32, #tpu.memory_space<vmem>>, %arg4: memref<1x256xf32, #tpu.memory_space<vmem>>, %arg5: memref<256x128xbf16, #tpu.memory_space<vmem>>, %arg6: memref<128x128xbf16, #tpu.memory_space<vmem>>, %arg7: memref<1x128xf32, #tpu.memory_space<vmem>>, %arg8: memref<128x128xf32, #tpu.memory_space<vmem>>, %arg9: memref<128x128xbf16, #tpu.memory_space<vmem>>, %arg10: memref<256x128xbf16, #tpu.memory_space<vmem>>, %arg11: memref<128x128xf32, #tpu.memory_space<vmem>>) attributes {dimension_semantics = [#tpu.dimension_semantics<arbitrary>, #tpu.dimension_semantics<arbitrary>], iteration_bounds = array<i64: 2, 1>, scalar_prefetch = 0 : i64, scratch_operands = 2 : i64, tpu.core_type = #tpu.core_type<tc>, window_params = [{transform_indices = @transform_0, window_bounds = array<i64: 128, 256>}, {transform_indices = @transform_1, window_bounds = array<i64: 128, 1>}, {transform_indices = @transform_2, window_bounds = array<i64: 1, 256>}, {transform_indices = @transform_3, window_bounds = array<i64: 256, 128>}, {pipeline_mode = #tpu.pipeline_mode<synchronous>, transform_indices = @transform_4, window_bounds = array<i64: 128, 128>}, {pipeline_mode = #tpu.pipeline_mode<synchronous>, transform_indices = @transform_5, window_bounds = array<i64: 1, 128>}, {transform_indices = @transform_6, window_bounds = array<i64: 128, 128>}, {transform_indices = @transform_7, window_bounds = array<i64: 128, 128>}]} {
    %c0_i32 = arith.constant 0 : i32
    %0 = arith.cmpi eq, %arg0, %c0_i32 : i32
    %1 = arith.extui %0 : i1 to i32
    %c0_i32_0 = arith.constant 0 : i32
    %2 = arith.cmpi ne, %1, %c0_i32_0 : i32
    scf.if %2 {
      %c0_15 = arith.constant 0 : index
      %c0_16 = arith.constant 0 : index
      %26 = vector.load %arg5[%c0_15, %c0_16] : memref<256x128xbf16, #tpu.memory_space<vmem>>, vector<256x128xbf16>
      %c0_17 = arith.constant 0 : index
      %c0_18 = arith.constant 0 : index
      %27 = vector.load %arg6[%c0_17, %c0_18] : memref<128x128xbf16, #tpu.memory_space<vmem>>, vector<128x128xbf16>
      %cst_19 = arith.constant dense<0.000000e+00> : vector<256x128xf32>
      %28 = tpu.matmul %26, %27, %cst_19 {dimension_numbers = #tpu.dot_dimension_numbers<[1], [0], [0], [1], [0, 0, 1, 1], [], []>} : vector<256x128xbf16>, vector<128x128xbf16>, vector<256x128xf32> -> vector<256x128xf32>
      %29 = arith.truncf %28 : vector<256x128xf32> to vector<256x128xbf16>
      %c256_i32_20 = arith.constant 256 : i32
      %30 = arith.muli %arg1, %c256_i32_20 : i32
      %31 = tpu.assume_multiple %30, 256 : i32
      %32 = arith.index_cast %31 : i32 to index
      %c0_21 = arith.constant 0 : index
      %33 = vector.load %arg10[%32, %c0_21] : memref<256x128xbf16, #tpu.memory_space<vmem>>, vector<256x128xbf16>
      tpu.vector_store %arg10[%32, %c0_21], %29 {strides = array<i32>} : memref<256x128xbf16, #tpu.memory_space<vmem>>, vector<256x128xbf16>,
    } else {
    }
    %c0_i32_1 = arith.constant 0 : i32
    %3 = arith.cmpi eq, %arg1, %c0_i32_1 : i32
    %4 = arith.extui %3 : i1 to i32
    %c0_i32_2 = arith.constant 0 : i32
    %5 = arith.cmpi ne, %4, %c0_i32_2 : i32
    scf.if %5 {
      %cst_15 = arith.constant 0.000000e+00 : f32
      %26 = vector.broadcast %cst_15 : f32 to vector<128x128xf32>
      %c0_16 = arith.constant 0 : index
      %c0_17 = arith.constant 0 : index
      %27 = vector.load %arg11[%c0_16, %c0_17] : memref<128x128xf32, #tpu.memory_space<vmem>>, vector<128x128xf32>
      tpu.vector_store %arg11[%c0_16, %c0_17], %26 {strides = array<i32>} : memref<128x128xf32, #tpu.memory_space<vmem>>, vector<128x128xf32>,
    } else {
    }
    %c0 = arith.constant 0 : index
    %c0_3 = arith.constant 0 : index
    %6 = vector.load %arg2[%c0, %c0_3] : memref<128x256xbf16, #tpu.memory_space<vmem>>, vector<128x256xbf16>
    %7 = arith.extf %6 : vector<128x256xbf16> to vector<128x256xf32>
    %c0_4 = arith.constant 0 : index
    %c0_5 = arith.constant 0 : index
    %8 = vector.load %arg3[%c0_4, %c0_5] : memref<128x1xf32, #tpu.memory_space<vmem>>, vector<128x1xf32>
    %9 = vector.broadcast %8 : vector<128x1xf32> to vector<128x256xf32>
    %10 = arith.mulf %7, %9 : vector<128x256xf32>
    %c0_6 = arith.constant 0 : index
    %c0_7 = arith.constant 0 : index
    %11 = vector.load %arg4[%c0_6, %c0_7] : memref<1x256xf32, #tpu.memory_space<vmem>>, vector<1x256xf32>
    %12 = vector.broadcast %11 : vector<1x256xf32> to vector<128x256xf32>
    %13 = arith.mulf %10, %12 : vector<128x256xf32>
    %c256_i32 = arith.constant 256 : i32
    %14 = arith.muli %arg1, %c256_i32 : i32
    %15 = tpu.assume_multiple %14, 256 : i32
    %16 = arith.index_cast %15 : i32 to index
    %c0_8 = arith.constant 0 : index
    %17 = vector.load %arg10[%16, %c0_8] : memref<256x128xbf16, #tpu.memory_space<vmem>>, vector<256x128xbf16>
    %c0_9 = arith.constant 0 : index
    %c0_10 = arith.constant 0 : index
    %18 = vector.load %arg11[%c0_9, %c0_10] : memref<128x128xf32, #tpu.memory_space<vmem>>, vector<128x128xf32>
    %19 = arith.truncf %13 : vector<128x256xf32> to vector<128x256xbf16>
    %cst = arith.constant dense<0.000000e+00> : vector<128x128xf32>
    %20 = tpu.matmul %19, %17, %cst {dimension_numbers = #tpu.dot_dimension_numbers<[1], [0], [0], [1], [0, 0, 1, 1], [], []>} : vector<128x256xbf16>, vector<256x128xbf16>, vector<128x128xf32> -> vector<128x128xf32>
    %21 = arith.addf %18, %20 : vector<128x128xf32>
    %c0_11 = arith.constant 0 : index
    %c0_12 = arith.constant 0 : index
    %22 = vector.load %arg11[%c0_11, %c0_12] : memref<128x128xf32, #tpu.memory_space<vmem>>, vector<128x128xf32>
    tpu.vector_store %arg11[%c0_11, %c0_12], %21 {strides = array<i32>} : memref<128x128xf32, #tpu.memory_space<vmem>>, vector<128x128xf32>,
    %c0_i32_13 = arith.constant 0 : i32
    %23 = arith.cmpi eq, %arg1, %c0_i32_13 : i32
    %24 = arith.extui %23 : i1 to i32
    %c0_i32_14 = arith.constant 0 : i32
    %25 = arith.cmpi ne, %24, %c0_i32_14 : i32
    scf.if %25 {
      %c0_15 = arith.constant 0 : index
      %c0_16 = arith.constant 0 : index
      %26 = vector.load %arg11[%c0_15, %c0_16] : memref<128x128xf32, #tpu.memory_space<vmem>>, vector<128x128xf32>
      %c0_17 = arith.constant 0 : index
      %c0_18 = arith.constant 0 : index
      %27 = vector.load %arg7[%c0_17, %c0_18] : memref<1x128xf32, #tpu.memory_space<vmem>>, vector<1x128xf32>
      %28 = vector.broadcast %27 : vector<1x128xf32> to vector<128x128xf32>
      %29 = arith.addf %26, %28 : vector<128x128xf32>
      %cst_19 = arith.constant 0.000000e+00 : f32
      %30 = vector.broadcast %cst_19 : f32 to vector<128x128xf32>
      %31 = arith.maximumf %29, %30 : vector<128x128xf32>
      %c0_20 = arith.constant 0 : index
      %c0_21 = arith.constant 0 : index
      %32 = vector.load %arg8[%c0_20, %c0_21] : memref<128x128xf32, #tpu.memory_space<vmem>>, vector<128x128xf32>
      %cst_22 = arith.constant 2.500000e-01 : f32
      %33 = vector.broadcast %cst_22 : f32 to vector<128x128xf32>
      %34 = arith.mulf %33, %32 : vector<128x128xf32>
      %35 = arith.addf %31, %34 : vector<128x128xf32>
      %36 = arith.truncf %35 : vector<128x128xf32> to vector<128x128xbf16>
      %c0_23 = arith.constant 0 : index
      %c0_24 = arith.constant 0 : index
      %37 = vector.load %arg9[%c0_23, %c0_24] : memref<128x128xbf16, #tpu.memory_space<vmem>>, vector<128x128xbf16>
      tpu.vector_store %arg9[%c0_23, %c0_24], %36 {strides = array<i32>} : memref<128x128xbf16, #tpu.memory_space<vmem>>, vector<128x128xbf16>,
    } else {
    }
    return
  }
  func.func @transform_0(%arg0: i32, %arg1: i32) -> (i32, i32) {
    %c0_i32 = arith.constant 0 : i32
    return %arg0, %arg1 : i32, i32
  }
  func.func @transform_1(%arg0: i32, %arg1: i32) -> (i32, i32) {
    %c0_i32 = arith.constant 0 : i32
    %c0_i32_0 = arith.constant 0 : i32
    return %arg0, %c0_i32 : i32, i32
  }
  func.func @transform_2(%arg0: i32, %arg1: i32) -> (i32, i32) {
    %c0_i32 = arith.constant 0 : i32
    %c0_i32_0 = arith.constant 0 : i32
    return %c0_i32, %arg1 : i32, i32
  }
  func.func @transform_3(%arg0: i32, %arg1: i32) -> (i32, i32) {
    %c0_i32 = arith.constant 0 : i32
    %c0_i32_0 = arith.constant 0 : i32
    return %arg1, %c0_i32 : i32, i32
  }
  func.func @transform_4(%arg0: i32, %arg1: i32) -> (i32, i32) {
    %c0_i32 = arith.constant 0 : i32
    %c0_i32_0 = arith.constant 0 : i32
    %c0_i32_1 = arith.constant 0 : i32
    return %c0_i32, %c0_i32_0 : i32, i32
  }
  func.func @transform_5(%arg0: i32, %arg1: i32) -> (i32, i32) {
    %c0_i32 = arith.constant 0 : i32
    %c0_i32_0 = arith.constant 0 : i32
    %c0_i32_1 = arith.constant 0 : i32
    return %c0_i32, %c0_i32_0 : i32, i32
  }
  func.func @transform_6(%arg0: i32, %arg1: i32) -> (i32, i32) {
    %c0_i32 = arith.constant 0 : i32
    %c0_i32_0 = arith.constant 0 : i32
    return %arg0, %c0_i32 : i32, i32
  }
  func.func @transform_7(%arg0: i32, %arg1: i32) -> (i32, i32) {
    %c0_i32 = arith.constant 0 : i32
    %c0_i32_0 = arith.constant 0 : i32
    return %arg0, %c0_i32 : i32, i32
  }
}

module attributes {stable_mosaic.version = 11 : i64} {
  func.func @_gate_pool_kernel(%arg0: i32, %arg1: memref<256x128xbf16, #tpu.memory_space<vmem>>, %arg2: memref<256x1xf32, #tpu.memory_space<vmem>>, %arg3: memref<256x1xf32, #tpu.memory_space<vmem>>, %arg4: memref<256x128xbf16, #tpu.memory_space<vmem>>, %arg5: memref<1x128xf32, #tpu.memory_space<vmem>>, %arg6: memref<1x128xf32, #tpu.memory_space<vmem>>, %arg7: memref<1x128xf32, #tpu.memory_space<vmem>>, %arg8: memref<1x128xf32, #tpu.memory_space<vmem>>) attributes {dimension_semantics = [#tpu.dimension_semantics<arbitrary>], iteration_bounds = array<i64: 1>, scalar_prefetch = 0 : i64, scratch_operands = 2 : i64, tpu.core_type = #tpu.core_type<tc>, window_params = [{transform_indices = @transform_0, window_bounds = array<i64: 256, 128>}, {transform_indices = @transform_1, window_bounds = array<i64: 256, 1>}, {transform_indices = @transform_2, window_bounds = array<i64: 256, 1>}, {transform_indices = @transform_3, window_bounds = array<i64: 256, 128>}, {pipeline_mode = #tpu.pipeline_mode<synchronous>, transform_indices = @transform_4, window_bounds = array<i64: 1, 128>}, {pipeline_mode = #tpu.pipeline_mode<synchronous>, transform_indices = @transform_5, window_bounds = array<i64: 1, 128>}]} {
    %c0_i32 = arith.constant 0 : i32
    %0 = arith.cmpi eq, %arg0, %c0_i32 : i32
    %1 = arith.extui %0 : i1 to i32
    %c0_i32_0 = arith.constant 0 : i32
    %2 = arith.cmpi ne, %1, %c0_i32_0 : i32
    scf.if %2 {
      %cst_21 = arith.constant 0xFF800000 : f32
      %30 = vector.broadcast %cst_21 : f32 to vector<1x128xf32>
      %c0_22 = arith.constant 0 : index
      %c0_23 = arith.constant 0 : index
      %31 = vector.load %arg7[%c0_22, %c0_23] : memref<1x128xf32, #tpu.memory_space<vmem>>, vector<1x128xf32>
      tpu.vector_store %arg7[%c0_22, %c0_23], %30 {strides = array<i32>} : memref<1x128xf32, #tpu.memory_space<vmem>>, vector<1x128xf32>,
      %cst_24 = arith.constant 0.000000e+00 : f32
      %32 = vector.broadcast %cst_24 : f32 to vector<1x128xf32>
      %c0_25 = arith.constant 0 : index
      %c0_26 = arith.constant 0 : index
      %33 = vector.load %arg8[%c0_25, %c0_26] : memref<1x128xf32, #tpu.memory_space<vmem>>, vector<1x128xf32>
      tpu.vector_store %arg8[%c0_25, %c0_26], %32 {strides = array<i32>} : memref<1x128xf32, #tpu.memory_space<vmem>>, vector<1x128xf32>,
    } else {
    }
    %c0 = arith.constant 0 : index
    %c0_1 = arith.constant 0 : index
    %3 = vector.load %arg1[%c0, %c0_1] : memref<256x128xbf16, #tpu.memory_space<vmem>>, vector<256x128xbf16>
    %4 = arith.extf %3 : vector<256x128xbf16> to vector<256x128xf32>
    %c0_2 = arith.constant 0 : index
    %c0_3 = arith.constant 0 : index
    %5 = vector.load %arg2[%c0_2, %c0_3] : memref<256x1xf32, #tpu.memory_space<vmem>>, vector<256x1xf32>
    %c0_4 = arith.constant 0 : index
    %c0_5 = arith.constant 0 : index
    %6 = vector.load %arg3[%c0_4, %c0_5] : memref<256x1xf32, #tpu.memory_space<vmem>>, vector<256x1xf32>
    %7 = vector.broadcast %5 : vector<256x1xf32> to vector<256x128xf32>
    %8 = arith.mulf %4, %7 : vector<256x128xf32>
    %9 = arith.truncf %8 : vector<256x128xf32> to vector<256x128xbf16>
    %c0_6 = arith.constant 0 : index
    %c0_7 = arith.constant 0 : index
    %10 = vector.load %arg4[%c0_6, %c0_7] : memref<256x128xbf16, #tpu.memory_space<vmem>>, vector<256x128xbf16>
    tpu.vector_store %arg4[%c0_6, %c0_7], %9 {strides = array<i32>} : memref<256x128xbf16, #tpu.memory_space<vmem>>, vector<256x128xbf16>,
    %cst = arith.constant 0.000000e+00 : f32
    %11 = vector.broadcast %cst : f32 to vector<256x1xf32>
    %12 = arith.cmpf ogt, %6, %11 : vector<256x1xf32>
    %cst_8 = arith.constant 0xFF800000 : f32
    %13 = vector.shape_cast %12 : vector<256x1xi1> to vector<256x1xi1>
    %14 = vector.broadcast %13 : vector<256x1xi1> to vector<256x128xi1>
    %15 = vector.broadcast %cst_8 : f32 to vector<256x128xf32>
    %16 = arith.select %14, %8, %15 : vector<256x128xi1>, vector<256x128xf32>
    %c0_9 = arith.constant 0 : index
    %c0_10 = arith.constant 0 : index
    %17 = vector.load %arg7[%c0_9, %c0_10] : memref<1x128xf32, #tpu.memory_space<vmem>>, vector<1x128xf32>
    %cst_11 = arith.constant dense<0xFF800000> : vector<128xf32>
    %18 = vector.multi_reduction <maximumf>, %16, %cst_11 [0] : vector<256x128xf32> to vector<128xf32>
    %19 = vector.shape_cast %18 : vector<128xf32> to vector<1x128xf32>
    %20 = arith.maximumf %17, %19 : vector<1x128xf32>
    %c0_12 = arith.constant 0 : index
    %c0_13 = arith.constant 0 : index
    %21 = vector.load %arg7[%c0_12, %c0_13] : memref<1x128xf32, #tpu.memory_space<vmem>>, vector<1x128xf32>
    tpu.vector_store %arg7[%c0_12, %c0_13], %20 {strides = array<i32>} : memref<1x128xf32, #tpu.memory_space<vmem>>, vector<1x128xf32>,
    %c0_14 = arith.constant 0 : index
    %c0_15 = arith.constant 0 : index
    %22 = vector.load %arg8[%c0_14, %c0_15] : memref<1x128xf32, #tpu.memory_space<vmem>>, vector<1x128xf32>
    %cst_16 = arith.constant dense<0.000000e+00> : vector<128xf32>
    %23 = vector.multi_reduction <add>, %8, %cst_16 [0] : vector<256x128xf32> to vector<128xf32>
    %24 = vector.shape_cast %23 : vector<128xf32> to vector<1x128xf32>
    %25 = arith.addf %22, %24 : vector<1x128xf32>
    %c0_17 = arith.constant 0 : index
    %c0_18 = arith.constant 0 : index
    %26 = vector.load %arg8[%c0_17, %c0_18] : memref<1x128xf32, #tpu.memory_space<vmem>>, vector<1x128xf32>
    tpu.vector_store %arg8[%c0_17, %c0_18], %25 {strides = array<i32>} : memref<1x128xf32, #tpu.memory_space<vmem>>, vector<1x128xf32>,
    %c0_i32_19 = arith.constant 0 : i32
    %27 = arith.cmpi eq, %arg0, %c0_i32_19 : i32
    %28 = arith.extui %27 : i1 to i32
    %c0_i32_20 = arith.constant 0 : i32
    %29 = arith.cmpi ne, %28, %c0_i32_20 : i32
    scf.if %29 {
      %c0_21 = arith.constant 0 : index
      %c0_22 = arith.constant 0 : index
      %30 = vector.load %arg7[%c0_21, %c0_22] : memref<1x128xf32, #tpu.memory_space<vmem>>, vector<1x128xf32>
      %c0_23 = arith.constant 0 : index
      %c0_24 = arith.constant 0 : index
      %31 = vector.load %arg5[%c0_23, %c0_24] : memref<1x128xf32, #tpu.memory_space<vmem>>, vector<1x128xf32>
      tpu.vector_store %arg5[%c0_23, %c0_24], %30 {strides = array<i32>} : memref<1x128xf32, #tpu.memory_space<vmem>>, vector<1x128xf32>,
      %c0_25 = arith.constant 0 : index
      %c0_26 = arith.constant 0 : index
      %32 = vector.load %arg8[%c0_25, %c0_26] : memref<1x128xf32, #tpu.memory_space<vmem>>, vector<1x128xf32>
      %c0_27 = arith.constant 0 : index
      %c0_28 = arith.constant 0 : index
      %33 = vector.load %arg6[%c0_27, %c0_28] : memref<1x128xf32, #tpu.memory_space<vmem>>, vector<1x128xf32>
      tpu.vector_store %arg6[%c0_27, %c0_28], %32 {strides = array<i32>} : memref<1x128xf32, #tpu.memory_space<vmem>>, vector<1x128xf32>,
    } else {
    }
    return
  }
  func.func @transform_0(%arg0: i32) -> (i32, i32) {
    %c0_i32 = arith.constant 0 : i32
    %c0_i32_0 = arith.constant 0 : i32
    return %arg0, %c0_i32 : i32, i32
  }
  func.func @transform_1(%arg0: i32) -> (i32, i32) {
    %c0_i32 = arith.constant 0 : i32
    %c0_i32_0 = arith.constant 0 : i32
    return %arg0, %c0_i32 : i32, i32
  }
  func.func @transform_2(%arg0: i32) -> (i32, i32) {
    %c0_i32 = arith.constant 0 : i32
    %c0_i32_0 = arith.constant 0 : i32
    return %arg0, %c0_i32 : i32, i32
  }
  func.func @transform_3(%arg0: i32) -> (i32, i32) {
    %c0_i32 = arith.constant 0 : i32
    %c0_i32_0 = arith.constant 0 : i32
    return %arg0, %c0_i32 : i32, i32
  }
  func.func @transform_4(%arg0: i32) -> (i32, i32) {
    %c0_i32 = arith.constant 0 : i32
    %c0_i32_0 = arith.constant 0 : i32
    %c0_i32_1 = arith.constant 0 : i32
    return %c0_i32, %c0_i32_0 : i32, i32
  }
  func.func @transform_5(%arg0: i32) -> (i32, i32) {
    %c0_i32 = arith.constant 0 : i32
    %c0_i32_0 = arith.constant 0 : i32
    %c0_i32_1 = arith.constant 0 : i32
    return %c0_i32, %c0_i32_0 : i32, i32
  }
}

module attributes {stable_mosaic.version = 11 : i64} {
  func.func @_mlp_kernel(%arg0: i32, %arg1: memref<8x256xbf16, #tpu.memory_space<vmem>>, %arg2: memref<256x128xbf16, #tpu.memory_space<vmem>>, %arg3: memref<1x128xf32, #tpu.memory_space<vmem>>, %arg4: memref<128x128xbf16, #tpu.memory_space<vmem>>, %arg5: memref<1x128xf32, #tpu.memory_space<vmem>>, %arg6: memref<8x128xf32, #tpu.memory_space<vmem>>) attributes {dimension_semantics = [#tpu.dimension_semantics<arbitrary>], iteration_bounds = array<i64: 1>, scalar_prefetch = 0 : i64, scratch_operands = 0 : i64, tpu.core_type = #tpu.core_type<tc>, window_params = [{pipeline_mode = #tpu.pipeline_mode<synchronous>, transform_indices = @transform_0, window_bounds = array<i64: 8, 256>}, {pipeline_mode = #tpu.pipeline_mode<synchronous>, transform_indices = @transform_1, window_bounds = array<i64: 256, 128>}, {pipeline_mode = #tpu.pipeline_mode<synchronous>, transform_indices = @transform_2, window_bounds = array<i64: 1, 128>}, {pipeline_mode = #tpu.pipeline_mode<synchronous>, transform_indices = @transform_3, window_bounds = array<i64: 128, 128>}, {pipeline_mode = #tpu.pipeline_mode<synchronous>, transform_indices = @transform_4, window_bounds = array<i64: 1, 128>}, {pipeline_mode = #tpu.pipeline_mode<synchronous>, transform_indices = @transform_5, window_bounds = array<i64: 8, 128>}]} {
    %c0 = arith.constant 0 : index
    %c0_0 = arith.constant 0 : index
    %0 = vector.load %arg1[%c0, %c0_0] : memref<8x256xbf16, #tpu.memory_space<vmem>>, vector<8x256xbf16>
    %c0_1 = arith.constant 0 : index
    %c0_2 = arith.constant 0 : index
    %1 = vector.load %arg2[%c0_1, %c0_2] : memref<256x128xbf16, #tpu.memory_space<vmem>>, vector<256x128xbf16>
    %cst = arith.constant dense<0.000000e+00> : vector<8x128xf32>
    %2 = tpu.matmul %0, %1, %cst {dimension_numbers = #tpu.dot_dimension_numbers<[1], [0], [0], [1], [0, 0, 1, 1], [], []>} : vector<8x256xbf16>, vector<256x128xbf16>, vector<8x128xf32> -> vector<8x128xf32>
    %c0_3 = arith.constant 0 : index
    %c0_4 = arith.constant 0 : index
    %3 = vector.load %arg3[%c0_3, %c0_4] : memref<1x128xf32, #tpu.memory_space<vmem>>, vector<1x128xf32>
    %4 = vector.broadcast %3 : vector<1x128xf32> to vector<8x128xf32>
    %5 = arith.addf %2, %4 : vector<8x128xf32>
    %cst_5 = arith.constant 0.000000e+00 : f32
    %6 = vector.broadcast %cst_5 : f32 to vector<8x128xf32>
    %7 = arith.maximumf %5, %6 : vector<8x128xf32>
    %8 = arith.truncf %7 : vector<8x128xf32> to vector<8x128xbf16>
    %c0_6 = arith.constant 0 : index
    %c0_7 = arith.constant 0 : index
    %9 = vector.load %arg4[%c0_6, %c0_7] : memref<128x128xbf16, #tpu.memory_space<vmem>>, vector<128x128xbf16>
    %cst_8 = arith.constant dense<0.000000e+00> : vector<8x128xf32>
    %10 = tpu.matmul %8, %9, %cst_8 {dimension_numbers = #tpu.dot_dimension_numbers<[1], [0], [0], [1], [0, 0, 1, 1], [], []>} : vector<8x128xbf16>, vector<128x128xbf16>, vector<8x128xf32> -> vector<8x128xf32>
    %c0_9 = arith.constant 0 : index
    %c0_10 = arith.constant 0 : index
    %11 = vector.load %arg5[%c0_9, %c0_10] : memref<1x128xf32, #tpu.memory_space<vmem>>, vector<1x128xf32>
    %12 = vector.broadcast %11 : vector<1x128xf32> to vector<8x128xf32>
    %13 = arith.addf %10, %12 : vector<8x128xf32>
    %c0_11 = arith.constant 0 : index
    %c0_12 = arith.constant 0 : index
    %14 = vector.load %arg6[%c0_11, %c0_12] : memref<8x128xf32, #tpu.memory_space<vmem>>, vector<8x128xf32>
    tpu.vector_store %arg6[%c0_11, %c0_12], %13 {strides = array<i32>} : memref<8x128xf32, #tpu.memory_space<vmem>>, vector<8x128xf32>,
    return
  }
  func.func @transform_0(%arg0: i32) -> (i32, i32) {
    %c0_i32 = arith.constant 0 : i32
    %c0_i32_0 = arith.constant 0 : i32
    %c0_i32_1 = arith.constant 0 : i32
    return %c0_i32, %c0_i32_0 : i32, i32
  }
  func.func @transform_1(%arg0: i32) -> (i32, i32) {
    %c0_i32 = arith.constant 0 : i32
    %c0_i32_0 = arith.constant 0 : i32
    %c0_i32_1 = arith.constant 0 : i32
    return %c0_i32, %c0_i32_0 : i32, i32
  }
  func.func @transform_2(%arg0: i32) -> (i32, i32) {
    %c0_i32 = arith.constant 0 : i32
    %c0_i32_0 = arith.constant 0 : i32
    %c0_i32_1 = arith.constant 0 : i32
    return %c0_i32, %c0_i32_0 : i32, i32
  }
  func.func @transform_3(%arg0: i32) -> (i32, i32) {
    %c0_i32 = arith.constant 0 : i32
    %c0_i32_0 = arith.constant 0 : i32
    %c0_i32_1 = arith.constant 0 : i32
    return %c0_i32, %c0_i32_0 : i32, i32
  }
  func.func @transform_4(%arg0: i32) -> (i32, i32) {
    %c0_i32 = arith.constant 0 : i32
    %c0_i32_0 = arith.constant 0 : i32
    %c0_i32_1 = arith.constant 0 : i32
    return %c0_i32, %c0_i32_0 : i32, i32
  }
  func.func @transform_5(%arg0: i32) -> (i32, i32) {
    %c0_i32 = arith.constant 0 : i32
    %c0_i32_0 = arith.constant 0 : i32
    %c0_i32_1 = arith.constant 0 : i32
    return %c0_i32, %c0_i32_0 : i32, i32
  }
}

</mosaic_0001>

<llo_original>
// kernel: _lambda_.5
$region0: #{_lambda_.5}
  #allocation0 [shape = 'u32[]', space=smem, size = 0x4, offset = 0x4, fixed_abs, tag = 'smem constant byte address 0x4 - core index']
  #allocation1 [shape = 'u32[144,128]{1,0:T(1,128)}', space=vmem, size = 0x12000, scoped, tag = 'internal scratch']
  #allocation2 [shape = 'bf16[256,128]{1,0:T(8,128)(2,1)}', space=vmem, size = 0x10000, scoped, tag = 'scratch operand']
  #allocation3 [shape = 'f32[128,128]{1,0:T(8,128)}', space=vmem, size = 0x10000, scoped, tag = 'scratch operand']
  %s0 = inlined_call_operand.vmem [shape: bf16[256,256], index: 0, kind: input, shape index: {}]
  %s1 = inlined_call_operand.vmem [shape: f32[256,1], index: 1, kind: input, shape index: {}]
  %s2 = inlined_call_operand.vmem [shape: f32[1,256], index: 2, kind: input, shape index: {}]
  %s3 = inlined_call_operand.vmem [shape: bf16[256,128], index: 3, kind: input, shape index: {}]
  %s4 = inlined_call_operand.vmem [shape: bf16[128,128], index: 4, kind: input, shape index: {}]
  %s5 = inlined_call_operand.vmem [shape: f32[1,128], index: 5, kind: input, shape index: {}]
  %s6 = inlined_call_operand.vmem [shape: f32[256,128], index: 6, kind: input, shape index: {}]
  %s7 = inlined_call_operand.vmem [shape: bf16[256,128], index: 7, kind: output, shape index: {}]
  %s8 = sld [smem:[#allocation0]]
  $region73: #{_lambda_.5} parent=0
    _
  %s10 = ssub.s32 1, %s8
  %s11 = scalar_select 0, %s10, %s8
  loop: start=0, step=1, limit=4
  $region2: #{_lambda_.5} parent=0 // loop_pre_header
    _
  $region3: #{_lambda_.5} parent=0 // loop_header
    %s13 = sphi 0, %s17
    %p14 = scmp.ge.s32.totalorder %s13, 4
    %s20 = sphi 0, %s32
    %s21 = sphi 0, %s28
    %s22 = sphi 0, %s20
    %s23 = sphi 0, %s21
    %s24 = sphi 0, %s22
    %s25 = sphi 0, %s23
    %s37 = sphi 0, %s39
    %s40 = sphi 0, %s37
    %s41 = sphi 0, %s40
    %s57 = sphi 0, %s41
    %s63 = sphi 0, %s65
    %s66 = sphi 0, %s63
    %s67 = sphi 0, %s66
    %s83 = sphi 0, %s67
    %s89 = sphi 0, %s91
    %s92 = sphi 0, %s89
    %s93 = sphi 0, %s92
    %s109 = sphi 0, %s93
    %s115 = sphi 0, %s117
    %s118 = sphi 0, %s115
    %s119 = sphi 0, %s118
    %s135 = sphi 0, %s119
    %s139 = sphi 0, %s139
    %s141 = sphi 0, %s139
    %s142 = sphi 0, %s141
    %s156 = sphi 0, %s142
    %s160 = sphi 0, %s160
    %s162 = sphi 0, %s160
    %s163 = sphi 0, %s162
    %s177 = sphi 0, %s163
    %s183 = sphi 0, %s185
    %s186 = sphi 0, %s183
    %s187 = sphi 0, %s186
    %s203 = sphi 0, %s187
    %s209 = sphi 0, %s211
    %s212 = sphi 0, %s209
    %s213 = sphi 0, %s212
    %s229 = sphi 0, %s213
  $region4: #{_lambda_.5} parent=0 // loop_header_branch
    %16 = sbr.rel (%p14) target = $region8
  $region5: #{_lambda_.5} parent=0 // loop_body
    %s18 = ssub.s32 %s13, 1
    %s19 = ssub.s32 %s13, 2
    %s26 = sadd.s32 1, %s21
    %p27 = scmp.ge.s32.totalorder %s26, 1
    %s28 = scalar_select %p27, 0, %s26
    %s29 = sadd.s32 1, %s20
    %s30 = scalar_select %p27, %s29, %s20
    %p31 = scmp.ge.s32.totalorder %s30, 2
    %s32 = scalar_select %p31, 0, %s30
    %s33 = ssub.s32 %s20, %s32
    %s34 = ssub.s32 %s21, %s28
    %s35 = sor.u32 %s33, %s34
    %p36 = scmp.eq.s32.totalorder %s35, 0
    %s38 = sadd.s32 %s37, 1
    %s39 = scalar_select %p36, %s37, %s38
    %p42 = pneg %p36
    %p43 = scmp.eq.s32.totalorder %s13, 1
    %p44 = por %p42, %p43
    %p45 = scmp.ne.s32.totalorder %s37, %s40
    %p46 = scmp.eq.s32.totalorder %s13, 0
    %p47 = por %p45, %p46
    %p48 = scmp.ne.s32.totalorder %s37, %s40
    %p49 = scmp.eq.s32.totalorder %s18, 1
    %p50 = por %p48, %p49
    %p51 = scmp.ne.s32.totalorder %s40, %s41
    %p52 = scmp.eq.s32.totalorder %s18, 0
    %p53 = por %p51, %p52
    %p54 = scmp.ne.s32.totalorder %s40, %s41
    %p55 = scmp.eq.s32.totalorder %s19, 1
    %p56 = por %p54, %p55
    %p58 = scmp.ne.s32.totalorder %s41, %s57
    %p59 = scmp.eq.s32.totalorder %s19, 0
    %p60 = por %p58, %p59
    %s61 = ssub.s32 %s20, %s32
    %p62 = scmp.eq.s32.totalorder %s61, 0
    %s64 = sadd.s32 %s63, 1
    %s65 = scalar_select %p62, %s63, %s64
    %p68 = pneg %p62
    %p69 = scmp.eq.s32.totalorder %s13, 1
    %p70 = por %p68, %p69
    %p71 = scmp.ne.s32.totalorder %s63, %s66
    %p72 = scmp.eq.s32.totalorder %s13, 0
    %p73 = por %p71, %p72
    %p74 = scmp.ne.s32.totalorder %s63, %s66
    %p75 = scmp.eq.s32.totalorder %s18, 1
    %p76 = por %p74, %p75
    %p77 = scmp.ne.s32.totalorder %s66, %s67
    %p78 = scmp.eq.s32.totalorder %s18, 0
    %p79 = por %p77, %p78
    %p80 = scmp.ne.s32.totalorder %s66, %s67
    %p81 = scmp.eq.s32.totalorder %s19, 1
    %p82 = por %p80, %p81
    %p84 = scmp.ne.s32.totalorder %s67, %s83
    %p85 = scmp.eq.s32.totalorder %s19, 0
    %p86 = por %p84, %p85
    %s87 = ssub.s32 %s21, %s28
    %p88 = scmp.eq.s32.totalorder %s87, 0
    %s90 = sadd.s32 %s89, 1
    %s91 = scalar_select %p88, %s89, %s90
    %p94 = pneg %p88
    %p95 = scmp.eq.s32.totalorder %s13, 1
    %p96 = por %p94, %p95
    %p97 = scmp.ne.s32.totalorder %s89, %s92
    %p98 = scmp.eq.s32.totalorder %s13, 0
    %p99 = por %p97, %p98
    %p100 = scmp.ne.s32.totalorder %s89, %s92
    %p101 = scmp.eq.s32.totalorder %s18, 1
    %p102 = por %p100, %p101
    %p103 = scmp.ne.s32.totalorder %s92, %s93
    %p104 = scmp.eq.s32.totalorder %s18, 0
    %p105 = por %p103, %p104
    %p106 = scmp.ne.s32.totalorder %s92, %s93
    %p107 = scmp.eq.s32.totalorder %s19, 1
    %p108 = por %p106, %p107
    %p110 = scmp.ne.s32.totalorder %s93, %s109
    %p111 = scmp.eq.s32.totalorder %s19, 0
    %p112 = por %p110, %p111
    %s113 = ssub.s32 %s21, %s28
    %p114 = scmp.eq.s32.totalorder %s113, 0
    %s116 = sadd.s32 %s115, 1
    %s117 = scalar_select %p114, %s115, %s116
    %p120 = pneg %p114
    %p121 = scmp.eq.s32.totalorder %s13, 1
    %p122 = por %p120, %p121
    %p123 = scmp.ne.s32.totalorder %s115, %s118
    %p124 = scmp.eq.s32.totalorder %s13, 0
    %p125 = por %p123, %p124
    %p126 = scmp.ne.s32.totalorder %s115, %s118
    %p127 = scmp.eq.s32.totalorder %s18, 1
    %p128 = por %p126, %p127
    %p129 = scmp.ne.s32.totalorder %s118, %s119
    %p130 = scmp.eq.s32.totalorder %s18, 0
    %p131 = por %p129, %p130
    %p132 = scmp.ne.s32.totalorder %s118, %s119
    %p133 = scmp.eq.s32.totalorder %s19, 1
    %p134 = por %p132, %p133
    %p136 = scmp.ne.s32.totalorder %s119, %s135
    %p137 = scmp.eq.s32.totalorder %s19, 0
    %p138 = por %p136, %p137
    %s140 = sadd.s32 %s139, 1
    %p143 = scmp.eq.s32.totalorder %s13, 1
    %p144 = scmp.ne.s32.totalorder %s139, %s141
    %p145 = scmp.eq.s32.totalorder %s13, 0
    %p146 = por %p144, %p145
    %p147 = scmp.ne.s32.totalorder %s139, %s141
    %p148 = scmp.eq.s32.totalorder %s18, 1
    %p149 = por %p147, %p148
    %p150 = scmp.ne.s32.totalorder %s141, %s142
    %p151 = scmp.eq.s32.totalorder %s18, 0
    %p152 = por %p150, %p151
    %p153 = scmp.ne.s32.totalorder %s141, %s142
    %p154 = scmp.eq.s32.totalorder %s19, 1
    %p155 = por %p153, %p154
    %p157 = scmp.ne.s32.totalorder %s142, %s156
    %p158 = scmp.eq.s32.totalorder %s19, 0
    %p159 = por %p157, %p158
    %s161 = sadd.s32 %s160, 1
    %p164 = scmp.eq.s32.totalorder %s13, 1
    %p165 = scmp.ne.s32.totalorder %s160, %s162
    %p166 = scmp.eq.s32.totalorder %s13, 0
    %p167 = por %p165, %p166
    %p168 = scmp.ne.s32.totalorder %s160, %s162
    %p169 = scmp.eq.s32.totalorder %s18, 1
    %p170 = por %p168, %p169
    %p171 = scmp.ne.s32.totalorder %s162, %s163
    %p172 = scmp.eq.s32.totalorder %s18, 0
    %p173 = por %p171, %p172
    %p174 = scmp.ne.s32.totalorder %s162, %s163
    %p175 = scmp.eq.s32.totalorder %s19, 1
    %p176 = por %p174, %p175
    %p178 = scmp.ne.s32.totalorder %s163, %s177
    %p179 = scmp.eq.s32.totalorder %s19, 0
    %p180 = por %p178, %p179
    %s181 = ssub.s32 %s20, %s32
    %p182 = scmp.eq.s32.totalorder %s181, 0
    %s184 = sadd.s32 %s183, 1
    %s185 = scalar_select %p182, %s183, %s184
    %p188 = pneg %p182
    %p189 = scmp.eq.s32.totalorder %s13, 1
    %p190 = por %p188, %p189
    %p191 = scmp.ne.s32.totalorder %s183, %s186
    %p192 = scmp.eq.s32.totalorder %s13, 0
    %p193 = por %p191, %p192
    %p194 = scmp.ne.s32.totalorder %s183, %s186
    %p195 = scmp.eq.s32.totalorder %s18, 1
    %p196 = por %p194, %p195
    %p197 = scmp.ne.s32.totalorder %s186, %s187
    %p198 = scmp.eq.s32.totalorder %s18, 0
    %p199 = por %p197, %p198
    %p200 = scmp.ne.s32.totalorder %s186, %s187
    %p201 = scmp.eq.s32.totalorder %s19, 1
    %p202 = por %p200, %p201
    %p204 = scmp.ne.s32.totalorder %s187, %s203
    %p205 = scmp.eq.s32.totalorder %s19, 0
    %p206 = por %p204, %p205
    %s207 = ssub.s32 %s20, %s32
    %p208 = scmp.eq.s32.totalorder %s207, 0
    %s210 = sadd.s32 %s209, 1
    %s211 = scalar_select %p208, %s209, %s210
    %p214 = pneg %p208
    %p215 = scmp.eq.s32.totalorder %s13, 1
    %p216 = por %p214, %p215
    %p217 = scmp.ne.s32.totalorder %s209, %s212
    %p218 = scmp.eq.s32.totalorder %s13, 0
    %p219 = por %p217, %p218
    %p220 = scmp.ne.s32.totalorder %s209, %s212
    %p221 = scmp.eq.s32.totalorder %s18, 1
    %p222 = por %p220, %p221
    %p223 = scmp.ne.s32.totalorder %s212, %s213
    %p224 = scmp.eq.s32.totalorder %s18, 0
    %p225 = por %p223, %p224
    %p226 = scmp.ne.s32.totalorder %s212, %s213
    %p227 = scmp.eq.s32.totalorder %s19, 1
    %p228 = por %p226, %p227
    %p230 = scmp.ne.s32.totalorder %s213, %s229
    %p231 = scmp.eq.s32.totalorder %s19, 0
    %p232 = por %p230, %p231
    %p233 = scmp.le.s32.totalorder 1, %s13
    %p234 = scmp.lt.s32.totalorder %s13, 3
    %p235 = pnand %p233, %p234
    %p236 = pneg %p235
    // Predicated region
    $region9: #{_lambda_.5} parent=5 // pred_check
      _
    $region10: #{_lambda_.5} parent=5 // pred_check_branch
      %238 = sbr.rel (%p235) target = $region12
    $region11: #{_lambda_.5} parent=5 // pred_region
      %s239 = ssub.s32 %s13, 1
      // Predicated region
      $region13: #{_lambda_.5} parent=11 // pred_check
        %p240 = pneg %p105
      $region14: #{_lambda_.5} parent=11 // pred_check_branch
        %242 = sbr.rel (%p240) target = $region16
      $region15: #{_lambda_.5} parent=11 // pred_region
        %s243 = smul.u32 2, %s23
        %p244 = scmp.lt.s32.totalorder %s243, 1
        %s245 = scalar_select %p244, %s243, 1
        %s246 = scalar_lea.vmem %s2, %s245
        %s247 = smul.u32 2, %s23
      $region16: #{_lambda_.5} parent=11 // pred_fallthru
        _
      // Predicated region
      $region17: #{_lambda_.5} parent=11 // pred_check
        %p248 = pneg %p131
      $region18: #{_lambda_.5} parent=11 // pred_check_branch
        %250 = sbr.rel (%p248) target = $region20
      $region19: #{_lambda_.5} parent=11 // pred_region
        %s251 = smul.u32 32, %s23
        %p252 = scmp.lt.s32.totalorder %s251, 31
        %s253 = scalar_select %p252, %s251, 31
        %s254 = smul.addr %s253, 4
        %s255 = scalar_lea.vmem %s3, %s254
        %s256 = smul.u32 32, %s23
      $region20: #{_lambda_.5} parent=11 // pred_fallthru
        _
      // Predicated region
      $region21: #{_lambda_.5} parent=11 // pred_check
        %p257 = pneg %p152
      $region22: #{_lambda_.5} parent=11 // pred_check_branch
        %259 = sbr.rel (%p257) target = $region24
      $region23: #{_lambda_.5} parent=11 // pred_region
        _
      $region24: #{_lambda_.5} parent=11 // pred_fallthru
        _
      // Predicated region
      $region25: #{_lambda_.5} parent=11 // pred_check
        %p260 = pneg %p173
      $region26: #{_lambda_.5} parent=11 // pred_check_branch
        %262 = sbr.rel (%p260) target = $region28
      $region27: #{_lambda_.5} parent=11 // pred_region
        _
      $region28: #{_lambda_.5} parent=11 // pred_fallthru
        _
    $region12: #{_lambda_.5} parent=5 // pred_fallthru
      _
    %p263 = scmp.lt.s32.totalorder %s13, 2
    // Predicated region
    $region29: #{_lambda_.5} parent=5 // pred_check
      %p264 = pneg %p263
    $region30: #{_lambda_.5} parent=5 // pred_check_branch
      %266 = sbr.rel (%p264) target = $region32
    $region31: #{_lambda_.5} parent=5 // pred_region
      // Predicated region
      $region33: #{_lambda_.5} parent=31 // pred_check
        %p267 = pneg %p47
      $region34: #{_lambda_.5} parent=31 // pred_check_branch
        %269 = sbr.rel (%p267) target = $region36
      $region35: #{_lambda_.5} parent=31 // pred_region
        %s270 = smul.u32 16, %s20
        %s271 = smul.u32 2, %s21
        %p272 = scmp.lt.s32.totalorder %s270, 31
        %s273 = scalar_select %p272, %s270, 31
        %p274 = scmp.lt.s32.totalorder %s271, 1
        %s275 = scalar_select %p274, %s271, 1
        %s276 = smul.addr %s273, 2
        %s277 = sadd.s32 %s275, %s276
        %s278 = smul.addr %s277, 4
        %s279 = scalar_lea.vmem %s0, %s278
        %s280 = smul.u32 16, %s20
        %s281 = smul.u32 2, %s21
      $region36: #{_lambda_.5} parent=31 // pred_fallthru
        _
      // Predicated region
      $region37: #{_lambda_.5} parent=31 // pred_check
        %p282 = pneg %p73
      $region38: #{_lambda_.5} parent=31 // pred_check_branch
        %284 = sbr.rel (%p282) target = $region40
      $region39: #{_lambda_.5} parent=31 // pred_region
        %s285 = smul.u32 16, %s20
        %p286 = scmp.lt.s32.totalorder %s285, 31
        %s287 = scalar_select %p286, %s285, 31
        %s288 = smul.addr %s287, 8
        %s289 = scalar_lea.vmem %s1, %s288
        %s290 = smul.u32 16, %s20
      $region40: #{_lambda_.5} parent=31 // pred_fallthru
        _
      // Predicated region
      $region41: #{_lambda_.5} parent=31 // pred_check
        %p291 = pneg %p193
      $region42: #{_lambda_.5} parent=31 // pred_check_branch
        %293 = sbr.rel (%p291) target = $region44
      $region43: #{_lambda_.5} parent=31 // pred_region
        %s294 = smul.u32 16, %s20
        %p295 = scmp.lt.s32.totalorder %s294, 31
        %s296 = scalar_select %p295, %s294, 31
        %s297 = smul.addr %s296, 8
        %s298 = scalar_lea.vmem %s6, %s297
        %s299 = smul.u32 16, %s20
      $region44: #{_lambda_.5} parent=31 // pred_fallthru
        _
    $region32: #{_lambda_.5} parent=5 // pred_fallthru
      _
    %p300 = scmp.le.s32.totalorder 1, %s13
    %p301 = scmp.lt.s32.totalorder %s13, 3
    %p302 = pnand %p300, %p301
    %p303 = pneg %p302
    // Predicated region
    $region45: #{_lambda_.5} parent=5 // pred_check
      _
    $region46: #{_lambda_.5} parent=5 // pred_check_branch
      %305 = sbr.rel (%p302) target = $region48
    $region47: #{_lambda_.5} parent=5 // pred_region
      %s306 = ssub.s32 %s13, 1
      %s307 = smul.u32 16, %s22
      %s308 = smul.u32 2, %s23
      %p309 = scmp.lt.s32.totalorder %s307, 31
      %s310 = scalar_select %p309, %s307, 31
      %p311 = scmp.lt.s32.totalorder %s308, 1
      %s312 = scalar_select %p311, %s308, 1
      %s313 = smul.addr %s310, 2
      %s314 = sadd.s32 %s312, %s313
      %s315 = smul.addr %s314, 4
      %s316 = scalar_lea.vmem %s0, %s315
      %p317 = pneg %p53
      %p318 = pneg %p50
      %s319 = smul.u32 16, %s22
      %p320 = scmp.lt.s32.totalorder %s319, 31
      %s321 = scalar_select %p320, %s319, 31
      %s322 = smul.addr %s321, 8
      %s323 = scalar_lea.vmem %s1, %s322
      %p324 = pneg %p79
      %p325 = pneg %p76
      %s326 = smul.u32 2, %s23
      %p327 = scmp.lt.s32.totalorder %s326, 1
      %s328 = scalar_select %p327, %s326, 1
      %s329 = scalar_lea.vmem %s2, %s328
      %p330 = pneg %p105
      %p331 = pneg %p102
      %s332 = smul.u32 32, %s23
      %p333 = scmp.lt.s32.totalorder %s332, 31
      %s334 = scalar_select %p333, %s332, 31
      %s335 = smul.addr %s334, 4
      %s336 = scalar_lea.vmem %s3, %s335
      %p337 = pneg %p131
      %p338 = pneg %p128
      %p339 = pneg %p152
      %p340 = pneg %p149
      %p341 = pneg %p173
      %p342 = pneg %p170
      %s343 = smul.u32 16, %s22
      %p344 = scmp.lt.s32.totalorder %s343, 31
      %s345 = scalar_select %p344, %s343, 31
      %s346 = smul.addr %s345, 8
      %s347 = scalar_lea.vmem %s6, %s346
      %p348 = pneg %p199
      %p349 = pneg %p196
      %p350 = pneg %p225
      %p351 = pneg %p222
      %s352 = smul.u32 16, %s22
      %p353 = scmp.lt.s32.totalorder %s352, 31
      %s354 = scalar_select %p353, %s352, 31
      %s355 = smul.addr %s354, 4
      %s356 = scalar_lea.vmem %s7, %s355
      %s357 = smul.u32 16, %s22
      %s358 = smul.u32 2, %s23
      %p359 = scmp.lt.s32.totalorder %s357, 31
      %s360 = scalar_select %p359, %s357, 31
      %p361 = scmp.lt.s32.totalorder %s358, 1
      %s362 = scalar_select %p361, %s358, 1
      %s363 = smul.addr %s360, 2
      %s364 = sadd.s32 %s362, %s363
      %s365 = smul.addr %s364, 4
      %s366 = scalar_lea.vmem %s0, %s365
      %s367 = smul.u32 16, %s22
      %s368 = smul.u32 2, %s23
      %s369 = smul.u32 16, %s22
      %p370 = scmp.lt.s32.totalorder %s369, 31
      %s371 = scalar_select %p370, %s369, 31
      %s372 = smul.addr %s371, 8
      %s373 = scalar_lea.vmem %s1, %s372
      %s374 = smul.u32 16, %s22
      %s375 = smul.u32 2, %s23
      %p376 = scmp.lt.s32.totalorder %s375, 1
      %s377 = scalar_select %p376, %s375, 1
      %s378 = scalar_lea.vmem %s2, %s377
      %s379 = smul.u32 2, %s23
      %s380 = smul.u32 32, %s23
      %p381 = scmp.lt.s32.totalorder %s380, 31
      %s382 = scalar_select %p381, %s380, 31
      %s383 = smul.addr %s382, 4
      %s384 = scalar_lea.vmem %s3, %s383
      %s385 = smul.u32 32, %s23
      %s386 = smul.u32 16, %s22
      %p387 = scmp.lt.s32.totalorder %s386, 31
      %s388 = scalar_select %p387, %s386, 31
      %s389 = smul.addr %s388, 8
      %s390 = scalar_lea.vmem %s6, %s389
      %s391 = smul.u32 16, %s22
      %s392 = smul.u32 16, %s22
      %p393 = scmp.lt.s32.totalorder %s392, 31
      %s394 = scalar_select %p393, %s392, 31
      %s395 = smul.addr %s394, 4
      %s396 = scalar_lea.vmem %s7, %s395
      %s397 = smul.u32 16, %s22
      %p399 = scmp.eq.s32.totalorder %s22, 0
      // Predicated region
      $region49: #{_lambda_.5} parent=47 // pred_check
        %p400 = pneg %p399
      $region50: #{_lambda_.5} parent=47 // pred_check_branch
        %402 = sbr.rel (%p400) target = $region52
      $region51: #{_lambda_.5} parent=47 // pred_region
        %v403 = vld [vmem:[%s384] sm:$0xf]
        %v404 = vld [vmem:[%s384 + $0x4] sm:$0xf]
        %v405 = vld [vmem:[%s384 + $0x8] sm:$0xf]
        %v406 = vld [vmem:[%s384 + $0xc] sm:$0xf]
        %v407 = vld [vmem:[%s384 + $0x10] sm:$0xf]
        %v408 = vld [vmem:[%s384 + $0x14] sm:$0xf]
        %v409 = vld [vmem:[%s384 + $0x18] sm:$0xf]
        %v410 = vld [vmem:[%s384 + $0x1c] sm:$0xf]
        %v411 = vld [vmem:[%s384 + $0x20] sm:$0xf]
        %v412 = vld [vmem:[%s384 + $0x24] sm:$0xf]
        %v413 = vld [vmem:[%s384 + $0x28] sm:$0xf]
        %v414 = vld [vmem:[%s384 + $0x2c] sm:$0xf]
        %v415 = vld [vmem:[%s384 + $0x30] sm:$0xf]
        %v416 = vld [vmem:[%s384 + $0x34] sm:$0xf]
        %v417 = vld [vmem:[%s384 + $0x38] sm:$0xf]
        %v418 = vld [vmem:[%s384 + $0x3c] sm:$0xf]
        %v419 = vld [vmem:[%s384 + $0x40] sm:$0xf]
        %v420 = vld [vmem:[%s384 + $0x44] sm:$0xf]
        %v421 = vld [vmem:[%s384 + $0x48] sm:$0xf]
        %v422 = vld [vmem:[%s384 + $0x4c] sm:$0xf]
        %v423 = vld [vmem:[%s384 + $0x50] sm:$0xf]
        %v424 = vld [vmem:[%s384 + $0x54] sm:$0xf]
        %v425 = vld [vmem:[%s384 + $0x58] sm:$0xf]
        %v426 = vld [vmem:[%s384 + $0x5c] sm:$0xf]
        %v427 = vld [vmem:[%s384 + $0x60] sm:$0xf]
        %v428 = vld [vmem:[%s384 + $0x64] sm:$0xf]
        %v429 = vld [vmem:[%s384 + $0x68] sm:$0xf]
        %v430 = vld [vmem:[%s384 + $0x6c] sm:$0xf]
        %v431 = vld [vmem:[%s384 + $0x70] sm:$0xf]
        %v432 = vld [vmem:[%s384 + $0x74] sm:$0xf]
        %v433 = vld [vmem:[%s384 + $0x78] sm:$0xf]
        %v434 = vld [vmem:[%s384 + $0x7c] sm:$0xf]
        %v435 = vld [vmem:[%s4] sm:$0xf]
        %v436 = vld [vmem:[%s4 + $0x4] sm:$0xf]
        %v437 = vld [vmem:[%s4 + $0x8] sm:$0xf]
        %v438 = vld [vmem:[%s4 + $0xc] sm:$0xf]
        %v439 = vld [vmem:[%s4 + $0x10] sm:$0xf]
        %v440 = vld [vmem:[%s4 + $0x14] sm:$0xf]
        %v441 = vld [vmem:[%s4 + $0x18] sm:$0xf]
        %v442 = vld [vmem:[%s4 + $0x1c] sm:$0xf]
        %v443 = vld [vmem:[%s4 + $0x20] sm:$0xf]
        %v444 = vld [vmem:[%s4 + $0x24] sm:$0xf]
        %v445 = vld [vmem:[%s4 + $0x28] sm:$0xf]
        %v446 = vld [vmem:[%s4 + $0x2c] sm:$0xf]
        %v447 = vld [vmem:[%s4 + $0x30] sm:$0xf]
        %v448 = vld [vmem:[%s4 + $0x34] sm:$0xf]
        %v449 = vld [vmem:[%s4 + $0x38] sm:$0xf]
        %v450 = vld [vmem:[%s4 + $0x3c] sm:$0xf]
        %v483 = vunpack.c.l.b16 %v403
        %v484 = vunpack.c.l.b16 %v404
        %v485 = vunpack.c.l.b16 %v405
        %v486 = vunpack.c.l.b16 %v406
        %v487 = vunpack.c.l.b16 %v407
        %v488 = vunpack.c.l.b16 %v408
        %v489 = vunpack.c.l.b16 %v409
        %v490 = vunpack.c.l.b16 %v410
        %v491 = vunpack.c.l.b16 %v411
        %v492 = vunpack.c.l.b16 %v412
        %v493 = vunpack.c.l.b16 %v413
        %v494 = vunpack.c.l.b16 %v414
        %v495 = vunpack.c.l.b16 %v415
        %v496 = vunpack.c.l.b16 %v416
        %v497 = vunpack.c.l.b16 %v417
        %v498 = vunpack.c.l.b16 %v418
        %v499 = vunpack.c.l.b16 %v419
        %v500 = vunpack.c.l.b16 %v420
        %v501 = vunpack.c.l.b16 %v421
        %v502 = vunpack.c.l.b16 %v422
        %v503 = vunpack.c.l.b16 %v423
        %v504 = vunpack.c.l.b16 %v424
        %v505 = vunpack.c.l.b16 %v425
        %v506 = vunpack.c.l.b16 %v426
        %v507 = vunpack.c.l.b16 %v427
        %v508 = vunpack.c.l.b16 %v428
        %v509 = vunpack.c.l.b16 %v429
        %v510 = vunpack.c.l.b16 %v430
        %v511 = vunpack.c.l.b16 %v431
        %v512 = vunpack.c.l.b16 %v432
        %v513 = vunpack.c.l.b16 %v433
        %v514 = vunpack.c.l.b16 %v434
        %v515 = vpack.c.b16 %v484, %v483
        %v516 = vpack.c.b16 %v486, %v485
        %v517 = vpack.c.b16 %v488, %v487
        %v518 = vpack.c.b16 %v490, %v489
        %v519 = vpack.c.b16 %v492, %v491
        %v520 = vpack.c.b16 %v494, %v493
        %v521 = vpack.c.b16 %v496, %v495
        %v522 = vpack.c.b16 %v498, %v497
        %v523 = vpack.c.b16 %v500, %v499
        %v524 = vpack.c.b16 %v502, %v501
        %v525 = vpack.c.b16 %v504, %v503
        %v526 = vpack.c.b16 %v506, %v505
        %v527 = vpack.c.b16 %v508, %v507
        %v528 = vpack.c.b16 %v510, %v509
        %v529 = vpack.c.b16 %v512, %v511
        %v530 = vpack.c.b16 %v514, %v513
        %v563 = vunpack.c.l.b16 %v435
        %v564 = vunpack.c.l.b16 %v436
        %v565 = vunpack.c.l.b16 %v437
        %v566 = vunpack.c.l.b16 %v438
        %v567 = vunpack.c.l.b16 %v439
        %v568 = vunpack.c.l.b16 %v440
        %v569 = vunpack.c.l.b16 %v441
        %v570 = vunpack.c.l.b16 %v442
        %v571 = vunpack.c.l.b16 %v443
        %v572 = vunpack.c.l.b16 %v444
        %v573 = vunpack.c.l.b16 %v445
        %v574 = vunpack.c.l.b16 %v446
        %v575 = vunpack.c.l.b16 %v447
        %v576 = vunpack.c.l.b16 %v448
        %v577 = vunpack.c.l.b16 %v449
        %v578 = vunpack.c.l.b16 %v450
        %v579 = vpack.c.b16 %v564, %v563
        %v580 = vpack.c.b16 %v566, %v565
        %v581 = vpack.c.b16 %v568, %v567
        %v582 = vpack.c.b16 %v570, %v569
        %v583 = vpack.c.b16 %v572, %v571
        %v584 = vpack.c.b16 %v574, %v573
        %v585 = vpack.c.b16 %v576, %v575
        %v586 = vpack.c.b16 %v578, %v577
        %595 = vmatprep.subr.bf16.mxu0 0
        %596 = vmatpush1.bf16.msra.mxu0 %v586
        %597 = vmatprep.subr.bf16.mxu0 0
        %598 = vmatpush1.bf16.msra.mxu0 %v585
        %599 = vmatprep.subr.bf16.mxu0 0
        %600 = vmatpush1.bf16.msra.mxu0 %v584
        %601 = vmatprep.subr.bf16.mxu0 0
        %602 = vmatpush1.bf16.msra.mxu0 %v583
        %603 = vmatprep.subr.bf16.mxu0 0
        %604 = vmatpush1.bf16.msra.mxu0 %v582
        %605 = vmatprep.subr.bf16.mxu0 0
        %606 = vmatpush1.bf16.msra.mxu0 %v581
        %607 = vmatprep.subr.bf16.mxu0 0
        %608 = vmatpush1.bf16.msra.mxu0 %v580
        %609 = vmatprep.subr.bf16.mxu0 0
        %610 = vmatpush1.bf16.msra.mxu0 %v579
        %611 = vmatprep.subr.bf16.mxu0 0
        %612 = vmatpush2.bf16.msra.mxu0 0
        %613 = vmatprep.subr.bf16.mxu0 0
        %614 = vmatpush2.bf16.msra.mxu0 0
        %615 = vmatprep.subr.bf16.mxu0 0
        %616 = vmatpush2.bf16.msra.mxu0 0
        %617 = vmatprep.subr.bf16.mxu0 0
        %618 = vmatpush2.bf16.msra.mxu0 0
        %619 = vmatprep.subr.bf16.mxu0 0
        %620 = vmatpush2.bf16.msra.mxu0 0
        %621 = vmatprep.subr.bf16.mxu0 0
        %622 = vmatpush2.bf16.msra.mxu0 0
        %623 = vmatprep.subr.bf16.mxu0 0
        %624 = vmatpush2.bf16.msra.mxu0 0
        %625 = vmatprep.subr.bf16.mxu0 0
        %626 = vmatpush2.bf16.msra.mxu0 0
        %627 = vmatprep.mubr.bf16.mxu0 0
        %628 = vmatmul.mubr.bf16.gmra.mxu0 %v515
        %v629 = vpop.f32.mrf.mxu0
        %v630 = vadd.f32 0.0, %v629
        %v631 = vpop.f32.mrf.mxu0
        %v632 = vpop.f32.mrf.mxu0
        %v633 = vadd.f32 0.0, %v632
        %v634 = vpop.f32.mrf.mxu0
        %635 = vmatprep.mubr.bf16.mxu0 0
        %636 = vmatmul.mubr.bf16.gmra.mxu0 %v516
        %v637 = vpop.f32.mrf.mxu0
        %v638 = vadd.f32 0.0, %v637
        %v639 = vpop.f32.mrf.mxu0
        %v640 = vpop.f32.mrf.mxu0
        %v641 = vadd.f32 0.0, %v640
        %v642 = vpop.f32.mrf.mxu0
        %643 = vmatprep.mubr.bf16.mxu0 0
        %644 = vmatmul.mubr.bf16.gmra.mxu0 %v517
        %v645 = vpop.f32.mrf.mxu0
        %v646 = vadd.f32 0.0, %v645
        %v647 = vpop.f32.mrf.mxu0
        %v648 = vpop.f32.mrf.mxu0
        %v649 = vadd.f32 0.0, %v648
        %v650 = vpop.f32.mrf.mxu0
        %651 = vmatprep.mubr.bf16.mxu0 0
        %652 = vmatmul.mubr.bf16.gmra.mxu0 %v518
        %v653 = vpop.f32.mrf.mxu0
        %v654 = vadd.f32 0.0, %v653
        %v655 = vpop.f32.mrf.mxu0
        %v656 = vpop.f32.mrf.mxu0
        %v657 = vadd.f32 0.0, %v656
        %v658 = vpop.f32.mrf.mxu0
        %659 = vmatprep.mubr.bf16.mxu0 0
        %660 = vmatmul.mubr.bf16.gmra.mxu0 %v519
        %v661 = vpop.f32.mrf.mxu0
        %v662 = vadd.f32 0.0, %v661
        %v663 = vpop.f32.mrf.mxu0
        %v664 = vpop.f32.mrf.mxu0
        %v665 = vadd.f32 0.0, %v664
        %v666 = vpop.f32.mrf.mxu0
        %667 = vmatprep.mubr.bf16.mxu0 0
        %668 = vmatmul.mubr.bf16.gmra.mxu0 %v520
        %v669 = vpop.f32.mrf.mxu0
        %v670 = vadd.f32 0.0, %v669
        %v671 = vpop.f32.mrf.mxu0
        %v672 = vpop.f32.mrf.mxu0
        %v673 = vadd.f32 0.0, %v672
        %v674 = vpop.f32.mrf.mxu0
        %675 = vmatprep.mubr.bf16.mxu0 0
        %676 = vmatmul.mubr.bf16.gmra.mxu0 %v521
        %v677 = vpop.f32.mrf.mxu0
        %v678 = vadd.f32 0.0, %v677
        %v679 = vpop.f32.mrf.mxu0
        %v680 = vpop.f32.mrf.mxu0
        %v681 = vadd.f32 0.0, %v680
        %v682 = vpop.f32.mrf.mxu0
        %683 = vmatprep.mubr.bf16.mxu0 0
        %684 = vmatmul.mubr.bf16.gmra.mxu0 %v522
        %v685 = vpop.f32.mrf.mxu0
        %v686 = vadd.f32 0.0, %v685
        %v687 = vpop.f32.mrf.mxu0
        %v688 = vpop.f32.mrf.mxu0
        %v689 = vadd.f32 0.0, %v688
        %v690 = vpop.f32.mrf.mxu0
        %691 = vmatprep.mubr.bf16.mxu0 0
        %692 = vmatmul.mubr.bf16.gmra.mxu0 %v523
        %v693 = vpop.f32.mrf.mxu0
        %v694 = vadd.f32 0.0, %v693
        %v695 = vpop.f32.mrf.mxu0
        %v696 = vpop.f32.mrf.mxu0
        %v697 = vadd.f32 0.0, %v696
        %v698 = vpop.f32.mrf.mxu0
        %699 = vmatprep.mubr.bf16.mxu0 0
        %700 = vmatmul.mubr.bf16.gmra.mxu0 %v524
        %v701 = vpop.f32.mrf.mxu0
        %v702 = vadd.f32 0.0, %v701
        %v703 = vpop.f32.mrf.mxu0
        %v704 = vpop.f32.mrf.mxu0
        %v705 = vadd.f32 0.0, %v704
        %v706 = vpop.f32.mrf.mxu0
        %707 = vmatprep.mubr.bf16.mxu0 0
        %708 = vmatmul.mubr.bf16.gmra.mxu0 %v525
        %v709 = vpop.f32.mrf.mxu0
        %v710 = vadd.f32 0.0, %v709
        %v711 = vpop.f32.mrf.mxu0
        %v712 = vpop.f32.mrf.mxu0
        %v713 = vadd.f32 0.0, %v712
        %v714 = vpop.f32.mrf.mxu0
        %715 = vmatprep.mubr.bf16.mxu0 0
        %716 = vmatmul.mubr.bf16.gmra.mxu0 %v526
        %v717 = vpop.f32.mrf.mxu0
        %v718 = vadd.f32 0.0, %v717
        %v719 = vpop.f32.mrf.mxu0
        %v720 = vpop.f32.mrf.mxu0
        %v721 = vadd.f32 0.0, %v720
        %v722 = vpop.f32.mrf.mxu0
        %723 = vmatprep.mubr.bf16.mxu0 0
        %724 = vmatmul.mubr.bf16.gmra.mxu0 %v527
        %v725 = vpop.f32.mrf.mxu0
        %v726 = vadd.f32 0.0, %v725
        %v727 = vpop.f32.mrf.mxu0
        %v728 = vpop.f32.mrf.mxu0
        %v729 = vadd.f32 0.0, %v728
        %v730 = vpop.f32.mrf.mxu0
        %731 = vmatprep.mubr.bf16.mxu0 0
        %732 = vmatmul.mubr.bf16.gmra.mxu0 %v528
        %v733 = vpop.f32.mrf.mxu0
        %v734 = vadd.f32 0.0, %v733
        %v735 = vpop.f32.mrf.mxu0
        %v736 = vpop.f32.mrf.mxu0
        %v737 = vadd.f32 0.0, %v736
        %v738 = vpop.f32.mrf.mxu0
        %739 = vmatprep.mubr.bf16.mxu0 0
        %740 = vmatmul.mubr.bf16.gmra.mxu0 %v529
        %v741 = vpop.f32.mrf.mxu0
        %v742 = vadd.f32 0.0, %v741
        %v743 = vpop.f32.mrf.mxu0
        %v744 = vpop.f32.mrf.mxu0
        %v745 = vadd.f32 0.0, %v744
        %v746 = vpop.f32.mrf.mxu0
        %747 = vmatprep.mubr.bf16.mxu0 0
        %748 = vmatmul.mubr.bf16.gmra.mxu0 %v530
        %v749 = vpop.f32.mrf.mxu0
        %v750 = vadd.f32 0.0, %v749
        %v751 = vpop.f32.mrf.mxu0
        %v752 = vpop.f32.mrf.mxu0
        %v753 = vadd.f32 0.0, %v752
        %v754 = vpop.f32.mrf.mxu0
        %755 = vdwg.mxu0
        %v756 = vpack.c.bf16 %v633, %v630
        %v757 = vpack.c.bf16 %v641, %v638
        %v758 = vpack.c.bf16 %v649, %v646
        %v759 = vpack.c.bf16 %v657, %v654
        %v760 = vpack.c.bf16 %v665, %v662
        %v761 = vpack.c.bf16 %v673, %v670
        %v762 = vpack.c.bf16 %v681, %v678
        %v763 = vpack.c.bf16 %v689, %v686
        %v764 = vpack.c.bf16 %v697, %v694
        %v765 = vpack.c.bf16 %v705, %v702
        %v766 = vpack.c.bf16 %v713, %v710
        %v767 = vpack.c.bf16 %v721, %v718
        %v768 = vpack.c.bf16 %v729, %v726
        %v769 = vpack.c.bf16 %v737, %v734
        %v770 = vpack.c.bf16 %v745, %v742
        %v771 = vpack.c.bf16 %v753, %v750
        %s772 = smul.u32 %s23, 256
        %v789 = vunpack.c.l.b16 %v756
        %v790 = vunpack.c.h.b16 %v756
        %v791 = vunpack.c.l.b16 %v757
        %v792 = vunpack.c.h.b16 %v757
        %v793 = vunpack.c.l.b16 %v758
        %v794 = vunpack.c.h.b16 %v758
        %v795 = vunpack.c.l.b16 %v759
        %v796 = vunpack.c.h.b16 %v759
        %v797 = vunpack.c.l.b16 %v760
        %v798 = vunpack.c.h.b16 %v760
        %v799 = vunpack.c.l.b16 %v761
        %v800 = vunpack.c.h.b16 %v761
        %v801 = vunpack.c.l.b16 %v762
        %v802 = vunpack.c.h.b16 %v762
        %v803 = vunpack.c.l.b16 %v763
        %v804 = vunpack.c.h.b16 %v763
        %v805 = vunpack.c.l.b16 %v764
        %v806 = vunpack.c.h.b16 %v764
        %v807 = vunpack.c.l.b16 %v765
        %v808 = vunpack.c.h.b16 %v765
        %v809 = vunpack.c.l.b16 %v766
        %v810 = vunpack.c.h.b16 %v766
        %v811 = vunpack.c.l.b16 %v767
        %v812 = vunpack.c.h.b16 %v767
        %v813 = vunpack.c.l.b16 %v768
        %v814 = vunpack.c.h.b16 %v768
        %v815 = vunpack.c.l.b16 %v769
        %v816 = vunpack.c.h.b16 %v769
        %v817 = vunpack.c.l.b16 %v770
        %v818 = vunpack.c.h.b16 %v770
        %v819 = vunpack.c.l.b16 %v771
        %v820 = vunpack.c.h.b16 %v771
        %v821 = vpack.c.b16 %v789, %v789
        %v822 = vpack.c.b16 %v790, %v790
        %v823 = vpack.c.b16 %v791, %v791
        %v824 = vpack.c.b16 %v792, %v792
        %v825 = vpack.c.b16 %v793, %v793
        %v826 = vpack.c.b16 %v794, %v794
        %v827 = vpack.c.b16 %v795, %v795
        %v828 = vpack.c.b16 %v796, %v796
        %v829 = vpack.c.b16 %v797, %v797
        %v830 = vpack.c.b16 %v798, %v798
        %v831 = vpack.c.b16 %v799, %v799
        %v832 = vpack.c.b16 %v800, %v800
        %v833 = vpack.c.b16 %v801, %v801
        %v834 = vpack.c.b16 %v802, %v802
        %v835 = vpack.c.b16 %v803, %v803
        %v836 = vpack.c.b16 %v804, %v804
        %v837 = vpack.c.b16 %v805, %v805
        %v838 = vpack.c.b16 %v806, %v806
        %v839 = vpack.c.b16 %v807, %v807
        %v840 = vpack.c.b16 %v808, %v808
        %v841 = vpack.c.b16 %v809, %v809
        %v842 = vpack.c.b16 %v810, %v810
        %v843 = vpack.c.b16 %v811, %v811
        %v844 = vpack.c.b16 %v812, %v812
        %v845 = vpack.c.b16 %v813, %v813
        %v846 = vpack.c.b16 %v814, %v814
        %v847 = vpack.c.b16 %v815, %v815
        %v848 = vpack.c.b16 %v816, %v816
        %v849 = vpack.c.b16 %v817, %v817
        %v850 = vpack.c.b16 %v818, %v818
        %v851 = vpack.c.b16 %v819, %v819
        %v852 = vpack.c.b16 %v820, %v820
        %s885 = sshra.s32 %s772, 3
        %s886 = sand.u32 %s772, 7
        %s887 = smul.addr %s885, 4
        %s888 = scalar_lea.vmem [#allocation2], %s887
        %889 = vst [vmem:[%s888] sm:$0xf] %v821
        %890 = vst [vmem:[%s888 + $0x4] sm:$0xf] %v822
        %891 = vst [vmem:[%s888 + $0x8] sm:$0xf] %v823
        %892 = vst [vmem:[%s888 + $0xc] sm:$0xf] %v824
        %893 = vst [vmem:[%s888 + $0x10] sm:$0xf] %v825
        %894 = vst [vmem:[%s888 + $0x14] sm:$0xf] %v826
        %895 = vst [vmem:[%s888 + $0x18] sm:$0xf] %v827
        %896 = vst [vmem:[%s888 + $0x1c] sm:$0xf] %v828
        %897 = vst [vmem:[%s888 + $0x20] sm:$0xf] %v829
        %898 = vst [vmem:[%s888 + $0x24] sm:$0xf] %v830
        %899 = vst [vmem:[%s888 + $0x28] sm:$0xf] %v831
        %900 = vst [vmem:[%s888 + $0x2c] sm:$0xf] %v832
        %901 = vst [vmem:[%s888 + $0x30] sm:$0xf] %v833
        %902 = vst [vmem:[%s888 + $0x34] sm:$0xf] %v834
        %903 = vst [vmem:[%s888 + $0x38] sm:$0xf] %v835
        %904 = vst [vmem:[%s888 + $0x3c] sm:$0xf] %v836
        %905 = vst [vmem:[%s888 + $0x40] sm:$0xf] %v837
        %906 = vst [vmem:[%s888 + $0x44] sm:$0xf] %v838
        %907 = vst [vmem:[%s888 + $0x48] sm:$0xf] %v839
        %908 = vst [vmem:[%s888 + $0x4c] sm:$0xf] %v840
        %909 = vst [vmem:[%s888 + $0x50] sm:$0xf] %v841
        %910 = vst [vmem:[%s888 + $0x54] sm:$0xf] %v842
        %911 = vst [vmem:[%s888 + $0x58] sm:$0xf] %v843
        %912 = vst [vmem:[%s888 + $0x5c] sm:$0xf] %v844
        %913 = vst [vmem:[%s888 + $0x60] sm:$0xf] %v845
        %914 = vst [vmem:[%s888 + $0x64] sm:$0xf] %v846
        %915 = vst [vmem:[%s888 + $0x68] sm:$0xf] %v847
        %916 = vst [vmem:[%s888 + $0x6c] sm:$0xf] %v848
        %917 = vst [vmem:[%s888 + $0x70] sm:$0xf] %v849
        %918 = vst [vmem:[%s888 + $0x74] sm:$0xf] %v850
        %919 = vst [vmem:[%s888 + $0x78] sm:$0xf] %v851
        %920 = vst [vmem:[%s888 + $0x7c] sm:$0xf] %v852
      $region52: #{_lambda_.5} parent=47 // pred_fallthru
        _
      %p921 = scmp.eq.s32.totalorder %s23, 0
      // Predicated region
      $region53: #{_lambda_.5} parent=47 // pred_check
        %p922 = pneg %p921
      $region54: #{_lambda_.5} parent=47 // pred_check_branch
        %924 = sbr.rel (%p922) target = $region56
      $region55: #{_lambda_.5} parent=47 // pred_region
        %925 = vst [vmem:[#allocation3] sm:$0xff] 0.0
        %926 = vst [vmem:[#allocation3 + $0x8] sm:$0xff] 0.0
        %927 = vst [vmem:[#allocation3 + $0x10] sm:$0xff] 0.0
        %928 = vst [vmem:[#allocation3 + $0x18] sm:$0xff] 0.0
        %929 = vst [vmem:[#allocation3 + $0x20] sm:$0xff] 0.0
        %930 = vst [vmem:[#allocation3 + $0x28] sm:$0xff] 0.0
        %931 = vst [vmem:[#allocation3 + $0x30] sm:$0xff] 0.0
        %932 = vst [vmem:[#allocation3 + $0x38] sm:$0xff] 0.0
        %933 = vst [vmem:[#allocation3 + $0x40] sm:$0xff] 0.0
        %934 = vst [vmem:[#allocation3 + $0x48] sm:$0xff] 0.0
        %935 = vst [vmem:[#allocation3 + $0x50] sm:$0xff] 0.0
        %936 = vst [vmem:[#allocation3 + $0x58] sm:$0xff] 0.0
        %937 = vst [vmem:[#allocation3 + $0x60] sm:$0xff] 0.0
        %938 = vst [vmem:[#allocation3 + $0x68] sm:$0xff] 0.0
        %939 = vst [vmem:[#allocation3 + $0x70] sm:$0xff] 0.0
        %940 = vst [vmem:[#allocation3 + $0x78] sm:$0xff] 0.0
      $region56: #{_lambda_.5} parent=47 // pred_fallthru
        _
      %v941 = vld [vmem:[%s366] sm:$0xff]
      %v942 = vld [vmem:[%s366 + $0x8] sm:$0xff]
      %v943 = vld [vmem:[%s366 + $0x10] sm:$0xff]
      %v944 = vld [vmem:[%s366 + $0x18] sm:$0xff]
      %v945 = vld [vmem:[%s366 + $0x20] sm:$0xff]
      %v946 = vld [vmem:[%s366 + $0x28] sm:$0xff]
      %v947 = vld [vmem:[%s366 + $0x30] sm:$0xff]
      %v948 = vld [vmem:[%s366 + $0x38] sm:$0xff]
      %v949 = vld [vmem:[%s366 + $0x40] sm:$0xff]
      %v950 = vld [vmem:[%s366 + $0x48] sm:$0xff]
      %v951 = vld [vmem:[%s366 + $0x50] sm:$0xff]
      %v952 = vld [vmem:[%s366 + $0x58] sm:$0xff]
      %v953 = vld [vmem:[%s366 + $0x60] sm:$0xff]
      %v954 = vld [vmem:[%s366 + $0x68] sm:$0xff]
      %v955 = vld [vmem:[%s366 + $0x70] sm:$0xff]
      %v956 = vld [vmem:[%s366 + $0x78] sm:$0xff]
      %v957 = vunpack.c.l.bf16 %v941
      %v958 = vunpack.c.h.bf16 %v941
      %v959 = vunpack.c.l.bf16 %v942
      %v960 = vunpack.c.h.bf16 %v942
      %v961 = vunpack.c.l.bf16 %v943
      %v962 = vunpack.c.h.bf16 %v943
      %v963 = vunpack.c.l.bf16 %v944
      %v964 = vunpack.c.h.bf16 %v944
      %v965 = vunpack.c.l.bf16 %v945
      %v966 = vunpack.c.h.bf16 %v945
      %v967 = vunpack.c.l.bf16 %v946
      %v968 = vunpack.c.h.bf16 %v946
      %v969 = vunpack.c.l.bf16 %v947
      %v970 = vunpack.c.h.bf16 %v947
      %v971 = vunpack.c.l.bf16 %v948
      %v972 = vunpack.c.h.bf16 %v948
      %v973 = vunpack.c.l.bf16 %v949
      %v974 = vunpack.c.h.bf16 %v949
      %v975 = vunpack.c.l.bf16 %v950
      %v976 = vunpack.c.h.bf16 %v950
      %v977 = vunpack.c.l.bf16 %v951
      %v978 = vunpack.c.h.bf16 %v951
      %v979 = vunpack.c.l.bf16 %v952
      %v980 = vunpack.c.h.bf16 %v952
      %v981 = vunpack.c.l.bf16 %v953
      %v982 = vunpack.c.h.bf16 %v953
      %v983 = vunpack.c.l.bf16 %v954
      %v984 = vunpack.c.h.bf16 %v954
      %v985 = vunpack.c.l.bf16 %v955
      %v986 = vunpack.c.h.bf16 %v955
      %v987 = vunpack.c.l.bf16 %v956
      %v988 = vunpack.c.h.bf16 %v956
      %v989 = vld [vmem:[%s373] sm:$0xff]
      %v990 = vld [vmem:[%s373 + $0x8] sm:$0xff]
      %v991 = vld [vmem:[%s373 + $0x10] sm:$0xff]
      %v992 = vld [vmem:[%s373 + $0x18] sm:$0xff]
      %v993 = vld [vmem:[%s373 + $0x20] sm:$0xff]
      %v994 = vld [vmem:[%s373 + $0x28] sm:$0xff]
      %v995 = vld [vmem:[%s373 + $0x30] sm:$0xff]
      %v996 = vld [vmem:[%s373 + $0x38] sm:$0xff]
      %v997 = vld [vmem:[%s373 + $0x40] sm:$0xff]
      %v998 = vld [vmem:[%s373 + $0x48] sm:$0xff]
      %v999 = vld [vmem:[%s373 + $0x50] sm:$0xff]
      %v1000 = vld [vmem:[%s373 + $0x58] sm:$0xff]
      %v1001 = vld [vmem:[%s373 + $0x60] sm:$0xff]
      %v1002 = vld [vmem:[%s373 + $0x68] sm:$0xff]
      %v1003 = vld [vmem:[%s373 + $0x70] sm:$0xff]
      %v1004 = vld [vmem:[%s373 + $0x78] sm:$0xff]
      %1006 = vset.pattern.permute.xlu0 0
      %1007 = vperm.xlu0 %1006, %v989
      %v1008 = vpop.permute.xlu0 %1007
      %1011 = vset.pattern.permute.xlu0 0
      %1012 = vperm.xlu0 %1011, %v990
      %v1013 = vpop.permute.xlu0 %1012
      %1016 = vset.pattern.permute.xlu0 0
      %1017 = vperm.xlu0 %1016, %v991
      %v1018 = vpop.permute.xlu0 %1017
      %1021 = vset.pattern.permute.xlu0 0
      %1022 = vperm.xlu0 %1021, %v992
      %v1023 = vpop.permute.xlu0 %1022
      %1026 = vset.pattern.permute.xlu0 0
      %1027 = vperm.xlu0 %1026, %v993
      %v1028 = vpop.permute.xlu0 %1027
      %1031 = vset.pattern.permute.xlu0 0
      %1032 = vperm.xlu0 %1031, %v994
      %v1033 = vpop.permute.xlu0 %1032
      %1036 = vset.pattern.permute.xlu0 0
      %1037 = vperm.xlu0 %1036, %v995
      %v1038 = vpop.permute.xlu0 %1037
      %1041 = vset.pattern.permute.xlu0 0
      %1042 = vperm.xlu0 %1041, %v996
      %v1043 = vpop.permute.xlu0 %1042
      %1046 = vset.pattern.permute.xlu0 0
      %1047 = vperm.xlu0 %1046, %v997
      %v1048 = vpop.permute.xlu0 %1047
      %1051 = vset.pattern.permute.xlu0 0
      %1052 = vperm.xlu0 %1051, %v998
      %v1053 = vpop.permute.xlu0 %1052
      %1056 = vset.pattern.permute.xlu0 0
      %1057 = vperm.xlu0 %1056, %v999
      %v1058 = vpop.permute.xlu0 %1057
      %1061 = vset.pattern.permute.xlu0 0
      %1062 = vperm.xlu0 %1061, %v1000
      %v1063 = vpop.permute.xlu0 %1062
      %1066 = vset.pattern.permute.xlu0 0
      %1067 = vperm.xlu0 %1066, %v1001
      %v1068 = vpop.permute.xlu0 %1067
      %1071 = vset.pattern.permute.xlu0 0
      %1072 = vperm.xlu0 %1071, %v1002
      %v1073 = vpop.permute.xlu0 %1072
      %1076 = vset.pattern.permute.xlu0 0
      %1077 = vperm.xlu0 %1076, %v1003
      %v1078 = vpop.permute.xlu0 %1077
      %1081 = vset.pattern.permute.xlu0 0
      %1082 = vperm.xlu0 %1081, %v1004
      %v1083 = vpop.permute.xlu0 %1082
      %v1085 = vmul.f32 %v957, %v1008
      %v1086 = vmul.f32 %v958, %v1008
      %v1087 = vmul.f32 %v959, %v1013
      %v1088 = vmul.f32 %v960, %v1013
      %v1089 = vmul.f32 %v961, %v1018
      %v1090 = vmul.f32 %v962, %v1018
      %v1091 = vmul.f32 %v963, %v1023
      %v1092 = vmul.f32 %v964, %v1023
      %v1093 = vmul.f32 %v965, %v1028
      %v1094 = vmul.f32 %v966, %v1028
      %v1095 = vmul.f32 %v967, %v1033
      %v1096 = vmul.f32 %v968, %v1033
      %v1097 = vmul.f32 %v969, %v1038
      %v1098 = vmul.f32 %v970, %v1038
      %v1099 = vmul.f32 %v971, %v1043
      %v1100 = vmul.f32 %v972, %v1043
      %v1101 = vmul.f32 %v973, %v1048
      %v1102 = vmul.f32 %v974, %v1048
      %v1103 = vmul.f32 %v975, %v1053
      %v1104 = vmul.f32 %v976, %v1053
      %v1105 = vmul.f32 %v977, %v1058
      %v1106 = vmul.f32 %v978, %v1058
      %v1107 = vmul.f32 %v979, %v1063
      %v1108 = vmul.f32 %v980, %v1063
      %v1109 = vmul.f32 %v981, %v1068
      %v1110 = vmul.f32 %v982, %v1068
      %v1111 = vmul.f32 %v983, %v1073
      %v1112 = vmul.f32 %v984, %v1073
      %v1113 = vmul.f32 %v985, %v1078
      %v1114 = vmul.f32 %v986, %v1078
      %v1115 = vmul.f32 %v987, %v1083
      %v1116 = vmul.f32 %v988, %v1083
      %v1117 = vld [vmem:[%s378] sm:$0x3]
      %v1119 = vlaneseq
      %v1120 = vshrl.u32 %v1119, 7
      %v1121 = vsub.s32 0, %v1120
      %v1122 = vrot.slane %v1117, %v1121
      %v1123 = vlaneseq
      %v1124 = vshrl.u32 %v1123, 7
      %v1125 = vsub.s32 1, %v1124
      %v1126 = vrot.slane %v1117, %v1125
      %v1129 = vmul.f32 %v1085, %v1122
      %v1130 = vmul.f32 %v1086, %v1126
      %v1131 = vmul.f32 %v1087, %v1122
      %v1132 = vmul.f32 %v1088, %v1126
      %v1133 = vmul.f32 %v1089, %v1122
      %v1134 = vmul.f32 %v1090, %v1126
      %v1135 = vmul.f32 %v1091, %v1122
      %v1136 = vmul.f32 %v1092, %v1126
      %v1137 = vmul.f32 %v1093, %v1122
      %v1138 = vmul.f32 %v1094, %v1126
      %v1139 = vmul.f32 %v1095, %v1122
      %v1140 = vmul.f32 %v1096, %v1126
      %v1141 = vmul.f32 %v1097, %v1122
      %v1142 = vmul.f32 %v1098, %v1126
      %v1143 = vmul.f32 %v1099, %v1122
      %v1144 = vmul.f32 %v1100, %v1126
      %v1145 = vmul.f32 %v1101, %v1122
      %v1146 = vmul.f32 %v1102, %v1126
      %v1147 = vmul.f32 %v1103, %v1122
      %v1148 = vmul.f32 %v1104, %v1126
      %v1149 = vmul.f32 %v1105, %v1122
      %v1150 = vmul.f32 %v1106, %v1126
      %v1151 = vmul.f32 %v1107, %v1122
      %v1152 = vmul.f32 %v1108, %v1126
      %v1153 = vmul.f32 %v1109, %v1122
      %v1154 = vmul.f32 %v1110, %v1126
      %v1155 = vmul.f32 %v1111, %v1122
      %v1156 = vmul.f32 %v1112, %v1126
      %v1157 = vmul.f32 %v1113, %v1122
      %v1158 = vmul.f32 %v1114, %v1126
      %v1159 = vmul.f32 %v1115, %v1122
      %v1160 = vmul.f32 %v1116, %v1126
      %s1161 = smul.u32 %s23, 256
      %s1162 = sshra.s32 %s1161, 3
      %s1163 = sand.u32 %s1161, 7
      %s1164 = smul.addr %s1162, 4
      %s1165 = scalar_lea.vmem [#allocation2], %s1164
      %v1166 = vld [vmem:[%s1165] sm:$0xf]
      %v1167 = vld [vmem:[%s1165 + $0x4] sm:$0xf]
      %v1168 = vld [vmem:[%s1165 + $0x8] sm:$0xf]
      %v1169 = vld [vmem:[%s1165 + $0xc] sm:$0xf]
      %v1170 = vld [vmem:[%s1165 + $0x10] sm:$0xf]
      %v1171 = vld [vmem:[%s1165 + $0x14] sm:$0xf]
      %v1172 = vld [vmem:[%s1165 + $0x18] sm:$0xf]
      %v1173 = vld [vmem:[%s1165 + $0x1c] sm:$0xf]
      %v1174 = vld [vmem:[%s1165 + $0x20] sm:$0xf]
      %v1175 = vld [vmem:[%s1165 + $0x24] sm:$0xf]
      %v1176 = vld [vmem:[%s1165 + $0x28] sm:$0xf]
      %v1177 = vld [vmem:[%s1165 + $0x2c] sm:$0xf]
      %v1178 = vld [vmem:[%s1165 + $0x30] sm:$0xf]
      %v1179 = vld [vmem:[%s1165 + $0x34] sm:$0xf]
      %v1180 = vld [vmem:[%s1165 + $0x38] sm:$0xf]
      %v1181 = vld [vmem:[%s1165 + $0x3c] sm:$0xf]
      %v1182 = vld [vmem:[%s1165 + $0x40] sm:$0xf]
      %v1183 = vld [vmem:[%s1165 + $0x44] sm:$0xf]
      %v1184 = vld [vmem:[%s1165 + $0x48] sm:$0xf]
      %v1185 = vld [vmem:[%s1165 + $0x4c] sm:$0xf]
      %v1186 = vld [vmem:[%s1165 + $0x50] sm:$0xf]
      %v1187 = vld [vmem:[%s1165 + $0x54] sm:$0xf]
      %v1188 = vld [vmem:[%s1165 + $0x58] sm:$0xf]
      %v1189 = vld [vmem:[%s1165 + $0x5c] sm:$0xf]
      %v1190 = vld [vmem:[%s1165 + $0x60] sm:$0xf]
      %v1191 = vld [vmem:[%s1165 + $0x64] sm:$0xf]
      %v1192 = vld [vmem:[%s1165 + $0x68] sm:$0xf]
      %v1193 = vld [vmem:[%s1165 + $0x6c] sm:$0xf]
      %v1194 = vld [vmem:[%s1165 + $0x70] sm:$0xf]
      %v1195 = vld [vmem:[%s1165 + $0x74] sm:$0xf]
      %v1196 = vld [vmem:[%s1165 + $0x78] sm:$0xf]
      %v1197 = vld [vmem:[%s1165 + $0x7c] sm:$0xf]
      %v1198 = vld [vmem:[#allocation3] sm:$0xff]
      %v1199 = vld [vmem:[#allocation3 + $0x8] sm:$0xff]
      %v1200 = vld [vmem:[#allocation3 + $0x10] sm:$0xff]
      %v1201 = vld [vmem:[#allocation3 + $0x18] sm:$0xff]
      %v1202 = vld [vmem:[#allocation3 + $0x20] sm:$0xff]
      %v1203 = vld [vmem:[#allocation3 + $0x28] sm:$0xff]
      %v1204 = vld [vmem:[#allocation3 + $0x30] sm:$0xff]
      %v1205 = vld [vmem:[#allocation3 + $0x38] sm:$0xff]
      %v1206 = vld [vmem:[#allocation3 + $0x40] sm:$0xff]
      %v1207 = vld [vmem:[#allocation3 + $0x48] sm:$0xff]
      %v1208 = vld [vmem:[#allocation3 + $0x50] sm:$0xff]
      %v1209 = vld [vmem:[#allocation3 + $0x58] sm:$0xff]
      %v1210 = vld [vmem:[#allocation3 + $0x60] sm:$0xff]
      %v1211 = vld [vmem:[#allocation3 + $0x68] sm:$0xff]
      %v1212 = vld [vmem:[#allocation3 + $0x70] sm:$0xff]
      %v1213 = vld [vmem:[#allocation3 + $0x78] sm:$0xff]
      %v1214 = vpack.c.bf16 %v1131, %v1129
      %v1215 = vpack.c.bf16 %v1132, %v1130
      %v1216 = vpack.c.bf16 %v1135, %v1133
      %v1217 = vpack.c.bf16 %v1136, %v1134
      %v1218 = vpack.c.bf16 %v1139, %v1137
      %v1219 = vpack.c.bf16 %v1140, %v1138
      %v1220 = vpack.c.bf16 %v1143, %v1141
      %v1221 = vpack.c.bf16 %v1144, %v1142
      %v1222 = vpack.c.bf16 %v1147, %v1145
      %v1223 = vpack.c.bf16 %v1148, %v1146
      %v1224 = vpack.c.bf16 %v1151, %v1149
      %v1225 = vpack.c.bf16 %v1152, %v1150
      %v1226 = vpack.c.bf16 %v1155, %v1153
      %v1227 = vpack.c.bf16 %v1156, %v1154
      %v1228 = vpack.c.bf16 %v1159, %v1157
      %v1229 = vpack.c.bf16 %v1160, %v1158
      %v1262 = vunpack.c.l.b16 %v1166
      %v1263 = vunpack.c.l.b16 %v1167
      %v1264 = vunpack.c.l.b16 %v1168
      %v1265 = vunpack.c.l.b16 %v1169
      %v1266 = vunpack.c.l.b16 %v1170
      %v1267 = vunpack.c.l.b16 %v1171
      %v1268 = vunpack.c.l.b16 %v1172
      %v1269 = vunpack.c.l.b16 %v1173
      %v1270 = vunpack.c.l.b16 %v1174
      %v1271 = vunpack.c.l.b16 %v1175
      %v1272 = vunpack.c.l.b16 %v1176
      %v1273 = vunpack.c.l.b16 %v1177
      %v1274 = vunpack.c.l.b16 %v1178
      %v1275 = vunpack.c.l.b16 %v1179
      %v1276 = vunpack.c.l.b16 %v1180
      %v1277 = vunpack.c.l.b16 %v1181
      %v1278 = vunpack.c.l.b16 %v1182
      %v1279 = vunpack.c.l.b16 %v1183
      %v1280 = vunpack.c.l.b16 %v1184
      %v1281 = vunpack.c.l.b16 %v1185
      %v1282 = vunpack.c.l.b16 %v1186
      %v1283 = vunpack.c.l.b16 %v1187
      %v1284 = vunpack.c.l.b16 %v1188
      %v1285 = vunpack.c.l.b16 %v1189
      %v1286 = vunpack.c.l.b16 %v1190
      %v1287 = vunpack.c.l.b16 %v1191
      %v1288 = vunpack.c.l.b16 %v1192
      %v1289 = vunpack.c.l.b16 %v1193
      %v1290 = vunpack.c.l.b16 %v1194
      %v1291 = vunpack.c.l.b16 %v1195
      %v1292 = vunpack.c.l.b16 %v1196
      %v1293 = vunpack.c.l.b16 %v1197
      %v1294 = vpack.c.b16 %v1263, %v1262
      %v1295 = vpack.c.b16 %v1265, %v1264
      %v1296 = vpack.c.b16 %v1267, %v1266
      %v1297 = vpack.c.b16 %v1269, %v1268
      %v1298 = vpack.c.b16 %v1271, %v1270
      %v1299 = vpack.c.b16 %v1273, %v1272
      %v1300 = vpack.c.b16 %v1275, %v1274
      %v1301 = vpack.c.b16 %v1277, %v1276
      %v1302 = vpack.c.b16 %v1279, %v1278
      %v1303 = vpack.c.b16 %v1281, %v1280
      %v1304 = vpack.c.b16 %v1283, %v1282
      %v1305 = vpack.c.b16 %v1285, %v1284
      %v1306 = vpack.c.b16 %v1287, %v1286
      %v1307 = vpack.c.b16 %v1289, %v1288
      %v1308 = vpack.c.b16 %v1291, %v1290
      %v1309 = vpack.c.b16 %v1293, %v1292
      %1326 = vmatprep.subr.bf16.mxu0 0
      %1327 = vmatpush1.bf16.msra.mxu0 %v1301
      %1328 = vmatprep.subr.bf16.mxu0 0
      %1329 = vmatpush1.bf16.msra.mxu0 %v1300
      %1330 = vmatprep.subr.bf16.mxu0 0
      %1331 = vmatpush1.bf16.msra.mxu0 %v1299
      %1332 = vmatprep.subr.bf16.mxu0 0
      %1333 = vmatpush1.bf16.msra.mxu0 %v1298
      %1334 = vmatprep.subr.bf16.mxu0 0
      %1335 = vmatpush1.bf16.msra.mxu0 %v1297
      %1336 = vmatprep.subr.bf16.mxu0 0
      %1337 = vmatpush1.bf16.msra.mxu0 %v1296
      %1338 = vmatprep.subr.bf16.mxu0 0
      %1339 = vmatpush1.bf16.msra.mxu0 %v1295
      %1340 = vmatprep.subr.bf16.mxu0 0
      %1341 = vmatpush1.bf16.msra.mxu0 %v1294
      %1342 = vmatprep.subr.bf16.mxu0 0
      %1343 = vmatpush2.bf16.msra.mxu0 %v1309
      %1344 = vmatprep.subr.bf16.mxu0 0
      %1345 = vmatpush2.bf16.msra.mxu0 %v1308
      %1346 = vmatprep.subr.bf16.mxu0 0
      %1347 = vmatpush2.bf16.msra.mxu0 %v1307
      %1348 = vmatprep.subr.bf16.mxu0 0
      %1349 = vmatpush2.bf16.msra.mxu0 %v1306
      %1350 = vmatprep.subr.bf16.mxu0 0
      %1351 = vmatpush2.bf16.msra.mxu0 %v1305
      %1352 = vmatprep.subr.bf16.mxu0 0
      %1353 = vmatpush2.bf16.msra.mxu0 %v1304
      %1354 = vmatprep.subr.bf16.mxu0 0
      %1355 = vmatpush2.bf16.msra.mxu0 %v1303
      %1356 = vmatprep.subr.bf16.mxu0 0
      %1357 = vmatpush2.bf16.msra.mxu0 %v1302
      %1358 = vmatprep.mubr.bf16.mxu0 %v1215
      %1359 = vmatmul.mubr.bf16.gmra.mxu0 %v1214
      %v1360 = vpop.f32.mrf.mxu0
      %v1361 = vadd.f32 0.0, %v1360
      %v1362 = vpop.f32.mrf.mxu0
      %v1363 = vpop.f32.mrf.mxu0
      %v1364 = vadd.f32 0.0, %v1363
      %v1365 = vpop.f32.mrf.mxu0
      %1366 = vmatprep.mubr.bf16.mxu0 %v1217
      %1367 = vmatmul.mubr.bf16.gmra.mxu0 %v1216
      %v1368 = vpop.f32.mrf.mxu0
      %v1369 = vadd.f32 0.0, %v1368
      %v1370 = vpop.f32.mrf.mxu0
      %v1371 = vpop.f32.mrf.mxu0
      %v1372 = vadd.f32 0.0, %v1371
      %v1373 = vpop.f32.mrf.mxu0
      %1374 = vmatprep.mubr.bf16.mxu0 %v1219
      %1375 = vmatmul.mubr.bf16.gmra.mxu0 %v1218
      %v1376 = vpop.f32.mrf.mxu0
      %v1377 = vadd.f32 0.0, %v1376
      %v1378 = vpop.f32.mrf.mxu0
      %v1379 = vpop.f32.mrf.mxu0
      %v1380 = vadd.f32 0.0, %v1379
      %v1381 = vpop.f32.mrf.mxu0
      %1382 = vmatprep.mubr.bf16.mxu0 %v1221
      %1383 = vmatmul.mubr.bf16.gmra.mxu0 %v1220
      %v1384 = vpop.f32.mrf.mxu0
      %v1385 = vadd.f32 0.0, %v1384
      %v1386 = vpop.f32.mrf.mxu0
      %v1387 = vpop.f32.mrf.mxu0
      %v1388 = vadd.f32 0.0, %v1387
      %v1389 = vpop.f32.mrf.mxu0
      %1390 = vmatprep.mubr.bf16.mxu0 %v1223
      %1391 = vmatmul.mubr.bf16.gmra.mxu0 %v1222
      %v1392 = vpop.f32.mrf.mxu0
      %v1393 = vadd.f32 0.0, %v1392
      %v1394 = vpop.f32.mrf.mxu0
      %v1395 = vpop.f32.mrf.mxu0
      %v1396 = vadd.f32 0.0, %v1395
      %v1397 = vpop.f32.mrf.mxu0
      %1398 = vmatprep.mubr.bf16.mxu0 %v1225
      %1399 = vmatmul.mubr.bf16.gmra.mxu0 %v1224
      %v1400 = vpop.f32.mrf.mxu0
      %v1401 = vadd.f32 0.0, %v1400
      %v1402 = vpop.f32.mrf.mxu0
      %v1403 = vpop.f32.mrf.mxu0
      %v1404 = vadd.f32 0.0, %v1403
      %v1405 = vpop.f32.mrf.mxu0
      %1406 = vmatprep.mubr.bf16.mxu0 %v1227
      %1407 = vmatmul.mubr.bf16.gmra.mxu0 %v1226
      %v1408 = vpop.f32.mrf.mxu0
      %v1409 = vadd.f32 0.0, %v1408
      %v1410 = vpop.f32.mrf.mxu0
      %v1411 = vpop.f32.mrf.mxu0
      %v1412 = vadd.f32 0.0, %v1411
      %v1413 = vpop.f32.mrf.mxu0
      %1414 = vmatprep.mubr.bf16.mxu0 %v1229
      %1415 = vmatmul.mubr.bf16.gmra.mxu0 %v1228
      %v1416 = vpop.f32.mrf.mxu0
      %v1417 = vadd.f32 0.0, %v1416
      %v1418 = vpop.f32.mrf.mxu0
      %v1419 = vpop.f32.mrf.mxu0
      %v1420 = vadd.f32 0.0, %v1419
      %v1421 = vpop.f32.mrf.mxu0
      %1422 = vdwg.mxu0
      %v1423 = vadd.f32 %v1198, %v1361
      %v1424 = vadd.f32 %v1199, %v1364
      %v1425 = vadd.f32 %v1200, %v1369
      %v1426 = vadd.f32 %v1201, %v1372
      %v1427 = vadd.f32 %v1202, %v1377
      %v1428 = vadd.f32 %v1203, %v1380
      %v1429 = vadd.f32 %v1204, %v1385
      %v1430 = vadd.f32 %v1205, %v1388
      %v1431 = vadd.f32 %v1206, %v1393
      %v1432 = vadd.f32 %v1207, %v1396
      %v1433 = vadd.f32 %v1208, %v1401
      %v1434 = vadd.f32 %v1209, %v1404
      %v1435 = vadd.f32 %v1210, %v1409
      %v1436 = vadd.f32 %v1211, %v1412
      %v1437 = vadd.f32 %v1212, %v1417
      %v1438 = vadd.f32 %v1213, %v1420
      %1439 = vst [vmem:[#allocation3] sm:$0xff] %v1423
      %1440 = vst [vmem:[#allocation3 + $0x8] sm:$0xff] %v1424
      %1441 = vst [vmem:[#allocation3 + $0x10] sm:$0xff] %v1425
      %1442 = vst [vmem:[#allocation3 + $0x18] sm:$0xff] %v1426
      %1443 = vst [vmem:[#allocation3 + $0x20] sm:$0xff] %v1427
      %1444 = vst [vmem:[#allocation3 + $0x28] sm:$0xff] %v1428
      %1445 = vst [vmem:[#allocation3 + $0x30] sm:$0xff] %v1429
      %1446 = vst [vmem:[#allocation3 + $0x38] sm:$0xff] %v1430
      %1447 = vst [vmem:[#allocation3 + $0x40] sm:$0xff] %v1431
      %1448 = vst [vmem:[#allocation3 + $0x48] sm:$0xff] %v1432
      %1449 = vst [vmem:[#allocation3 + $0x50] sm:$0xff] %v1433
      %1450 = vst [vmem:[#allocation3 + $0x58] sm:$0xff] %v1434
      %1451 = vst [vmem:[#allocation3 + $0x60] sm:$0xff] %v1435
      %1452 = vst [vmem:[#allocation3 + $0x68] sm:$0xff] %v1436
      %1453 = vst [vmem:[#allocation3 + $0x70] sm:$0xff] %v1437
      %1454 = vst [vmem:[#allocation3 + $0x78] sm:$0xff] %v1438
      // Predicated region
      $region57: #{_lambda_.5} parent=47 // pred_check
        %p1455 = pneg %p921
      $region58: #{_lambda_.5} parent=47 // pred_check_branch
        %1457 = sbr.rel (%p1455) target = $region60
      $region59: #{_lambda_.5} parent=47 // pred_region
        %v1458 = vld [vmem:[#allocation3] sm:$0xff]
        %v1459 = vld [vmem:[#allocation3 + $0x8] sm:$0xff]
        %v1460 = vld [vmem:[#allocation3 + $0x10] sm:$0xff]
        %v1461 = vld [vmem:[#allocation3 + $0x18] sm:$0xff]
        %v1462 = vld [vmem:[#allocation3 + $0x20] sm:$0xff]
        %v1463 = vld [vmem:[#allocation3 + $0x28] sm:$0xff]
        %v1464 = vld [vmem:[#allocation3 + $0x30] sm:$0xff]
        %v1465 = vld [vmem:[#allocation3 + $0x38] sm:$0xff]
        %v1466 = vld [vmem:[#allocation3 + $0x40] sm:$0xff]
        %v1467 = vld [vmem:[#allocation3 + $0x48] sm:$0xff]
        %v1468 = vld [vmem:[#allocation3 + $0x50] sm:$0xff]
        %v1469 = vld [vmem:[#allocation3 + $0x58] sm:$0xff]
        %v1470 = vld [vmem:[#allocation3 + $0x60] sm:$0xff]
        %v1471 = vld [vmem:[#allocation3 + $0x68] sm:$0xff]
        %v1472 = vld [vmem:[#allocation3 + $0x70] sm:$0xff]
        %v1473 = vld [vmem:[#allocation3 + $0x78] sm:$0xff]
        %v1474 = vld [vmem:[%s5] sm:$0x1]
        %v1476 = vlaneseq
        %v1477 = vshrl.u32 %v1476, 7
        %v1478 = vsub.s32 0, %v1477
        %v1479 = vrot.slane %v1474, %v1478
        %v1481 = vadd.f32 %v1458, %v1479
        %v1482 = vadd.f32 %v1459, %v1479
        %v1483 = vadd.f32 %v1460, %v1479
        %v1484 = vadd.f32 %v1461, %v1479
        %v1485 = vadd.f32 %v1462, %v1479
        %v1486 = vadd.f32 %v1463, %v1479
        %v1487 = vadd.f32 %v1464, %v1479
        %v1488 = vadd.f32 %v1465, %v1479
        %v1489 = vadd.f32 %v1466, %v1479
        %v1490 = vadd.f32 %v1467, %v1479
        %v1491 = vadd.f32 %v1468, %v1479
        %v1492 = vadd.f32 %v1469, %v1479
        %v1493 = vadd.f32 %v1470, %v1479
        %v1494 = vadd.f32 %v1471, %v1479
        %v1495 = vadd.f32 %v1472, %v1479
        %v1496 = vadd.f32 %v1473, %v1479
        %v1497 = vmax.f32 %v1481, 0.0
        %v1498 = vmax.f32 %v1482, 0.0
        %v1499 = vmax.f32 %v1483, 0.0
        %v1500 = vmax.f32 %v1484, 0.0
        %v1501 = vmax.f32 %v1485, 0.0
        %v1502 = vmax.f32 %v1486, 0.0
        %v1503 = vmax.f32 %v1487, 0.0
        %v1504 = vmax.f32 %v1488, 0.0
        %v1505 = vmax.f32 %v1489, 0.0
        %v1506 = vmax.f32 %v1490, 0.0
        %v1507 = vmax.f32 %v1491, 0.0
        %v1508 = vmax.f32 %v1492, 0.0
        %v1509 = vmax.f32 %v1493, 0.0
        %v1510 = vmax.f32 %v1494, 0.0
        %v1511 = vmax.f32 %v1495, 0.0
        %v1512 = vmax.f32 %v1496, 0.0
        %v1513 = vld [vmem:[%s390] sm:$0xff]
        %v1514 = vld [vmem:[%s390 + $0x8] sm:$0xff]
        %v1515 = vld [vmem:[%s390 + $0x10] sm:$0xff]
        %v1516 = vld [vmem:[%s390 + $0x18] sm:$0xff]
        %v1517 = vld [vmem:[%s390 + $0x20] sm:$0xff]
        %v1518 = vld [vmem:[%s390 + $0x28] sm:$0xff]
        %v1519 = vld [vmem:[%s390 + $0x30] sm:$0xff]
        %v1520 = vld [vmem:[%s390 + $0x38] sm:$0xff]
        %v1521 = vld [vmem:[%s390 + $0x40] sm:$0xff]
        %v1522 = vld [vmem:[%s390 + $0x48] sm:$0xff]
        %v1523 = vld [vmem:[%s390 + $0x50] sm:$0xff]
        %v1524 = vld [vmem:[%s390 + $0x58] sm:$0xff]
        %v1525 = vld [vmem:[%s390 + $0x60] sm:$0xff]
        %v1526 = vld [vmem:[%s390 + $0x68] sm:$0xff]
        %v1527 = vld [vmem:[%s390 + $0x70] sm:$0xff]
        %v1528 = vld [vmem:[%s390 + $0x78] sm:$0xff]
        %v1529 = vmul.f32 %v1513, 0.5
        %v1530 = vmul.f32 %v1514, 0.5
        %v1531 = vmul.f32 %v1515, 0.5
        %v1532 = vmul.f32 %v1516, 0.5
        %v1533 = vmul.f32 %v1517, 0.5
        %v1534 = vmul.f32 %v1518, 0.5
        %v1535 = vmul.f32 %v1519, 0.5
        %v1536 = vmul.f32 %v1520, 0.5
        %v1537 = vmul.f32 %v1521, 0.5
        %v1538 = vmul.f32 %v1522, 0.5
        %v1539 = vmul.f32 %v1523, 0.5
        %v1540 = vmul.f32 %v1524, 0.5
        %v1541 = vmul.f32 %v1525, 0.5
        %v1542 = vmul.f32 %v1526, 0.5
        %v1543 = vmul.f32 %v1527, 0.5
        %v1544 = vmul.f32 %v1528, 0.5
        %v1545 = vadd.f32 %v1497, %v1529
        %v1546 = vadd.f32 %v1498, %v1530
        %v1547 = vadd.f32 %v1499, %v1531
        %v1548 = vadd.f32 %v1500, %v1532
        %v1549 = vadd.f32 %v1501, %v1533
        %v1550 = vadd.f32 %v1502, %v1534
        %v1551 = vadd.f32 %v1503, %v1535
        %v1552 = vadd.f32 %v1504, %v1536
        %v1553 = vadd.f32 %v1505, %v1537
        %v1554 = vadd.f32 %v1506, %v1538
        %v1555 = vadd.f32 %v1507, %v1539
        %v1556 = vadd.f32 %v1508, %v1540
        %v1557 = vadd.f32 %v1509, %v1541
        %v1558 = vadd.f32 %v1510, %v1542
        %v1559 = vadd.f32 %v1511, %v1543
        %v1560 = vadd.f32 %v1512, %v1544
        %v1561 = vpack.c.bf16 %v1546, %v1545
        %v1562 = vpack.c.bf16 %v1548, %v1547
        %v1563 = vpack.c.bf16 %v1550, %v1549
        %v1564 = vpack.c.bf16 %v1552, %v1551
        %v1565 = vpack.c.bf16 %v1554, %v1553
        %v1566 = vpack.c.bf16 %v1556, %v1555
        %v1567 = vpack.c.bf16 %v1558, %v1557
        %v1568 = vpack.c.bf16 %v1560, %v1559
        %v1577 = vunpack.c.l.b16 %v1561
        %v1578 = vunpack.c.h.b16 %v1561
        %v1579 = vunpack.c.l.b16 %v1562
        %v1580 = vunpack.c.h.b16 %v1562
        %v1581 = vunpack.c.l.b16 %v1563
        %v1582 = vunpack.c.h.b16 %v1563
        %v1583 = vunpack.c.l.b16 %v1564
        %v1584 = vunpack.c.h.b16 %v1564
        %v1585 = vunpack.c.l.b16 %v1565
        %v1586 = vunpack.c.h.b16 %v1565
        %v1587 = vunpack.c.l.b16 %v1566
        %v1588 = vunpack.c.h.b16 %v1566
        %v1589 = vunpack.c.l.b16 %v1567
        %v1590 = vunpack.c.h.b16 %v1567
        %v1591 = vunpack.c.l.b16 %v1568
        %v1592 = vunpack.c.h.b16 %v1568
        %v1593 = vpack.c.b16 %v1577, %v1577
        %v1594 = vpack.c.b16 %v1578, %v1578
        %v1595 = vpack.c.b16 %v1579, %v1579
        %v1596 = vpack.c.b16 %v1580, %v1580
        %v1597 = vpack.c.b16 %v1581, %v1581
        %v1598 = vpack.c.b16 %v1582, %v1582
        %v1599 = vpack.c.b16 %v1583, %v1583
        %v1600 = vpack.c.b16 %v1584, %v1584
        %v1601 = vpack.c.b16 %v1585, %v1585
        %v1602 = vpack.c.b16 %v1586, %v1586
        %v1603 = vpack.c.b16 %v1587, %v1587
        %v1604 = vpack.c.b16 %v1588, %v1588
        %v1605 = vpack.c.b16 %v1589, %v1589
        %v1606 = vpack.c.b16 %v1590, %v1590
        %v1607 = vpack.c.b16 %v1591, %v1591
        %v1608 = vpack.c.b16 %v1592, %v1592
        %1625 = vst [vmem:[%s396] sm:$0xf] %v1593
        %1626 = vst [vmem:[%s396 + $0x4] sm:$0xf] %v1594
        %1627 = vst [vmem:[%s396 + $0x8] sm:$0xf] %v1595
        %1628 = vst [vmem:[%s396 + $0xc] sm:$0xf] %v1596
        %1629 = vst [vmem:[%s396 + $0x10] sm:$0xf] %v1597
        %1630 = vst [vmem:[%s396 + $0x14] sm:$0xf] %v1598
        %1631 = vst [vmem:[%s396 + $0x18] sm:$0xf] %v1599
        %1632 = vst [vmem:[%s396 + $0x1c] sm:$0xf] %v1600
        %1633 = vst [vmem:[%s396 + $0x20] sm:$0xf] %v1601
        %1634 = vst [vmem:[%s396 + $0x24] sm:$0xf] %v1602
        %1635 = vst [vmem:[%s396 + $0x28] sm:$0xf] %v1603
        %1636 = vst [vmem:[%s396 + $0x2c] sm:$0xf] %v1604
        %1637 = vst [vmem:[%s396 + $0x30] sm:$0xf] %v1605
        %1638 = vst [vmem:[%s396 + $0x34] sm:$0xf] %v1606
        %1639 = vst [vmem:[%s396 + $0x38] sm:$0xf] %v1607
        %1640 = vst [vmem:[%s396 + $0x3c] sm:$0xf] %v1608
      $region60: #{_lambda_.5} parent=47 // pred_fallthru
        _
      %s1641 = smul.u32 16, %s22
      %p1642 = scmp.lt.s32.totalorder %s1641, 31
      %s1643 = scalar_select %p1642, %s1641, 31
      %s1644 = smul.addr %s1643, 4
      %s1645 = scalar_lea.vmem %s7, %s1644
      // Predicated region
      $region61: #{_lambda_.5} parent=47 // pred_check
        %p1646 = pneg %p222
      $region62: #{_lambda_.5} parent=47 // pred_check_branch
        %1648 = sbr.rel (%p1646) target = $region64
      $region63: #{_lambda_.5} parent=47 // pred_region
        %s1649 = smul.u32 16, %s22
      $region64: #{_lambda_.5} parent=47 // pred_fallthru
        _
    $region48: #{_lambda_.5} parent=5 // pred_fallthru
      _
    %p1650 = scmp.le.s32.totalorder 2, %s13
    // Predicated region
    $region65: #{_lambda_.5} parent=5 // pred_check
      %p1651 = pneg %p1650
    $region66: #{_lambda_.5} parent=5 // pred_check_branch
      %1653 = sbr.rel (%p1651) target = $region68
    $region67: #{_lambda_.5} parent=5 // pred_region
      %s1654 = ssub.s32 %s13, 2
      // Predicated region
      $region69: #{_lambda_.5} parent=67 // pred_check
        %p1655 = pneg %p228
      $region70: #{_lambda_.5} parent=67 // pred_check_branch
        %1657 = sbr.rel (%p1655) target = $region72
      $region71: #{_lambda_.5} parent=67 // pred_region
        %s1658 = smul.u32 16, %s24
        %p1659 = scmp.lt.s32.totalorder %s1658, 31
        %s1660 = scalar_select %p1659, %s1658, 31
        %s1661 = smul.addr %s1660, 4
        %s1662 = scalar_lea.vmem %s7, %s1661
      $region72: #{_lambda_.5} parent=67 // pred_fallthru
        _
    $region68: #{_lambda_.5} parent=5 // pred_fallthru
      _
  $region6: #{_lambda_.5} parent=0 // loop_footer
    %s17 = sadd.s32 1, %s13
  $region7: #{_lambda_.5} parent=0 // loop_footer_branch
    %12 = sbr.rel target = $region3
  $region8: #{_lambda_.5} parent=0 // loop_exit
    _

// kernel: _lambda_.6
$region0: #{_lambda_.6}
  #allocation0 [shape = 'u32[]', space=smem, size = 0x4, offset = 0x4, fixed_abs, tag = 'smem constant byte address 0x4 - core index']
  #allocation1 [shape = 'u32[144,128]{1,0:T(1,128)}', space=vmem, size = 0x12000, scoped, tag = 'internal scratch']
  #allocation2 [shape = 'f32[1,128]{1,0:T(1,128)}', space=vmem, size = 0x200, scoped, tag = 'scratch operand']
  #allocation3 [shape = 'f32[1,128]{1,0:T(1,128)}', space=vmem, size = 0x200, scoped, tag = 'scratch operand']
  %s0 = inlined_call_operand.vmem [shape: bf16[256,128], index: 0, kind: input, shape index: {}]
  %s1 = inlined_call_operand.vmem [shape: f32[256,1], index: 1, kind: input, shape index: {}]
  %s2 = inlined_call_operand.vmem [shape: f32[256,1], index: 2, kind: input, shape index: {}]
  %s3 = inlined_call_operand.vmem [shape: bf16[256,128], index: 3, kind: output, shape index: {0}]
  %s4 = inlined_call_operand.vmem [shape: f32[1,128], index: 4, kind: output, shape index: {1}]
  %s5 = inlined_call_operand.vmem [shape: f32[1,128], index: 5, kind: output, shape index: {2}]
  %6 = xla_tuple %s3, %s4, %s5
  %s7 = sld [smem:[#allocation0]]
  $region46: #{_lambda_.6} parent=0
    _
  %s9 = ssub.s32 1, %s7
  %s10 = scalar_select 0, %s9, %s7
  // Predicated region
  $region2: #{_lambda_.6} parent=0 // pred_check
    _
  $region3: #{_lambda_.6} parent=0 // pred_check_branch
    %12 = sbr.rel (0) target = $region5
  $region4: #{_lambda_.6} parent=0 // pred_region
    _
  $region5: #{_lambda_.6} parent=0 // pred_fallthru
    _
  // Predicated region
  $region6: #{_lambda_.6} parent=0 // pred_check
    _
  $region7: #{_lambda_.6} parent=0 // pred_check_branch
    %14 = sbr.rel (0) target = $region9
  $region8: #{_lambda_.6} parent=0 // pred_region
    _
  $region9: #{_lambda_.6} parent=0 // pred_fallthru
    _
  // Predicated region
  $region10: #{_lambda_.6} parent=0 // pred_check
    _
  $region11: #{_lambda_.6} parent=0 // pred_check_branch
    %16 = sbr.rel (0) target = $region13
  $region12: #{_lambda_.6} parent=0 // pred_region
    _
  $region13: #{_lambda_.6} parent=0 // pred_fallthru
    _
  %p17 = scmp.eq.s32.totalorder 0, 0
  // Predicated region
  $region14: #{_lambda_.6} parent=0 // pred_check
    %p18 = pneg %p17
  $region15: #{_lambda_.6} parent=0 // pred_check_branch
    %20 = sbr.rel (%p18) target = $region17
  $region16: #{_lambda_.6} parent=0 // pred_region
    %21 = vst [vmem:[#allocation2] sm:$0x1] -inf
    %22 = vst [vmem:[#allocation3] sm:$0x1] 0.0
  $region17: #{_lambda_.6} parent=0 // pred_fallthru
    _
  %v23 = vld [vmem:[%s0] sm:$0xf]
  %v24 = vld [vmem:[%s0 + $0x4] sm:$0xf]
  %v25 = vld [vmem:[%s0 + $0x8] sm:$0xf]
  %v26 = vld [vmem:[%s0 + $0xc] sm:$0xf]
  %v27 = vld [vmem:[%s0 + $0x10] sm:$0xf]
  %v28 = vld [vmem:[%s0 + $0x14] sm:$0xf]
  %v29 = vld [vmem:[%s0 + $0x18] sm:$0xf]
  %v30 = vld [vmem:[%s0 + $0x1c] sm:$0xf]
  %v31 = vld [vmem:[%s0 + $0x20] sm:$0xf]
  %v32 = vld [vmem:[%s0 + $0x24] sm:$0xf]
  %v33 = vld [vmem:[%s0 + $0x28] sm:$0xf]
  %v34 = vld [vmem:[%s0 + $0x2c] sm:$0xf]
  %v35 = vld [vmem:[%s0 + $0x30] sm:$0xf]
  %v36 = vld [vmem:[%s0 + $0x34] sm:$0xf]
  %v37 = vld [vmem:[%s0 + $0x38] sm:$0xf]
  %v38 = vld [vmem:[%s0 + $0x3c] sm:$0xf]
  %v39 = vld [vmem:[%s0 + $0x40] sm:$0xf]
  %v40 = vld [vmem:[%s0 + $0x44] sm:$0xf]
  %v41 = vld [vmem:[%s0 + $0x48] sm:$0xf]
  %v42 = vld [vmem:[%s0 + $0x4c] sm:$0xf]
  %v43 = vld [vmem:[%s0 + $0x50] sm:$0xf]
  %v44 = vld [vmem:[%s0 + $0x54] sm:$0xf]
  %v45 = vld [vmem:[%s0 + $0x58] sm:$0xf]
  %v46 = vld [vmem:[%s0 + $0x5c] sm:$0xf]
  %v47 = vld [vmem:[%s0 + $0x60] sm:$0xf]
  %v48 = vld [vmem:[%s0 + $0x64] sm:$0xf]
  %v49 = vld [vmem:[%s0 + $0x68] sm:$0xf]
  %v50 = vld [vmem:[%s0 + $0x6c] sm:$0xf]
  %v51 = vld [vmem:[%s0 + $0x70] sm:$0xf]
  %v52 = vld [vmem:[%s0 + $0x74] sm:$0xf]
  %v53 = vld [vmem:[%s0 + $0x78] sm:$0xf]
  %v54 = vld [vmem:[%s0 + $0x7c] sm:$0xf]
  %v55 = vunpack.c.l.bf16 %v23
  %v56 = vunpack.c.l.bf16 %v24
  %v57 = vunpack.c.l.bf16 %v25
  %v58 = vunpack.c.l.bf16 %v26
  %v59 = vunpack.c.l.bf16 %v27
  %v60 = vunpack.c.l.bf16 %v28
  %v61 = vunpack.c.l.bf16 %v29
  %v62 = vunpack.c.l.bf16 %v30
  %v63 = vunpack.c.l.bf16 %v31
  %v64 = vunpack.c.l.bf16 %v32
  %v65 = vunpack.c.l.bf16 %v33
  %v66 = vunpack.c.l.bf16 %v34
  %v67 = vunpack.c.l.bf16 %v35
  %v68 = vunpack.c.l.bf16 %v36
  %v69 = vunpack.c.l.bf16 %v37
  %v70 = vunpack.c.l.bf16 %v38
  %v71 = vunpack.c.l.bf16 %v39
  %v72 = vunpack.c.l.bf16 %v40
  %v73 = vunpack.c.l.bf16 %v41
  %v74 = vunpack.c.l.bf16 %v42
  %v75 = vunpack.c.l.bf16 %v43
  %v76 = vunpack.c.l.bf16 %v44
  %v77 = vunpack.c.l.bf16 %v45
  %v78 = vunpack.c.l.bf16 %v46
  %v79 = vunpack.c.l.bf16 %v47
  %v80 = vunpack.c.l.bf16 %v48
  %v81 = vunpack.c.l.bf16 %v49
  %v82 = vunpack.c.l.bf16 %v50
  %v83 = vunpack.c.l.bf16 %v51
  %v84 = vunpack.c.l.bf16 %v52
  %v85 = vunpack.c.l.bf16 %v53
  %v86 = vunpack.c.l.bf16 %v54
  %v87 = vld [vmem:[%s1] sm:$0xff]
  %v88 = vld [vmem:[%s1 + $0x8] sm:$0xff]
  %v89 = vld [vmem:[%s1 + $0x10] sm:$0xff]
  %v90 = vld [vmem:[%s1 + $0x18] sm:$0xff]
  %v91 = vld [vmem:[%s1 + $0x20] sm:$0xff]
  %v92 = vld [vmem:[%s1 + $0x28] sm:$0xff]
  %v93 = vld [vmem:[%s1 + $0x30] sm:$0xff]
  %v94 = vld [vmem:[%s1 + $0x38] sm:$0xff]
  %v95 = vld [vmem:[%s1 + $0x40] sm:$0xff]
  %v96 = vld [vmem:[%s1 + $0x48] sm:$0xff]
  %v97 = vld [vmem:[%s1 + $0x50] sm:$0xff]
  %v98 = vld [vmem:[%s1 + $0x58] sm:$0xff]
  %v99 = vld [vmem:[%s1 + $0x60] sm:$0xff]
  %v100 = vld [vmem:[%s1 + $0x68] sm:$0xff]
  %v101 = vld [vmem:[%s1 + $0x70] sm:$0xff]
  %v102 = vld [vmem:[%s1 + $0x78] sm:$0xff]
  %v103 = vld [vmem:[%s1 + $0x80] sm:$0xff]
  %v104 = vld [vmem:[%s1 + $0x88] sm:$0xff]
  %v105 = vld [vmem:[%s1 + $0x90] sm:$0xff]
  %v106 = vld [vmem:[%s1 + $0x98] sm:$0xff]
  %v107 = vld [vmem:[%s1 + $0xa0] sm:$0xff]
  %v108 = vld [vmem:[%s1 + $0xa8] sm:$0xff]
  %v109 = vld [vmem:[%s1 + $0xb0] sm:$0xff]
  %v110 = vld [vmem:[%s1 + $0xb8] sm:$0xff]
  %v111 = vld [vmem:[%s1 + $0xc0] sm:$0xff]
  %v112 = vld [vmem:[%s1 + $0xc8] sm:$0xff]
  %v113 = vld [vmem:[%s1 + $0xd0] sm:$0xff]
  %v114 = vld [vmem:[%s1 + $0xd8] sm:$0xff]
  %v115 = vld [vmem:[%s1 + $0xe0] sm:$0xff]
  %v116 = vld [vmem:[%s1 + $0xe8] sm:$0xff]
  %v117 = vld [vmem:[%s1 + $0xf0] sm:$0xff]
  %v118 = vld [vmem:[%s1 + $0xf8] sm:$0xff]
  %v119 = vld [vmem:[%s2] sm:$0xff]
  %v120 = vld [vmem:[%s2 + $0x8] sm:$0xff]
  %v121 = vld [vmem:[%s2 + $0x10] sm:$0xff]
  %v122 = vld [vmem:[%s2 + $0x18] sm:$0xff]
  %v123 = vld [vmem:[%s2 + $0x20] sm:$0xff]
  %v124 = vld [vmem:[%s2 + $0x28] sm:$0xff]
  %v125 = vld [vmem:[%s2 + $0x30] sm:$0xff]
  %v126 = vld [vmem:[%s2 + $0x38] sm:$0xff]
  %v127 = vld [vmem:[%s2 + $0x40] sm:$0xff]
  %v128 = vld [vmem:[%s2 + $0x48] sm:$0xff]
  %v129 = vld [vmem:[%s2 + $0x50] sm:$0xff]
  %v130 = vld [vmem:[%s2 + $0x58] sm:$0xff]
  %v131 = vld [vmem:[%s2 + $0x60] sm:$0xff]
  %v132 = vld [vmem:[%s2 + $0x68] sm:$0xff]
  %v133 = vld [vmem:[%s2 + $0x70] sm:$0xff]
  %v134 = vld [vmem:[%s2 + $0x78] sm:$0xff]
  %v135 = vld [vmem:[%s2 + $0x80] sm:$0xff]
  %v136 = vld [vmem:[%s2 + $0x88] sm:$0xff]
  %v137 = vld [vmem:[%s2 + $0x90] sm:$0xff]
  %v138 = vld [vmem:[%s2 + $0x98] sm:$0xff]
  %v139 = vld [vmem:[%s2 + $0xa0] sm:$0xff]
  %v140 = vld [vmem:[%s2 + $0xa8] sm:$0xff]
  %v141 = vld [vmem:[%s2 + $0xb0] sm:$0xff]
  %v142 = vld [vmem:[%s2 + $0xb8] sm:$0xff]
  %v143 = vld [vmem:[%s2 + $0xc0] sm:$0xff]
  %v144 = vld [vmem:[%s2 + $0xc8] sm:$0xff]
  %v145 = vld [vmem:[%s2 + $0xd0] sm:$0xff]
  %v146 = vld [vmem:[%s2 + $0xd8] sm:$0xff]
  %v147 = vld [vmem:[%s2 + $0xe0] sm:$0xff]
  %v148 = vld [vmem:[%s2 + $0xe8] sm:$0xff]
  %v149 = vld [vmem:[%s2 + $0xf0] sm:$0xff]
  %v150 = vld [vmem:[%s2 + $0xf8] sm:$0xff]
  %152 = vset.pattern.permute.xlu0 0
  %153 = vperm.xlu0 %152, %v87
  %v154 = vpop.permute.xlu0 %153
  %157 = vset.pattern.permute.xlu0 0
  %158 = vperm.xlu0 %157, %v88
  %v159 = vpop.permute.xlu0 %158
  %162 = vset.pattern.permute.xlu0 0
  %163 = vperm.xlu0 %162, %v89
  %v164 = vpop.permute.xlu0 %163
  %167 = vset.pattern.permute.xlu0 0
  %168 = vperm.xlu0 %167, %v90
  %v169 = vpop.permute.xlu0 %168
  %172 = vset.pattern.permute.xlu0 0
  %173 = vperm.xlu0 %172, %v91
  %v174 = vpop.permute.xlu0 %173
  %177 = vset.pattern.permute.xlu0 0
  %178 = vperm.xlu0 %177, %v92
  %v179 = vpop.permute.xlu0 %178
  %182 = vset.pattern.permute.xlu0 0
  %183 = vperm.xlu0 %182, %v93
  %v184 = vpop.permute.xlu0 %183
  %187 = vset.pattern.permute.xlu0 0
  %188 = vperm.xlu0 %187, %v94
  %v189 = vpop.permute.xlu0 %188
  %192 = vset.pattern.permute.xlu0 0
  %193 = vperm.xlu0 %192, %v95
  %v194 = vpop.permute.xlu0 %193
  %197 = vset.pattern.permute.xlu0 0
  %198 = vperm.xlu0 %197, %v96
  %v199 = vpop.permute.xlu0 %198
  %202 = vset.pattern.permute.xlu0 0
  %203 = vperm.xlu0 %202, %v97
  %v204 = vpop.permute.xlu0 %203
  %207 = vset.pattern.permute.xlu0 0
  %208 = vperm.xlu0 %207, %v98
  %v209 = vpop.permute.xlu0 %208
  %212 = vset.pattern.permute.xlu0 0
  %213 = vperm.xlu0 %212, %v99
  %v214 = vpop.permute.xlu0 %213
  %217 = vset.pattern.permute.xlu0 0
  %218 = vperm.xlu0 %217, %v100
  %v219 = vpop.permute.xlu0 %218
  %222 = vset.pattern.permute.xlu0 0
  %223 = vperm.xlu0 %222, %v101
  %v224 = vpop.permute.xlu0 %223
  %227 = vset.pattern.permute.xlu0 0
  %228 = vperm.xlu0 %227, %v102
  %v229 = vpop.permute.xlu0 %228
  %232 = vset.pattern.permute.xlu0 0
  %233 = vperm.xlu0 %232, %v103
  %v234 = vpop.permute.xlu0 %233
  %237 = vset.pattern.permute.xlu0 0
  %238 = vperm.xlu0 %237, %v104
  %v239 = vpop.permute.xlu0 %238
  %242 = vset.pattern.permute.xlu0 0
  %243 = vperm.xlu0 %242, %v105
  %v244 = vpop.permute.xlu0 %243
  %247 = vset.pattern.permute.xlu0 0
  %248 = vperm.xlu0 %247, %v106
  %v249 = vpop.permute.xlu0 %248
  %252 = vset.pattern.permute.xlu0 0
  %253 = vperm.xlu0 %252, %v107
  %v254 = vpop.permute.xlu0 %253
  %257 = vset.pattern.permute.xlu0 0
  %258 = vperm.xlu0 %257, %v108
  %v259 = vpop.permute.xlu0 %258
  %262 = vset.pattern.permute.xlu0 0
  %263 = vperm.xlu0 %262, %v109
  %v264 = vpop.permute.xlu0 %263
  %267 = vset.pattern.permute.xlu0 0
  %268 = vperm.xlu0 %267, %v110
  %v269 = vpop.permute.xlu0 %268
  %272 = vset.pattern.permute.xlu0 0
  %273 = vperm.xlu0 %272, %v111
  %v274 = vpop.permute.xlu0 %273
  %277 = vset.pattern.permute.xlu0 0
  %278 = vperm.xlu0 %277, %v112
  %v279 = vpop.permute.xlu0 %278
  %282 = vset.pattern.permute.xlu0 0
  %283 = vperm.xlu0 %282, %v113
  %v284 = vpop.permute.xlu0 %283
  %287 = vset.pattern.permute.xlu0 0
  %288 = vperm.xlu0 %287, %v114
  %v289 = vpop.permute.xlu0 %288
  %292 = vset.pattern.permute.xlu0 0
  %293 = vperm.xlu0 %292, %v115
  %v294 = vpop.permute.xlu0 %293
  %297 = vset.pattern.permute.xlu0 0
  %298 = vperm.xlu0 %297, %v116
  %v299 = vpop.permute.xlu0 %298
  %302 = vset.pattern.permute.xlu0 0
  %303 = vperm.xlu0 %302, %v117
  %v304 = vpop.permute.xlu0 %303
  %307 = vset.pattern.permute.xlu0 0
  %308 = vperm.xlu0 %307, %v118
  %v309 = vpop.permute.xlu0 %308
  %v311 = vmul.f32 %v55, %v154
  %v312 = vmul.f32 %v56, %v159
  %v313 = vmul.f32 %v57, %v164
  %v314 = vmul.f32 %v58, %v169
  %v315 = vmul.f32 %v59, %v174
  %v316 = vmul.f32 %v60, %v179
  %v317 = vmul.f32 %v61, %v184
  %v318 = vmul.f32 %v62, %v189
  %v319 = vmul.f32 %v63, %v194
  %v320 = vmul.f32 %v64, %v199
  %v321 = vmul.f32 %v65, %v204
  %v322 = vmul.f32 %v66, %v209
  %v323 = vmul.f32 %v67, %v214
  %v324 = vmul.f32 %v68, %v219
  %v325 = vmul.f32 %v69, %v224
  %v326 = vmul.f32 %v70, %v229
  %v327 = vmul.f32 %v71, %v234
  %v328 = vmul.f32 %v72, %v239
  %v329 = vmul.f32 %v73, %v244
  %v330 = vmul.f32 %v74, %v249
  %v331 = vmul.f32 %v75, %v254
  %v332 = vmul.f32 %v76, %v259
  %v333 = vmul.f32 %v77, %v264
  %v334 = vmul.f32 %v78, %v269
  %v335 = vmul.f32 %v79, %v274
  %v336 = vmul.f32 %v80, %v279
  %v337 = vmul.f32 %v81, %v284
  %v338 = vmul.f32 %v82, %v289
  %v339 = vmul.f32 %v83, %v294
  %v340 = vmul.f32 %v84, %v299
  %v341 = vmul.f32 %v85, %v304
  %v342 = vmul.f32 %v86, %v309
  %v343 = vpack.c.bf16 %v312, %v311
  %v344 = vpack.c.bf16 %v314, %v313
  %v345 = vpack.c.bf16 %v316, %v315
  %v346 = vpack.c.bf16 %v318, %v317
  %v347 = vpack.c.bf16 %v320, %v319
  %v348 = vpack.c.bf16 %v322, %v321
  %v349 = vpack.c.bf16 %v324, %v323
  %v350 = vpack.c.bf16 %v326, %v325
  %v351 = vpack.c.bf16 %v328, %v327
  %v352 = vpack.c.bf16 %v330, %v329
  %v353 = vpack.c.bf16 %v332, %v331
  %v354 = vpack.c.bf16 %v334, %v333
  %v355 = vpack.c.bf16 %v336, %v335
  %v356 = vpack.c.bf16 %v338, %v337
  %v357 = vpack.c.bf16 %v340, %v339
  %v358 = vpack.c.bf16 %v342, %v341
  %v375 = vunpack.c.l.b16 %v343
  %v376 = vunpack.c.h.b16 %v343
  %v377 = vunpack.c.l.b16 %v344
  %v378 = vunpack.c.h.b16 %v344
  %v379 = vunpack.c.l.b16 %v345
  %v380 = vunpack.c.h.b16 %v345
  %v381 = vunpack.c.l.b16 %v346
  %v382 = vunpack.c.h.b16 %v346
  %v383 = vunpack.c.l.b16 %v347
  %v384 = vunpack.c.h.b16 %v347
  %v385 = vunpack.c.l.b16 %v348
  %v386 = vunpack.c.h.b16 %v348
  %v387 = vunpack.c.l.b16 %v349
  %v388 = vunpack.c.h.b16 %v349
  %v389 = vunpack.c.l.b16 %v350
  %v390 = vunpack.c.h.b16 %v350
  %v391 = vunpack.c.l.b16 %v351
  %v392 = vunpack.c.h.b16 %v351
  %v393 = vunpack.c.l.b16 %v352
  %v394 = vunpack.c.h.b16 %v352
  %v395 = vunpack.c.l.b16 %v353
  %v396 = vunpack.c.h.b16 %v353
  %v397 = vunpack.c.l.b16 %v354
  %v398 = vunpack.c.h.b16 %v354
  %v399 = vunpack.c.l.b16 %v355
  %v400 = vunpack.c.h.b16 %v355
  %v401 = vunpack.c.l.b16 %v356
  %v402 = vunpack.c.h.b16 %v356
  %v403 = vunpack.c.l.b16 %v357
  %v404 = vunpack.c.h.b16 %v357
  %v405 = vunpack.c.l.b16 %v358
  %v406 = vunpack.c.h.b16 %v358
  %v407 = vpack.c.b16 %v375, %v375
  %v408 = vpack.c.b16 %v376, %v376
  %v409 = vpack.c.b16 %v377, %v377
  %v410 = vpack.c.b16 %v378, %v378
  %v411 = vpack.c.b16 %v379, %v379
  %v412 = vpack.c.b16 %v380, %v380
  %v413 = vpack.c.b16 %v381, %v381
  %v414 = vpack.c.b16 %v382, %v382
  %v415 = vpack.c.b16 %v383, %v383
  %v416 = vpack.c.b16 %v384, %v384
  %v417 = vpack.c.b16 %v385, %v385
  %v418 = vpack.c.b16 %v386, %v386
  %v419 = vpack.c.b16 %v387, %v387
  %v420 = vpack.c.b16 %v388, %v388
  %v421 = vpack.c.b16 %v389, %v389
  %v422 = vpack.c.b16 %v390, %v390
  %v423 = vpack.c.b16 %v391, %v391
  %v424 = vpack.c.b16 %v392, %v392
  %v425 = vpack.c.b16 %v393, %v393
  %v426 = vpack.c.b16 %v394, %v394
  %v427 = vpack.c.b16 %v395, %v395
  %v428 = vpack.c.b16 %v396, %v396
  %v429 = vpack.c.b16 %v397, %v397
  %v430 = vpack.c.b16 %v398, %v398
  %v431 = vpack.c.b16 %v399, %v399
  %v432 = vpack.c.b16 %v400, %v400
  %v433 = vpack.c.b16 %v401, %v401
  %v434 = vpack.c.b16 %v402, %v402
  %v435 = vpack.c.b16 %v403, %v403
  %v436 = vpack.c.b16 %v404, %v404
  %v437 = vpack.c.b16 %v405, %v405
  %v438 = vpack.c.b16 %v406, %v406
  %471 = vst [vmem:[%s3] sm:$0xf] %v407
  %472 = vst [vmem:[%s3 + $0x4] sm:$0xf] %v408
  %473 = vst [vmem:[%s3 + $0x8] sm:$0xf] %v409
  %474 = vst [vmem:[%s3 + $0xc] sm:$0xf] %v410
  %475 = vst [vmem:[%s3 + $0x10] sm:$0xf] %v411
  %476 = vst [vmem:[%s3 + $0x14] sm:$0xf] %v412
  %477 = vst [vmem:[%s3 + $0x18] sm:$0xf] %v413
  %478 = vst [vmem:[%s3 + $0x1c] sm:$0xf] %v414
  %479 = vst [vmem:[%s3 + $0x20] sm:$0xf] %v415
  %480 = vst [vmem:[%s3 + $0x24] sm:$0xf] %v416
  %481 = vst [vmem:[%s3 + $0x28] sm:$0xf] %v417
  %482 = vst [vmem:[%s3 + $0x2c] sm:$0xf] %v418
  %483 = vst [vmem:[%s3 + $0x30] sm:$0xf] %v419
  %484 = vst [vmem:[%s3 + $0x34] sm:$0xf] %v420
  %485 = vst [vmem:[%s3 + $0x38] sm:$0xf] %v421
  %486 = vst [vmem:[%s3 + $0x3c] sm:$0xf] %v422
  %487 = vst [vmem:[%s3 + $0x40] sm:$0xf] %v423
  %488 = vst [vmem:[%s3 + $0x44] sm:$0xf] %v424
  %489 = vst [vmem:[%s3 + $0x48] sm:$0xf] %v425
  %490 = vst [vmem:[%s3 + $0x4c] sm:$0xf] %v426
  %491 = vst [vmem:[%s3 + $0x50] sm:$0xf] %v427
  %492 = vst [vmem:[%s3 + $0x54] sm:$0xf] %v428
  %493 = vst [vmem:[%s3 + $0x58] sm:$0xf] %v429
  %494 = vst [vmem:[%s3 + $0x5c] sm:$0xf] %v430
  %495 = vst [vmem:[%s3 + $0x60] sm:$0xf] %v431
  %496 = vst [vmem:[%s3 + $0x64] sm:$0xf] %v432
  %497 = vst [vmem:[%s3 + $0x68] sm:$0xf] %v433
  %498 = vst [vmem:[%s3 + $0x6c] sm:$0xf] %v434
  %499 = vst [vmem:[%s3 + $0x70] sm:$0xf] %v435
  %500 = vst [vmem:[%s3 + $0x74] sm:$0xf] %v436
  %501 = vst [vmem:[%s3 + $0x78] sm:$0xf] %v437
  %502 = vst [vmem:[%s3 + $0x7c] sm:$0xf] %v438
  %vm503 = vcmp.gt.f32.partialorder %v119, 0.0
  %vm504 = vcmp.gt.f32.partialorder %v120, 0.0
  %vm505 = vcmp.gt.f32.partialorder %v121, 0.0
  %vm506 = vcmp.gt.f32.partialorder %v122, 0.0
  %vm507 = vcmp.gt.f32.partialorder %v123, 0.0
  %vm508 = vcmp.gt.f32.partialorder %v124, 0.0
  %vm509 = vcmp.gt.f32.partialorder %v125, 0.0
  %vm510 = vcmp.gt.f32.partialorder %v126, 0.0
  %vm511 = vcmp.gt.f32.partialorder %v127, 0.0
  %vm512 = vcmp.gt.f32.partialorder %v128, 0.0
  %vm513 = vcmp.gt.f32.partialorder %v129, 0.0
  %vm514 = vcmp.gt.f32.partialorder %v130, 0.0
  %vm515 = vcmp.gt.f32.partialorder %v131, 0.0
  %vm516 = vcmp.gt.f32.partialorder %v132, 0.0
  %vm517 = vcmp.gt.f32.partialorder %v133, 0.0
  %vm518 = vcmp.gt.f32.partialorder %v134, 0.0
  %vm519 = vcmp.gt.f32.partialorder %v135, 0.0
  %vm520 = vcmp.gt.f32.partialorder %v136, 0.0
  %vm521 = vcmp.gt.f32.partialorder %v137, 0.0
  %vm522 = vcmp.gt.f32.partialorder %v138, 0.0
  %vm523 = vcmp.gt.f32.partialorder %v139, 0.0
  %vm524 = vcmp.gt.f32.partialorder %v140, 0.0
  %vm525 = vcmp.gt.f32.partialorder %v141, 0.0
  %vm526 = vcmp.gt.f32.partialorder %v142, 0.0
  %vm527 = vcmp.gt.f32.partialorder %v143, 0.0
  %vm528 = vcmp.gt.f32.partialorder %v144, 0.0
  %vm529 = vcmp.gt.f32.partialorder %v145, 0.0
  %vm530 = vcmp.gt.f32.partialorder %v146, 0.0
  %vm531 = vcmp.gt.f32.partialorder %v147, 0.0
  %vm532 = vcmp.gt.f32.partialorder %v148, 0.0
  %vm533 = vcmp.gt.f32.partialorder %v149, 0.0
  %vm534 = vcmp.gt.f32.partialorder %v150, 0.0
  %v535 = vsel %vm503, 1, 0
  %v536 = vsel %vm504, 1, 0
  %v537 = vsel %vm505, 1, 0
  %v538 = vsel %vm506, 1, 0
  %v539 = vsel %vm507, 1, 0
  %v540 = vsel %vm508, 1, 0
  %v541 = vsel %vm509, 1, 0
  %v542 = vsel %vm510, 1, 0
  %v543 = vsel %vm511, 1, 0
  %v544 = vsel %vm512, 1, 0
  %v545 = vsel %vm513, 1, 0
  %v546 = vsel %vm514, 1, 0
  %v547 = vsel %vm515, 1, 0
  %v548 = vsel %vm516, 1, 0
  %v549 = vsel %vm517, 1, 0
  %v550 = vsel %vm518, 1, 0
  %v551 = vsel %vm519, 1, 0
  %v552 = vsel %vm520, 1, 0
  %v553 = vsel %vm521, 1, 0
  %v554 = vsel %vm522, 1, 0
  %v555 = vsel %vm523, 1, 0
  %v556 = vsel %vm524, 1, 0
  %v557 = vsel %vm525, 1, 0
  %v558 = vsel %vm526, 1, 0
  %v559 = vsel %vm527, 1, 0
  %v560 = vsel %vm528, 1, 0
  %v561 = vsel %vm529, 1, 0
  %v562 = vsel %vm530, 1, 0
  %v563 = vsel %vm531, 1, 0
  %v564 = vsel %vm532, 1, 0
  %v565 = vsel %vm533, 1, 0
  %v566 = vsel %vm534, 1, 0
  %567 = vset.pattern.permute.xlu0 0
  %568 = vperm.xlu0 %567, %v535
  %v569 = vpop.permute.xlu0 %568
  %570 = vset.pattern.permute.xlu0 0
  %571 = vperm.xlu0 %570, %v536
  %v572 = vpop.permute.xlu0 %571
  %573 = vset.pattern.permute.xlu0 0
  %574 = vperm.xlu0 %573, %v537
  %v575 = vpop.permute.xlu0 %574
  %576 = vset.pattern.permute.xlu0 0
  %577 = vperm.xlu0 %576, %v538
  %v578 = vpop.permute.xlu0 %577
  %579 = vset.pattern.permute.xlu0 0
  %580 = vperm.xlu0 %579, %v539
  %v581 = vpop.permute.xlu0 %580
  %582 = vset.pattern.permute.xlu0 0
  %583 = vperm.xlu0 %582, %v540
  %v584 = vpop.permute.xlu0 %583
  %585 = vset.pattern.permute.xlu0 0
  %586 = vperm.xlu0 %585, %v541
  %v587 = vpop.permute.xlu0 %586
  %588 = vset.pattern.permute.xlu0 0
  %589 = vperm.xlu0 %588, %v542
  %v590 = vpop.permute.xlu0 %589
  %591 = vset.pattern.permute.xlu0 0
  %592 = vperm.xlu0 %591, %v543
  %v593 = vpop.permute.xlu0 %592
  %594 = vset.pattern.permute.xlu0 0
  %595 = vperm.xlu0 %594, %v544
  %v596 = vpop.permute.xlu0 %595
  %597 = vset.pattern.permute.xlu0 0
  %598 = vperm.xlu0 %597, %v545
  %v599 = vpop.permute.xlu0 %598
  %600 = vset.pattern.permute.xlu0 0
  %601 = vperm.xlu0 %600, %v546
  %v602 = vpop.permute.xlu0 %601
  %603 = vset.pattern.permute.xlu0 0
  %604 = vperm.xlu0 %603, %v547
  %v605 = vpop.permute.xlu0 %604
  %606 = vset.pattern.permute.xlu0 0
  %607 = vperm.xlu0 %606, %v548
  %v608 = vpop.permute.xlu0 %607
  %609 = vset.pattern.permute.xlu0 0
  %610 = vperm.xlu0 %609, %v549
  %v611 = vpop.permute.xlu0 %610
  %612 = vset.pattern.permute.xlu0 0
  %613 = vperm.xlu0 %612, %v550
  %v614 = vpop.permute.xlu0 %613
  %615 = vset.pattern.permute.xlu0 0
  %616 = vperm.xlu0 %615, %v551
  %v617 = vpop.permute.xlu0 %616
  %618 = vset.pattern.permute.xlu0 0
  %619 = vperm.xlu0 %618, %v552
  %v620 = vpop.permute.xlu0 %619
  %621 = vset.pattern.permute.xlu0 0
  %622 = vperm.xlu0 %621, %v553
  %v623 = vpop.permute.xlu0 %622
  %624 = vset.pattern.permute.xlu0 0
  %625 = vperm.xlu0 %624, %v554
  %v626 = vpop.permute.xlu0 %625
  %627 = vset.pattern.permute.xlu0 0
  %628 = vperm.xlu0 %627, %v555
  %v629 = vpop.permute.xlu0 %628
  %630 = vset.pattern.permute.xlu0 0
  %631 = vperm.xlu0 %630, %v556
  %v632 = vpop.permute.xlu0 %631
  %633 = vset.pattern.permute.xlu0 0
  %634 = vperm.xlu0 %633, %v557
  %v635 = vpop.permute.xlu0 %634
  %636 = vset.pattern.permute.xlu0 0
  %637 = vperm.xlu0 %636, %v558
  %v638 = vpop.permute.xlu0 %637
  %639 = vset.pattern.permute.xlu0 0
  %640 = vperm.xlu0 %639, %v559
  %v641 = vpop.permute.xlu0 %640
  %642 = vset.pattern.permute.xlu0 0
  %643 = vperm.xlu0 %642, %v560
  %v644 = vpop.permute.xlu0 %643
  %645 = vset.pattern.permute.xlu0 0
  %646 = vperm.xlu0 %645, %v561
  %v647 = vpop.permute.xlu0 %646
  %648 = vset.pattern.permute.xlu0 0
  %649 = vperm.xlu0 %648, %v562
  %v650 = vpop.permute.xlu0 %649
  %651 = vset.pattern.permute.xlu0 0
  %652 = vperm.xlu0 %651, %v563
  %v653 = vpop.permute.xlu0 %652
  %654 = vset.pattern.permute.xlu0 0
  %655 = vperm.xlu0 %654, %v564
  %v656 = vpop.permute.xlu0 %655
  %657 = vset.pattern.permute.xlu0 0
  %658 = vperm.xlu0 %657, %v565
  %v659 = vpop.permute.xlu0 %658
  %660 = vset.pattern.permute.xlu0 0
  %661 = vperm.xlu0 %660, %v566
  %v662 = vpop.permute.xlu0 %661
  %vm663 = vcmp.eq.s32.totalorder %v569, 1
  %vm664 = vcmp.eq.s32.totalorder %v572, 1
  %vm665 = vcmp.eq.s32.totalorder %v575, 1
  %vm666 = vcmp.eq.s32.totalorder %v578, 1
  %vm667 = vcmp.eq.s32.totalorder %v581, 1
  %vm668 = vcmp.eq.s32.totalorder %v584, 1
  %vm669 = vcmp.eq.s32.totalorder %v587, 1
  %vm670 = vcmp.eq.s32.totalorder %v590, 1
  %vm671 = vcmp.eq.s32.totalorder %v593, 1
  %vm672 = vcmp.eq.s32.totalorder %v596, 1
  %vm673 = vcmp.eq.s32.totalorder %v599, 1
  %vm674 = vcmp.eq.s32.totalorder %v602, 1
  %vm675 = vcmp.eq.s32.totalorder %v605, 1
  %vm676 = vcmp.eq.s32.totalorder %v608, 1
  %vm677 = vcmp.eq.s32.totalorder %v611, 1
  %vm678 = vcmp.eq.s32.totalorder %v614, 1
  %vm679 = vcmp.eq.s32.totalorder %v617, 1
  %vm680 = vcmp.eq.s32.totalorder %v620, 1
  %vm681 = vcmp.eq.s32.totalorder %v623, 1
  %vm682 = vcmp.eq.s32.totalorder %v626, 1
  %vm683 = vcmp.eq.s32.totalorder %v629, 1
  %vm684 = vcmp.eq.s32.totalorder %v632, 1
  %vm685 = vcmp.eq.s32.totalorder %v635, 1
  %vm686 = vcmp.eq.s32.totalorder %v638, 1
  %vm687 = vcmp.eq.s32.totalorder %v641, 1
  %vm688 = vcmp.eq.s32.totalorder %v644, 1
  %vm689 = vcmp.eq.s32.totalorder %v647, 1
  %vm690 = vcmp.eq.s32.totalorder %v650, 1
  %vm691 = vcmp.eq.s32.totalorder %v653, 1
  %vm692 = vcmp.eq.s32.totalorder %v656, 1
  %vm693 = vcmp.eq.s32.totalorder %v659, 1
  %vm694 = vcmp.eq.s32.totalorder %v662, 1
  %v695 = vsel %vm663, %v311, -inf
  %v696 = vsel %vm664, %v312, -inf
  %v697 = vsel %vm665, %v313, -inf
  %v698 = vsel %vm666, %v314, -inf
  %v699 = vsel %vm667, %v315, -inf
  %v700 = vsel %vm668, %v316, -inf
  %v701 = vsel %vm669, %v317, -inf
  %v702 = vsel %vm670, %v318, -inf
  %v703 = vsel %vm671, %v319, -inf
  %v704 = vsel %vm672, %v320, -inf
  %v705 = vsel %vm673, %v321, -inf
  %v706 = vsel %vm674, %v322, -inf
  %v707 = vsel %vm675, %v323, -inf
  %v708 = vsel %vm676, %v324, -inf
  %v709 = vsel %vm677, %v325, -inf
  %v710 = vsel %vm678, %v326, -inf
  %v711 = vsel %vm679, %v327, -inf
  %v712 = vsel %vm680, %v328, -inf
  %v713 = vsel %vm681, %v329, -inf
  %v714 = vsel %vm682, %v330, -inf
  %v715 = vsel %vm683, %v331, -inf
  %v716 = vsel %vm684, %v332, -inf
  %v717 = vsel %vm685, %v333, -inf
  %v718 = vsel %vm686, %v334, -inf
  %v719 = vsel %vm687, %v335, -inf
  %v720 = vsel %vm688, %v336, -inf
  %v721 = vsel %vm689, %v337, -inf
  %v722 = vsel %vm690, %v338, -inf
  %v723 = vsel %vm691, %v339, -inf
  %v724 = vsel %vm692, %v340, -inf
  %v725 = vsel %vm693, %v341, -inf
  %v726 = vsel %vm694, %v342, -inf
  %v727 = vld [vmem:[#allocation2] sm:$0x1]
  %v728 = vmax.f32 %v695, %v699
  %v729 = vmax.f32 %v696, %v700
  %v730 = vmax.f32 %v697, %v701
  %v731 = vmax.f32 %v698, %v702
  %v732 = vmax.f32 %v728, %v703
  %v733 = vmax.f32 %v729, %v704
  %v734 = vmax.f32 %v730, %v705
  %v735 = vmax.f32 %v731, %v706
  %v736 = vmax.f32 %v732, %v707
  %v737 = vmax.f32 %v733, %v708
  %v738 = vmax.f32 %v734, %v709
  %v739 = vmax.f32 %v735, %v710
  %v740 = vmax.f32 %v736, %v711
  %v741 = vmax.f32 %v737, %v712
  %v742 = vmax.f32 %v738, %v713
  %v743 = vmax.f32 %v739, %v714
  %v744 = vmax.f32 %v740, %v715
  %v745 = vmax.f32 %v741, %v716
  %v746 = vmax.f32 %v742, %v717
  %v747 = vmax.f32 %v743, %v718
  %v748 = vmax.f32 %v744, %v719
  %v749 = vmax.f32 %v745, %v720
  %v750 = vmax.f32 %v746, %v721
  %v751 = vmax.f32 %v747, %v722
  %v752 = vmax.f32 %v748, %v723
  %v753 = vmax.f32 %v749, %v724
  %v754 = vmax.f32 %v750, %v725
  %v755 = vmax.f32 %v751, %v726
  %v756 = vmax.f32 %v752, %v753
  %v757 = vmax.f32 %v754, %v755
  %v758 = vmax.f32 %v756, %v757
  %v759 = vrot.slane %v758, 4
  %v760 = vmax.f32 %v758, %v759
  %v761 = vrot.slane %v760, 2
  %v762 = vmax.f32 %v760, %v761
  %v763 = vrot.slane %v762, 1
  %v764 = vmax.f32 %v762, %v763
  %v765 = vmax.f32 %v727, %v764
  %766 = vst [vmem:[#allocation2] sm:$0x1] %v765
  %v767 = vld [vmem:[#allocation3] sm:$0x1]
  %v768 = vadd.f32 %v311, %v312
  %v769 = vadd.f32 %v768, %v313
  %v770 = vadd.f32 %v769, %v314
  %v771 = vadd.f32 %v770, %v315
  %v772 = vadd.f32 %v771, %v316
  %v773 = vadd.f32 %v772, %v317
  %v774 = vadd.f32 %v773, %v318
  %v775 = vadd.f32 %v774, %v319
  %v776 = vadd.f32 %v775, %v320
  %v777 = vadd.f32 %v776, %v321
  %v778 = vadd.f32 %v777, %v322
  %v779 = vadd.f32 %v778, %v323
  %v780 = vadd.f32 %v779, %v324
  %v781 = vadd.f32 %v780, %v325
  %v782 = vadd.f32 %v781, %v326
  %v783 = vadd.f32 %v782, %v327
  %v784 = vadd.f32 %v783, %v328
  %v785 = vadd.f32 %v784, %v329
  %v786 = vadd.f32 %v785, %v330
  %v787 = vadd.f32 %v786, %v331
  %v788 = vadd.f32 %v787, %v332
  %v789 = vadd.f32 %v788, %v333
  %v790 = vadd.f32 %v789, %v334
  %v791 = vadd.f32 %v790, %v335
  %v792 = vadd.f32 %v791, %v336
  %v793 = vadd.f32 %v792, %v337
  %v794 = vadd.f32 %v793, %v338
  %v795 = vadd.f32 %v794, %v339
  %v796 = vadd.f32 %v795, %v340
  %v797 = vadd.f32 %v796, %v341
  %v798 = vadd.f32 %v797, %v342
  %v799 = vrot.slane %v798, 4
  %v800 = vadd.f32 %v798, %v799
  %v801 = vrot.slane %v800, 2
  %v802 = vadd.f32 %v800, %v801
  %v803 = vrot.slane %v802, 1
  %v804 = vadd.f32 %v802, %v803
  %v805 = vadd.f32 %v767, %v804
  %806 = vst [vmem:[#allocation3] sm:$0x1] %v805
  // Predicated region
  $region18: #{_lambda_.6} parent=0 // pred_check
    %p807 = pneg %p17
  $region19: #{_lambda_.6} parent=0 // pred_check_branch
    %809 = sbr.rel (%p807) target = $region21
  $region20: #{_lambda_.6} parent=0 // pred_region
    %v810 = vld [vmem:[#allocation2] sm:$0x1]
    %811 = vst [vmem:[%s4] sm:$0x1] %v810
    %v812 = vld [vmem:[#allocation3] sm:$0x1]
    %813 = vst [vmem:[%s5] sm:$0x1] %v812
  $region21: #{_lambda_.6} parent=0 // pred_fallthru
    _
  // Predicated region
  $region22: #{_lambda_.6} parent=0 // pred_check
    _
  $region23: #{_lambda_.6} parent=0 // pred_check_branch
    %815 = sbr.rel (0) target = $region25
  $region24: #{_lambda_.6} parent=0 // pred_region
    _
  $region25: #{_lambda_.6} parent=0 // pred_fallthru
    _
  // Predicated region
  $region26: #{_lambda_.6} parent=0 // pred_check
    _
  $region27: #{_lambda_.6} parent=0 // pred_check_branch
    %817 = sbr.rel (0) target = $region29
  $region28: #{_lambda_.6} parent=0 // pred_region
    _
  $region29: #{_lambda_.6} parent=0 // pred_fallthru
    _
  // Predicated region
  $region30: #{_lambda_.6} parent=0 // pred_check
    _
  $region31: #{_lambda_.6} parent=0 // pred_check_branch
    %819 = sbr.rel (0) target = $region33
  $region32: #{_lambda_.6} parent=0 // pred_region
    _
  $region33: #{_lambda_.6} parent=0 // pred_fallthru
    _
  // Predicated region
  $region34: #{_lambda_.6} parent=0 // pred_check
    _
  $region35: #{_lambda_.6} parent=0 // pred_check_branch
    %821 = sbr.rel (0) target = $region37
  $region36: #{_lambda_.6} parent=0 // pred_region
    _
  $region37: #{_lambda_.6} parent=0 // pred_fallthru
    _
  // Predicated region
  $region38: #{_lambda_.6} parent=0 // pred_check
    _
  $region39: #{_lambda_.6} parent=0 // pred_check_branch
    %823 = sbr.rel (0) target = $region41
  $region40: #{_lambda_.6} parent=0 // pred_region
    _
  $region41: #{_lambda_.6} parent=0 // pred_fallthru
    _
  // Predicated region
  $region42: #{_lambda_.6} parent=0 // pred_check
    _
  $region43: #{_lambda_.6} parent=0 // pred_check_branch
    %825 = sbr.rel (0) target = $region45
  $region44: #{_lambda_.6} parent=0 // pred_region
    _
  $region45: #{_lambda_.6} parent=0 // pred_fallthru
    _

// kernel: _lambda_.8
$region0: #{_lambda_.8}
  #allocation0 [shape = 'u32[]', space=smem, size = 0x4, offset = 0x4, fixed_abs, tag = 'smem constant byte address 0x4 - core index']
  #allocation1 [shape = 'u32[144,128]{1,0:T(1,128)}', space=vmem, size = 0x12000, scoped, tag = 'internal scratch']
  #allocation2 [shape = 'f32[1,128]{1,0:T(1,128)}', space=vmem, size = 0x200, scoped, tag = 'scratch operand']
  #allocation3 [shape = 'f32[1,128]{1,0:T(1,128)}', space=vmem, size = 0x200, scoped, tag = 'scratch operand']
  %s0 = inlined_call_operand.vmem [shape: bf16[256,128], index: 0, kind: input, shape index: {}]
  %s1 = inlined_call_operand.vmem [shape: f32[256,1], index: 1, kind: input, shape index: {}]
  %s2 = inlined_call_operand.vmem [shape: f32[256,1], index: 2, kind: input, shape index: {}]
  %s3 = inlined_call_operand.hbm [shape: bf16[256,128], index: 3, kind: output, shape index: {0}]
  %s4 = inlined_call_operand.vmem [shape: f32[1,128], index: 4, kind: output, shape index: {1}]
  %s5 = inlined_call_operand.vmem [shape: f32[1,128], index: 5, kind: output, shape index: {2}]
  %6 = xla_tuple %s3, %s4, %s5
  %s7 = sld [smem:[#allocation0]]
  $region46: #{_lambda_.8} parent=0
    _
  %s9 = ssub.s32 1, %s7
  %s10 = scalar_select 0, %s9, %s7
  $region1: #{_lambda_.8} parent=0
    #allocation4 [shape = 'u8[65536]{0}', space=vmem, size = 0x10000, scoped, tag = 'output window, operand 0, single buffered']
    #allocation5 [shape = 's32[1]{0}', space=sflag, size = 0x4, scoped, tag = 'scoped memory for _lambda_.8']
    %11 = vsyncpa [#allocation5], 0
    // Predicated region
    $region2: #{_lambda_.8} parent=1 // pred_check
      _
    $region3: #{_lambda_.8} parent=1 // pred_check_branch
      %13 = sbr.rel (0) target = $region5
    $region4: #{_lambda_.8} parent=1 // pred_region
      _
    $region5: #{_lambda_.8} parent=1 // pred_fallthru
      _
    // Predicated region
    $region6: #{_lambda_.8} parent=1 // pred_check
      _
    $region7: #{_lambda_.8} parent=1 // pred_check_branch
      %15 = sbr.rel (0) target = $region9
    $region8: #{_lambda_.8} parent=1 // pred_region
      _
    $region9: #{_lambda_.8} parent=1 // pred_fallthru
      _
    // Predicated region
    $region10: #{_lambda_.8} parent=1 // pred_check
      _
    $region11: #{_lambda_.8} parent=1 // pred_check_branch
      %17 = sbr.rel (0) target = $region13
    $region12: #{_lambda_.8} parent=1 // pred_region
      _
    $region13: #{_lambda_.8} parent=1 // pred_fallthru
      _
    %p18 = scmp.eq.s32.totalorder 0, 0
    // Predicated region
    $region14: #{_lambda_.8} parent=1 // pred_check
      %p19 = pneg %p18
    $region15: #{_lambda_.8} parent=1 // pred_check_branch
      %21 = sbr.rel (%p19) target = $region17
    $region16: #{_lambda_.8} parent=1 // pred_region
      %22 = vst [vmem:[#allocation2] sm:$0x1] -inf
      %23 = vst [vmem:[#allocation3] sm:$0x1] 0.0
    $region17: #{_lambda_.8} parent=1 // pred_fallthru
      _
    %v24 = vld [vmem:[%s0] sm:$0xf]
    %v25 = vld [vmem:[%s0 + $0x4] sm:$0xf]
    %v26 = vld [vmem:[%s0 + $0x8] sm:$0xf]
    %v27 = vld [vmem:[%s0 + $0xc] sm:$0xf]
    %v28 = vld [vmem:[%s0 + $0x10] sm:$0xf]
    %v29 = vld [vmem:[%s0 + $0x14] sm:$0xf]
    %v30 = vld [vmem:[%s0 + $0x18] sm:$0xf]
    %v31 = vld [vmem:[%s0 + $0x1c] sm:$0xf]
    %v32 = vld [vmem:[%s0 + $0x20] sm:$0xf]
    %v33 = vld [vmem:[%s0 + $0x24] sm:$0xf]
    %v34 = vld [vmem:[%s0 + $0x28] sm:$0xf]
    %v35 = vld [vmem:[%s0 + $0x2c] sm:$0xf]
    %v36 = vld [vmem:[%s0 + $0x30] sm:$0xf]
    %v37 = vld [vmem:[%s0 + $0x34] sm:$0xf]
    %v38 = vld [vmem:[%s0 + $0x38] sm:$0xf]
    %v39 = vld [vmem:[%s0 + $0x3c] sm:$0xf]
    %v40 = vld [vmem:[%s0 + $0x40] sm:$0xf]
    %v41 = vld [vmem:[%s0 + $0x44] sm:$0xf]
    %v42 = vld [vmem:[%s0 + $0x48] sm:$0xf]
    %v43 = vld [vmem:[%s0 + $0x4c] sm:$0xf]
    %v44 = vld [vmem:[%s0 + $0x50] sm:$0xf]
    %v45 = vld [vmem:[%s0 + $0x54] sm:$0xf]
    %v46 = vld [vmem:[%s0 + $0x58] sm:$0xf]
    %v47 = vld [vmem:[%s0 + $0x5c] sm:$0xf]
    %v48 = vld [vmem:[%s0 + $0x60] sm:$0xf]
    %v49 = vld [vmem:[%s0 + $0x64] sm:$0xf]
    %v50 = vld [vmem:[%s0 + $0x68] sm:$0xf]
    %v51 = vld [vmem:[%s0 + $0x6c] sm:$0xf]
    %v52 = vld [vmem:[%s0 + $0x70] sm:$0xf]
    %v53 = vld [vmem:[%s0 + $0x74] sm:$0xf]
    %v54 = vld [vmem:[%s0 + $0x78] sm:$0xf]
    %v55 = vld [vmem:[%s0 + $0x7c] sm:$0xf]
    %v56 = vunpack.c.l.bf16 %v24
    %v57 = vunpack.c.l.bf16 %v25
    %v58 = vunpack.c.l.bf16 %v26
    %v59 = vunpack.c.l.bf16 %v27
    %v60 = vunpack.c.l.bf16 %v28
    %v61 = vunpack.c.l.bf16 %v29
    %v62 = vunpack.c.l.bf16 %v30
    %v63 = vunpack.c.l.bf16 %v31
    %v64 = vunpack.c.l.bf16 %v32
    %v65 = vunpack.c.l.bf16 %v33
    %v66 = vunpack.c.l.bf16 %v34
    %v67 = vunpack.c.l.bf16 %v35
    %v68 = vunpack.c.l.bf16 %v36
    %v69 = vunpack.c.l.bf16 %v37
    %v70 = vunpack.c.l.bf16 %v38
    %v71 = vunpack.c.l.bf16 %v39
    %v72 = vunpack.c.l.bf16 %v40
    %v73 = vunpack.c.l.bf16 %v41
    %v74 = vunpack.c.l.bf16 %v42
    %v75 = vunpack.c.l.bf16 %v43
    %v76 = vunpack.c.l.bf16 %v44
    %v77 = vunpack.c.l.bf16 %v45
    %v78 = vunpack.c.l.bf16 %v46
    %v79 = vunpack.c.l.bf16 %v47
    %v80 = vunpack.c.l.bf16 %v48
    %v81 = vunpack.c.l.bf16 %v49
    %v82 = vunpack.c.l.bf16 %v50
    %v83 = vunpack.c.l.bf16 %v51
    %v84 = vunpack.c.l.bf16 %v52
    %v85 = vunpack.c.l.bf16 %v53
    %v86 = vunpack.c.l.bf16 %v54
    %v87 = vunpack.c.l.bf16 %v55
    %v88 = vld [vmem:[%s1] sm:$0xff]
    %v89 = vld [vmem:[%s1 + $0x8] sm:$0xff]
    %v90 = vld [vmem:[%s1 + $0x10] sm:$0xff]
    %v91 = vld [vmem:[%s1 + $0x18] sm:$0xff]
    %v92 = vld [vmem:[%s1 + $0x20] sm:$0xff]
    %v93 = vld [vmem:[%s1 + $0x28] sm:$0xff]
    %v94 = vld [vmem:[%s1 + $0x30] sm:$0xff]
    %v95 = vld [vmem:[%s1 + $0x38] sm:$0xff]
    %v96 = vld [vmem:[%s1 + $0x40] sm:$0xff]
    %v97 = vld [vmem:[%s1 + $0x48] sm:$0xff]
    %v98 = vld [vmem:[%s1 + $0x50] sm:$0xff]
    %v99 = vld [vmem:[%s1 + $0x58] sm:$0xff]
    %v100 = vld [vmem:[%s1 + $0x60] sm:$0xff]
    %v101 = vld [vmem:[%s1 + $0x68] sm:$0xff]
    %v102 = vld [vmem:[%s1 + $0x70] sm:$0xff]
    %v103 = vld [vmem:[%s1 + $0x78] sm:$0xff]
    %v104 = vld [vmem:[%s1 + $0x80] sm:$0xff]
    %v105 = vld [vmem:[%s1 + $0x88] sm:$0xff]
    %v106 = vld [vmem:[%s1 + $0x90] sm:$0xff]
    %v107 = vld [vmem:[%s1 + $0x98] sm:$0xff]
    %v108 = vld [vmem:[%s1 + $0xa0] sm:$0xff]
    %v109 = vld [vmem:[%s1 + $0xa8] sm:$0xff]
    %v110 = vld [vmem:[%s1 + $0xb0] sm:$0xff]
    %v111 = vld [vmem:[%s1 + $0xb8] sm:$0xff]
    %v112 = vld [vmem:[%s1 + $0xc0] sm:$0xff]
    %v113 = vld [vmem:[%s1 + $0xc8] sm:$0xff]
    %v114 = vld [vmem:[%s1 + $0xd0] sm:$0xff]
    %v115 = vld [vmem:[%s1 + $0xd8] sm:$0xff]
    %v116 = vld [vmem:[%s1 + $0xe0] sm:$0xff]
    %v117 = vld [vmem:[%s1 + $0xe8] sm:$0xff]
    %v118 = vld [vmem:[%s1 + $0xf0] sm:$0xff]
    %v119 = vld [vmem:[%s1 + $0xf8] sm:$0xff]
    %v120 = vld [vmem:[%s2] sm:$0xff]
    %v121 = vld [vmem:[%s2 + $0x8] sm:$0xff]
    %v122 = vld [vmem:[%s2 + $0x10] sm:$0xff]
    %v123 = vld [vmem:[%s2 + $0x18] sm:$0xff]
    %v124 = vld [vmem:[%s2 + $0x20] sm:$0xff]
    %v125 = vld [vmem:[%s2 + $0x28] sm:$0xff]
    %v126 = vld [vmem:[%s2 + $0x30] sm:$0xff]
    %v127 = vld [vmem:[%s2 + $0x38] sm:$0xff]
    %v128 = vld [vmem:[%s2 + $0x40] sm:$0xff]
    %v129 = vld [vmem:[%s2 + $0x48] sm:$0xff]
    %v130 = vld [vmem:[%s2 + $0x50] sm:$0xff]
    %v131 = vld [vmem:[%s2 + $0x58] sm:$0xff]
    %v132 = vld [vmem:[%s2 + $0x60] sm:$0xff]
    %v133 = vld [vmem:[%s2 + $0x68] sm:$0xff]
    %v134 = vld [vmem:[%s2 + $0x70] sm:$0xff]
    %v135 = vld [vmem:[%s2 + $0x78] sm:$0xff]
    %v136 = vld [vmem:[%s2 + $0x80] sm:$0xff]
    %v137 = vld [vmem:[%s2 + $0x88] sm:$0xff]
    %v138 = vld [vmem:[%s2 + $0x90] sm:$0xff]
    %v139 = vld [vmem:[%s2 + $0x98] sm:$0xff]
    %v140 = vld [vmem:[%s2 + $0xa0] sm:$0xff]
    %v141 = vld [vmem:[%s2 + $0xa8] sm:$0xff]
    %v142 = vld [vmem:[%s2 + $0xb0] sm:$0xff]
    %v143 = vld [vmem:[%s2 + $0xb8] sm:$0xff]
    %v144 = vld [vmem:[%s2 + $0xc0] sm:$0xff]
    %v145 = vld [vmem:[%s2 + $0xc8] sm:$0xff]
    %v146 = vld [vmem:[%s2 + $0xd0] sm:$0xff]
    %v147 = vld [vmem:[%s2 + $0xd8] sm:$0xff]
    %v148 = vld [vmem:[%s2 + $0xe0] sm:$0xff]
    %v149 = vld [vmem:[%s2 + $0xe8] sm:$0xff]
    %v150 = vld [vmem:[%s2 + $0xf0] sm:$0xff]
    %v151 = vld [vmem:[%s2 + $0xf8] sm:$0xff]
    %153 = vset.pattern.permute.xlu0 0
    %154 = vperm.xlu0 %153, %v88
    %v155 = vpop.permute.xlu0 %154
    %158 = vset.pattern.permute.xlu0 0
    %159 = vperm.xlu0 %158, %v89
    %v160 = vpop.permute.xlu0 %159
    %163 = vset.pattern.permute.xlu0 0
    %164 = vperm.xlu0 %163, %v90
    %v165 = vpop.permute.xlu0 %164
    %168 = vset.pattern.permute.xlu0 0
    %169 = vperm.xlu0 %168, %v91
    %v170 = vpop.permute.xlu0 %169
    %173 = vset.pattern.permute.xlu0 0
    %174 = vperm.xlu0 %173, %v92
    %v175 = vpop.permute.xlu0 %174
    %178 = vset.pattern.permute.xlu0 0
    %179 = vperm.xlu0 %178, %v93
    %v180 = vpop.permute.xlu0 %179
    %183 = vset.pattern.permute.xlu0 0
    %184 = vperm.xlu0 %183, %v94
    %v185 = vpop.permute.xlu0 %184
    %188 = vset.pattern.permute.xlu0 0
    %189 = vperm.xlu0 %188, %v95
    %v190 = vpop.permute.xlu0 %189
    %193 = vset.pattern.permute.xlu0 0
    %194 = vperm.xlu0 %193, %v96
    %v195 = vpop.permute.xlu0 %194
    %198 = vset.pattern.permute.xlu0 0
    %199 = vperm.xlu0 %198, %v97
    %v200 = vpop.permute.xlu0 %199
    %203 = vset.pattern.permute.xlu0 0
    %204 = vperm.xlu0 %203, %v98
    %v205 = vpop.permute.xlu0 %204
    %208 = vset.pattern.permute.xlu0 0
    %209 = vperm.xlu0 %208, %v99
    %v210 = vpop.permute.xlu0 %209
    %213 = vset.pattern.permute.xlu0 0
    %214 = vperm.xlu0 %213, %v100
    %v215 = vpop.permute.xlu0 %214
    %218 = vset.pattern.permute.xlu0 0
    %219 = vperm.xlu0 %218, %v101
    %v220 = vpop.permute.xlu0 %219
    %223 = vset.pattern.permute.xlu0 0
    %224 = vperm.xlu0 %223, %v102
    %v225 = vpop.permute.xlu0 %224
    %228 = vset.pattern.permute.xlu0 0
    %229 = vperm.xlu0 %228, %v103
    %v230 = vpop.permute.xlu0 %229
    %233 = vset.pattern.permute.xlu0 0
    %234 = vperm.xlu0 %233, %v104
    %v235 = vpop.permute.xlu0 %234
    %238 = vset.pattern.permute.xlu0 0
    %239 = vperm.xlu0 %238, %v105
    %v240 = vpop.permute.xlu0 %239
    %243 = vset.pattern.permute.xlu0 0
    %244 = vperm.xlu0 %243, %v106
    %v245 = vpop.permute.xlu0 %244
    %248 = vset.pattern.permute.xlu0 0
    %249 = vperm.xlu0 %248, %v107
    %v250 = vpop.permute.xlu0 %249
    %253 = vset.pattern.permute.xlu0 0
    %254 = vperm.xlu0 %253, %v108
    %v255 = vpop.permute.xlu0 %254
    %258 = vset.pattern.permute.xlu0 0
    %259 = vperm.xlu0 %258, %v109
    %v260 = vpop.permute.xlu0 %259
    %263 = vset.pattern.permute.xlu0 0
    %264 = vperm.xlu0 %263, %v110
    %v265 = vpop.permute.xlu0 %264
    %268 = vset.pattern.permute.xlu0 0
    %269 = vperm.xlu0 %268, %v111
    %v270 = vpop.permute.xlu0 %269
    %273 = vset.pattern.permute.xlu0 0
    %274 = vperm.xlu0 %273, %v112
    %v275 = vpop.permute.xlu0 %274
    %278 = vset.pattern.permute.xlu0 0
    %279 = vperm.xlu0 %278, %v113
    %v280 = vpop.permute.xlu0 %279
    %283 = vset.pattern.permute.xlu0 0
    %284 = vperm.xlu0 %283, %v114
    %v285 = vpop.permute.xlu0 %284
    %288 = vset.pattern.permute.xlu0 0
    %289 = vperm.xlu0 %288, %v115
    %v290 = vpop.permute.xlu0 %289
    %293 = vset.pattern.permute.xlu0 0
    %294 = vperm.xlu0 %293, %v116
    %v295 = vpop.permute.xlu0 %294
    %298 = vset.pattern.permute.xlu0 0
    %299 = vperm.xlu0 %298, %v117
    %v300 = vpop.permute.xlu0 %299
    %303 = vset.pattern.permute.xlu0 0
    %304 = vperm.xlu0 %303, %v118
    %v305 = vpop.permute.xlu0 %304
    %308 = vset.pattern.permute.xlu0 0
    %309 = vperm.xlu0 %308, %v119
    %v310 = vpop.permute.xlu0 %309
    %v312 = vmul.f32 %v56, %v155
    %v313 = vmul.f32 %v57, %v160
    %v314 = vmul.f32 %v58, %v165
    %v315 = vmul.f32 %v59, %v170
    %v316 = vmul.f32 %v60, %v175
    %v317 = vmul.f32 %v61, %v180
    %v318 = vmul.f32 %v62, %v185
    %v319 = vmul.f32 %v63, %v190
    %v320 = vmul.f32 %v64, %v195
    %v321 = vmul.f32 %v65, %v200
    %v322 = vmul.f32 %v66, %v205
    %v323 = vmul.f32 %v67, %v210
    %v324 = vmul.f32 %v68, %v215
    %v325 = vmul.f32 %v69, %v220
    %v326 = vmul.f32 %v70, %v225
    %v327 = vmul.f32 %v71, %v230
    %v328 = vmul.f32 %v72, %v235
    %v329 = vmul.f32 %v73, %v240
    %v330 = vmul.f32 %v74, %v245
    %v331 = vmul.f32 %v75, %v250
    %v332 = vmul.f32 %v76, %v255
    %v333 = vmul.f32 %v77, %v260
    %v334 = vmul.f32 %v78, %v265
    %v335 = vmul.f32 %v79, %v270
    %v336 = vmul.f32 %v80, %v275
    %v337 = vmul.f32 %v81, %v280
    %v338 = vmul.f32 %v82, %v285
    %v339 = vmul.f32 %v83, %v290
    %v340 = vmul.f32 %v84, %v295
    %v341 = vmul.f32 %v85, %v300
    %v342 = vmul.f32 %v86, %v305
    %v343 = vmul.f32 %v87, %v310
    %v344 = vpack.c.bf16 %v313, %v312
    %v345 = vpack.c.bf16 %v315, %v314
    %v346 = vpack.c.bf16 %v317, %v316
    %v347 = vpack.c.bf16 %v319, %v318
    %v348 = vpack.c.bf16 %v321, %v320
    %v349 = vpack.c.bf16 %v323, %v322
    %v350 = vpack.c.bf16 %v325, %v324
    %v351 = vpack.c.bf16 %v327, %v326
    %v352 = vpack.c.bf16 %v329, %v328
    %v353 = vpack.c.bf16 %v331, %v330
    %v354 = vpack.c.bf16 %v333, %v332
    %v355 = vpack.c.bf16 %v335, %v334
    %v356 = vpack.c.bf16 %v337, %v336
    %v357 = vpack.c.bf16 %v339, %v338
    %v358 = vpack.c.bf16 %v341, %v340
    %v359 = vpack.c.bf16 %v343, %v342
    %v376 = vunpack.c.l.b16 %v344
    %v377 = vunpack.c.h.b16 %v344
    %v378 = vunpack.c.l.b16 %v345
    %v379 = vunpack.c.h.b16 %v345
    %v380 = vunpack.c.l.b16 %v346
    %v381 = vunpack.c.h.b16 %v346
    %v382 = vunpack.c.l.b16 %v347
    %v383 = vunpack.c.h.b16 %v347
    %v384 = vunpack.c.l.b16 %v348
    %v385 = vunpack.c.h.b16 %v348
    %v386 = vunpack.c.l.b16 %v349
    %v387 = vunpack.c.h.b16 %v349
    %v388 = vunpack.c.l.b16 %v350
    %v389 = vunpack.c.h.b16 %v350
    %v390 = vunpack.c.l.b16 %v351
    %v391 = vunpack.c.h.b16 %v351
    %v392 = vunpack.c.l.b16 %v352
    %v393 = vunpack.c.h.b16 %v352
    %v394 = vunpack.c.l.b16 %v353
    %v395 = vunpack.c.h.b16 %v353
    %v396 = vunpack.c.l.b16 %v354
    %v397 = vunpack.c.h.b16 %v354
    %v398 = vunpack.c.l.b16 %v355
    %v399 = vunpack.c.h.b16 %v355
    %v400 = vunpack.c.l.b16 %v356
    %v401 = vunpack.c.h.b16 %v356
    %v402 = vunpack.c.l.b16 %v357
    %v403 = vunpack.c.h.b16 %v357
    %v404 = vunpack.c.l.b16 %v358
    %v405 = vunpack.c.h.b16 %v358
    %v406 = vunpack.c.l.b16 %v359
    %v407 = vunpack.c.h.b16 %v359
    %v408 = vpack.c.b16 %v376, %v376
    %v409 = vpack.c.b16 %v377, %v377
    %v410 = vpack.c.b16 %v378, %v378
    %v411 = vpack.c.b16 %v379, %v379
    %v412 = vpack.c.b16 %v380, %v380
    %v413 = vpack.c.b16 %v381, %v381
    %v414 = vpack.c.b16 %v382, %v382
    %v415 = vpack.c.b16 %v383, %v383
    %v416 = vpack.c.b16 %v384, %v384
    %v417 = vpack.c.b16 %v385, %v385
    %v418 = vpack.c.b16 %v386, %v386
    %v419 = vpack.c.b16 %v387, %v387
    %v420 = vpack.c.b16 %v388, %v388
    %v421 = vpack.c.b16 %v389, %v389
    %v422 = vpack.c.b16 %v390, %v390
    %v423 = vpack.c.b16 %v391, %v391
    %v424 = vpack.c.b16 %v392, %v392
    %v425 = vpack.c.b16 %v393, %v393
    %v426 = vpack.c.b16 %v394, %v394
    %v427 = vpack.c.b16 %v395, %v395
    %v428 = vpack.c.b16 %v396, %v396
    %v429 = vpack.c.b16 %v397, %v397
    %v430 = vpack.c.b16 %v398, %v398
    %v431 = vpack.c.b16 %v399, %v399
    %v432 = vpack.c.b16 %v400, %v400
    %v433 = vpack.c.b16 %v401, %v401
    %v434 = vpack.c.b16 %v402, %v402
    %v435 = vpack.c.b16 %v403, %v403
    %v436 = vpack.c.b16 %v404, %v404
    %v437 = vpack.c.b16 %v405, %v405
    %v438 = vpack.c.b16 %v406, %v406
    %v439 = vpack.c.b16 %v407, %v407
    %472 = vst [vmem:[#allocation4] sm:$0xf] %v408
    %473 = vst [vmem:[#allocation4 + $0x4] sm:$0xf] %v409
    %474 = vst [vmem:[#allocation4 + $0x8] sm:$0xf] %v410
    %475 = vst [vmem:[#allocation4 + $0xc] sm:$0xf] %v411
    %476 = vst [vmem:[#allocation4 + $0x10] sm:$0xf] %v412
    %477 = vst [vmem:[#allocation4 + $0x14] sm:$0xf] %v413
    %478 = vst [vmem:[#allocation4 + $0x18] sm:$0xf] %v414
    %479 = vst [vmem:[#allocation4 + $0x1c] sm:$0xf] %v415
    %480 = vst [vmem:[#allocation4 + $0x20] sm:$0xf] %v416
    %481 = vst [vmem:[#allocation4 + $0x24] sm:$0xf] %v417
    %482 = vst [vmem:[#allocation4 + $0x28] sm:$0xf] %v418
    %483 = vst [vmem:[#allocation4 + $0x2c] sm:$0xf] %v419
    %484 = vst [vmem:[#allocation4 + $0x30] sm:$0xf] %v420
    %485 = vst [vmem:[#allocation4 + $0x34] sm:$0xf] %v421
    %486 = vst [vmem:[#allocation4 + $0x38] sm:$0xf] %v422
    %487 = vst [vmem:[#allocation4 + $0x3c] sm:$0xf] %v423
    %488 = vst [vmem:[#allocation4 + $0x40] sm:$0xf] %v424
    %489 = vst [vmem:[#allocation4 + $0x44] sm:$0xf] %v425
    %490 = vst [vmem:[#allocation4 + $0x48] sm:$0xf] %v426
    %491 = vst [vmem:[#allocation4 + $0x4c] sm:$0xf] %v427
    %492 = vst [vmem:[#allocation4 + $0x50] sm:$0xf] %v428
    %493 = vst [vmem:[#allocation4 + $0x54] sm:$0xf] %v429
    %494 = vst [vmem:[#allocation4 + $0x58] sm:$0xf] %v430
    %495 = vst [vmem:[#allocation4 + $0x5c] sm:$0xf] %v431
    %496 = vst [vmem:[#allocation4 + $0x60] sm:$0xf] %v432
    %497 = vst [vmem:[#allocation4 + $0x64] sm:$0xf] %v433
    %498 = vst [vmem:[#allocation4 + $0x68] sm:$0xf] %v434
    %499 = vst [vmem:[#allocation4 + $0x6c] sm:$0xf] %v435
    %500 = vst [vmem:[#allocation4 + $0x70] sm:$0xf] %v436
    %501 = vst [vmem:[#allocation4 + $0x74] sm:$0xf] %v437
    %502 = vst [vmem:[#allocation4 + $0x78] sm:$0xf] %v438
    %503 = vst [vmem:[#allocation4 + $0x7c] sm:$0xf] %v439
    %vm504 = vcmp.gt.f32.partialorder %v120, 0.0
    %vm505 = vcmp.gt.f32.partialorder %v121, 0.0
    %vm506 = vcmp.gt.f32.partialorder %v122, 0.0
    %vm507 = vcmp.gt.f32.partialorder %v123, 0.0
    %vm508 = vcmp.gt.f32.partialorder %v124, 0.0
    %vm509 = vcmp.gt.f32.partialorder %v125, 0.0
    %vm510 = vcmp.gt.f32.partialorder %v126, 0.0
    %vm511 = vcmp.gt.f32.partialorder %v127, 0.0
    %vm512 = vcmp.gt.f32.partialorder %v128, 0.0
    %vm513 = vcmp.gt.f32.partialorder %v129, 0.0
    %vm514 = vcmp.gt.f32.partialorder %v130, 0.0
    %vm515 = vcmp.gt.f32.partialorder %v131, 0.0
    %vm516 = vcmp.gt.f32.partialorder %v132, 0.0
    %vm517 = vcmp.gt.f32.partialorder %v133, 0.0
    %vm518 = vcmp.gt.f32.partialorder %v134, 0.0
    %vm519 = vcmp.gt.f32.partialorder %v135, 0.0
    %vm520 = vcmp.gt.f32.partialorder %v136, 0.0
    %vm521 = vcmp.gt.f32.partialorder %v137, 0.0
    %vm522 = vcmp.gt.f32.partialorder %v138, 0.0
    %vm523 = vcmp.gt.f32.partialorder %v139, 0.0
    %vm524 = vcmp.gt.f32.partialorder %v140, 0.0
    %vm525 = vcmp.gt.f32.partialorder %v141, 0.0
    %vm526 = vcmp.gt.f32.partialorder %v142, 0.0
    %vm527 = vcmp.gt.f32.partialorder %v143, 0.0
    %vm528 = vcmp.gt.f32.partialorder %v144, 0.0
    %vm529 = vcmp.gt.f32.partialorder %v145, 0.0
    %vm530 = vcmp.gt.f32.partialorder %v146, 0.0
    %vm531 = vcmp.gt.f32.partialorder %v147, 0.0
    %vm532 = vcmp.gt.f32.partialorder %v148, 0.0
    %vm533 = vcmp.gt.f32.partialorder %v149, 0.0
    %vm534 = vcmp.gt.f32.partialorder %v150, 0.0
    %vm535 = vcmp.gt.f32.partialorder %v151, 0.0
    %v536 = vsel %vm504, 1, 0
    %v537 = vsel %vm505, 1, 0
    %v538 = vsel %vm506, 1, 0
    %v539 = vsel %vm507, 1, 0
    %v540 = vsel %vm508, 1, 0
    %v541 = vsel %vm509, 1, 0
    %v542 = vsel %vm510, 1, 0
    %v543 = vsel %vm511, 1, 0
    %v544 = vsel %vm512, 1, 0
    %v545 = vsel %vm513, 1, 0
    %v546 = vsel %vm514, 1, 0
    %v547 = vsel %vm515, 1, 0
    %v548 = vsel %vm516, 1, 0
    %v549 = vsel %vm517, 1, 0
    %v550 = vsel %vm518, 1, 0
    %v551 = vsel %vm519, 1, 0
    %v552 = vsel %vm520, 1, 0
    %v553 = vsel %vm521, 1, 0
    %v554 = vsel %vm522, 1, 0
    %v555 = vsel %vm523, 1, 0
    %v556 = vsel %vm524, 1, 0
    %v557 = vsel %vm525, 1, 0
    %v558 = vsel %vm526, 1, 0
    %v559 = vsel %vm527, 1, 0
    %v560 = vsel %vm528, 1, 0
    %v561 = vsel %vm529, 1, 0
    %v562 = vsel %vm530, 1, 0
    %v563 = vsel %vm531, 1, 0
    %v564 = vsel %vm532, 1, 0
    %v565 = vsel %vm533, 1, 0
    %v566 = vsel %vm534, 1, 0
    %v567 = vsel %vm535, 1, 0
    %568 = vset.pattern.permute.xlu0 0
    %569 = vperm.xlu0 %568, %v536
    %v570 = vpop.permute.xlu0 %569
    %571 = vset.pattern.permute.xlu0 0
    %572 = vperm.xlu0 %571, %v537
    %v573 = vpop.permute.xlu0 %572
    %574 = vset.pattern.permute.xlu0 0
    %575 = vperm.xlu0 %574, %v538
    %v576 = vpop.permute.xlu0 %575
    %577 = vset.pattern.permute.xlu0 0
    %578 = vperm.xlu0 %577, %v539
    %v579 = vpop.permute.xlu0 %578
    %580 = vset.pattern.permute.xlu0 0
    %581 = vperm.xlu0 %580, %v540
    %v582 = vpop.permute.xlu0 %581
    %583 = vset.pattern.permute.xlu0 0
    %584 = vperm.xlu0 %583, %v541
    %v585 = vpop.permute.xlu0 %584
    %586 = vset.pattern.permute.xlu0 0
    %587 = vperm.xlu0 %586, %v542
    %v588 = vpop.permute.xlu0 %587
    %589 = vset.pattern.permute.xlu0 0
    %590 = vperm.xlu0 %589, %v543
    %v591 = vpop.permute.xlu0 %590
    %592 = vset.pattern.permute.xlu0 0
    %593 = vperm.xlu0 %592, %v544
    %v594 = vpop.permute.xlu0 %593
    %595 = vset.pattern.permute.xlu0 0
    %596 = vperm.xlu0 %595, %v545
    %v597 = vpop.permute.xlu0 %596
    %598 = vset.pattern.permute.xlu0 0
    %599 = vperm.xlu0 %598, %v546
    %v600 = vpop.permute.xlu0 %599
    %601 = vset.pattern.permute.xlu0 0
    %602 = vperm.xlu0 %601, %v547
    %v603 = vpop.permute.xlu0 %602
    %604 = vset.pattern.permute.xlu0 0
    %605 = vperm.xlu0 %604, %v548
    %v606 = vpop.permute.xlu0 %605
    %607 = vset.pattern.permute.xlu0 0
    %608 = vperm.xlu0 %607, %v549
    %v609 = vpop.permute.xlu0 %608
    %610 = vset.pattern.permute.xlu0 0
    %611 = vperm.xlu0 %610, %v550
    %v612 = vpop.permute.xlu0 %611
    %613 = vset.pattern.permute.xlu0 0
    %614 = vperm.xlu0 %613, %v551
    %v615 = vpop.permute.xlu0 %614
    %616 = vset.pattern.permute.xlu0 0
    %617 = vperm.xlu0 %616, %v552
    %v618 = vpop.permute.xlu0 %617
    %619 = vset.pattern.permute.xlu0 0
    %620 = vperm.xlu0 %619, %v553
    %v621 = vpop.permute.xlu0 %620
    %622 = vset.pattern.permute.xlu0 0
    %623 = vperm.xlu0 %622, %v554
    %v624 = vpop.permute.xlu0 %623
    %625 = vset.pattern.permute.xlu0 0
    %626 = vperm.xlu0 %625, %v555
    %v627 = vpop.permute.xlu0 %626
    %628 = vset.pattern.permute.xlu0 0
    %629 = vperm.xlu0 %628, %v556
    %v630 = vpop.permute.xlu0 %629
    %631 = vset.pattern.permute.xlu0 0
    %632 = vperm.xlu0 %631, %v557
    %v633 = vpop.permute.xlu0 %632
    %634 = vset.pattern.permute.xlu0 0
    %635 = vperm.xlu0 %634, %v558
    %v636 = vpop.permute.xlu0 %635
    %637 = vset.pattern.permute.xlu0 0
    %638 = vperm.xlu0 %637, %v559
    %v639 = vpop.permute.xlu0 %638
    %640 = vset.pattern.permute.xlu0 0
    %641 = vperm.xlu0 %640, %v560
    %v642 = vpop.permute.xlu0 %641
    %643 = vset.pattern.permute.xlu0 0
    %644 = vperm.xlu0 %643, %v561
    %v645 = vpop.permute.xlu0 %644
    %646 = vset.pattern.permute.xlu0 0
    %647 = vperm.xlu0 %646, %v562
    %v648 = vpop.permute.xlu0 %647
    %649 = vset.pattern.permute.xlu0 0
    %650 = vperm.xlu0 %649, %v563
    %v651 = vpop.permute.xlu0 %650
    %652 = vset.pattern.permute.xlu0 0
    %653 = vperm.xlu0 %652, %v564
    %v654 = vpop.permute.xlu0 %653
    %655 = vset.pattern.permute.xlu0 0
    %656 = vperm.xlu0 %655, %v565
    %v657 = vpop.permute.xlu0 %656
    %658 = vset.pattern.permute.xlu0 0
    %659 = vperm.xlu0 %658, %v566
    %v660 = vpop.permute.xlu0 %659
    %661 = vset.pattern.permute.xlu0 0
    %662 = vperm.xlu0 %661, %v567
    %v663 = vpop.permute.xlu0 %662
    %vm664 = vcmp.eq.s32.totalorder %v570, 1
    %vm665 = vcmp.eq.s32.totalorder %v573, 1
    %vm666 = vcmp.eq.s32.totalorder %v576, 1
    %vm667 = vcmp.eq.s32.totalorder %v579, 1
    %vm668 = vcmp.eq.s32.totalorder %v582, 1
    %vm669 = vcmp.eq.s32.totalorder %v585, 1
    %vm670 = vcmp.eq.s32.totalorder %v588, 1
    %vm671 = vcmp.eq.s32.totalorder %v591, 1
    %vm672 = vcmp.eq.s32.totalorder %v594, 1
    %vm673 = vcmp.eq.s32.totalorder %v597, 1
    %vm674 = vcmp.eq.s32.totalorder %v600, 1
    %vm675 = vcmp.eq.s32.totalorder %v603, 1
    %vm676 = vcmp.eq.s32.totalorder %v606, 1
    %vm677 = vcmp.eq.s32.totalorder %v609, 1
    %vm678 = vcmp.eq.s32.totalorder %v612, 1
    %vm679 = vcmp.eq.s32.totalorder %v615, 1
    %vm680 = vcmp.eq.s32.totalorder %v618, 1
    %vm681 = vcmp.eq.s32.totalorder %v621, 1
    %vm682 = vcmp.eq.s32.totalorder %v624, 1
    %vm683 = vcmp.eq.s32.totalorder %v627, 1
    %vm684 = vcmp.eq.s32.totalorder %v630, 1
    %vm685 = vcmp.eq.s32.totalorder %v633, 1
    %vm686 = vcmp.eq.s32.totalorder %v636, 1
    %vm687 = vcmp.eq.s32.totalorder %v639, 1
    %vm688 = vcmp.eq.s32.totalorder %v642, 1
    %vm689 = vcmp.eq.s32.totalorder %v645, 1
    %vm690 = vcmp.eq.s32.totalorder %v648, 1
    %vm691 = vcmp.eq.s32.totalorder %v651, 1
    %vm692 = vcmp.eq.s32.totalorder %v654, 1
    %vm693 = vcmp.eq.s32.totalorder %v657, 1
    %vm694 = vcmp.eq.s32.totalorder %v660, 1
    %vm695 = vcmp.eq.s32.totalorder %v663, 1
    %v696 = vsel %vm664, %v312, -inf
    %v697 = vsel %vm665, %v313, -inf
    %v698 = vsel %vm666, %v314, -inf
    %v699 = vsel %vm667, %v315, -inf
    %v700 = vsel %vm668, %v316, -inf
    %v701 = vsel %vm669, %v317, -inf
    %v702 = vsel %vm670, %v318, -inf
    %v703 = vsel %vm671, %v319, -inf
    %v704 = vsel %vm672, %v320, -inf
    %v705 = vsel %vm673, %v321, -inf
    %v706 = vsel %vm674, %v322, -inf
    %v707 = vsel %vm675, %v323, -inf
    %v708 = vsel %vm676, %v324, -inf
    %v709 = vsel %vm677, %v325, -inf
    %v710 = vsel %vm678, %v326, -inf
    %v711 = vsel %vm679, %v327, -inf
    %v712 = vsel %vm680, %v328, -inf
    %v713 = vsel %vm681, %v329, -inf
    %v714 = vsel %vm682, %v330, -inf
    %v715 = vsel %vm683, %v331, -inf
    %v716 = vsel %vm684, %v332, -inf
    %v717 = vsel %vm685, %v333, -inf
    %v718 = vsel %vm686, %v334, -inf
    %v719 = vsel %vm687, %v335, -inf
    %v720 = vsel %vm688, %v336, -inf
    %v721 = vsel %vm689, %v337, -inf
    %v722 = vsel %vm690, %v338, -inf
    %v723 = vsel %vm691, %v339, -inf
    %v724 = vsel %vm692, %v340, -inf
    %v725 = vsel %vm693, %v341, -inf
    %v726 = vsel %vm694, %v342, -inf
    %v727 = vsel %vm695, %v343, -inf
    %v728 = vld [vmem:[#allocation2] sm:$0x1]
    %v729 = vmax.f32 %v696, %v700
    %v730 = vmax.f32 %v697, %v701
    %v731 = vmax.f32 %v698, %v702
    %v732 = vmax.f32 %v699, %v703
    %v733 = vmax.f32 %v729, %v704
    %v734 = vmax.f32 %v730, %v705
    %v735 = vmax.f32 %v731, %v706
    %v736 = vmax.f32 %v732, %v707
    %v737 = vmax.f32 %v733, %v708
    %v738 = vmax.f32 %v734, %v709
    %v739 = vmax.f32 %v735, %v710
    %v740 = vmax.f32 %v736, %v711
    %v741 = vmax.f32 %v737, %v712
    %v742 = vmax.f32 %v738, %v713
    %v743 = vmax.f32 %v739, %v714
    %v744 = vmax.f32 %v740, %v715
    %v745 = vmax.f32 %v741, %v716
    %v746 = vmax.f32 %v742, %v717
    %v747 = vmax.f32 %v743, %v718
    %v748 = vmax.f32 %v744, %v719
    %v749 = vmax.f32 %v745, %v720
    %v750 = vmax.f32 %v746, %v721
    %v751 = vmax.f32 %v747, %v722
    %v752 = vmax.f32 %v748, %v723
    %v753 = vmax.f32 %v749, %v724
    %v754 = vmax.f32 %v750, %v725
    %v755 = vmax.f32 %v751, %v726
    %v756 = vmax.f32 %v752, %v727
    %v757 = vmax.f32 %v753, %v754
    %v758 = vmax.f32 %v755, %v756
    %v759 = vmax.f32 %v757, %v758
    %v760 = vrot.slane %v759, 4
    %v761 = vmax.f32 %v759, %v760
    %v762 = vrot.slane %v761, 2
    %v763 = vmax.f32 %v761, %v762
    %v764 = vrot.slane %v763, 1
    %v765 = vmax.f32 %v763, %v764
    %v766 = vmax.f32 %v728, %v765
    %767 = vst [vmem:[#allocation2] sm:$0x1] %v766
    %v768 = vld [vmem:[#allocation3] sm:$0x1]
    %v769 = vadd.f32 %v312, %v313
    %v770 = vadd.f32 %v769, %v314
    %v771 = vadd.f32 %v770, %v315
    %v772 = vadd.f32 %v771, %v316
    %v773 = vadd.f32 %v772, %v317
    %v774 = vadd.f32 %v773, %v318
    %v775 = vadd.f32 %v774, %v319
    %v776 = vadd.f32 %v775, %v320
    %v777 = vadd.f32 %v776, %v321
    %v778 = vadd.f32 %v777, %v322
    %v779 = vadd.f32 %v778, %v323
    %v780 = vadd.f32 %v779, %v324
    %v781 = vadd.f32 %v780, %v325
    %v782 = vadd.f32 %v781, %v326
    %v783 = vadd.f32 %v782, %v327
    %v784 = vadd.f32 %v783, %v328
    %v785 = vadd.f32 %v784, %v329
    %v786 = vadd.f32 %v785, %v330
    %v787 = vadd.f32 %v786, %v331
    %v788 = vadd.f32 %v787, %v332
    %v789 = vadd.f32 %v788, %v333
    %v790 = vadd.f32 %v789, %v334
    %v791 = vadd.f32 %v790, %v335
    %v792 = vadd.f32 %v791, %v336
    %v793 = vadd.f32 %v792, %v337
    %v794 = vadd.f32 %v793, %v338
    %v795 = vadd.f32 %v794, %v339
    %v796 = vadd.f32 %v795, %v340
    %v797 = vadd.f32 %v796, %v341
    %v798 = vadd.f32 %v797, %v342
    %v799 = vadd.f32 %v798, %v343
    %v800 = vrot.slane %v799, 4
    %v801 = vadd.f32 %v799, %v800
    %v802 = vrot.slane %v801, 2
    %v803 = vadd.f32 %v801, %v802
    %v804 = vrot.slane %v803, 1
    %v805 = vadd.f32 %v803, %v804
    %v806 = vadd.f32 %v768, %v805
    %807 = vst [vmem:[#allocation3] sm:$0x1] %v806
    // Predicated region
    $region18: #{_lambda_.8} parent=1 // pred_check
      %p808 = pneg %p18
    $region19: #{_lambda_.8} parent=1 // pred_check_branch
      %810 = sbr.rel (%p808) target = $region21
    $region20: #{_lambda_.8} parent=1 // pred_region
      %v811 = vld [vmem:[#allocation2] sm:$0x1]
      %812 = vst [vmem:[%s4] sm:$0x1] %v811
      %v813 = vld [vmem:[#allocation3] sm:$0x1]
      %814 = vst [vmem:[%s5] sm:$0x1] %v813
    $region21: #{_lambda_.8} parent=1 // pred_fallthru
      _
    // Predicated region
    $region22: #{_lambda_.8} parent=1 // pred_check
      _
    $region23: #{_lambda_.8} parent=1 // pred_check_branch
      %816 = sbr.rel (0) target = $region25
    $region24: #{_lambda_.8} parent=1 // pred_region
      %s818 = ssub.s32 2048, 2048
      %819 = vsyncadd [#allocation5], %s818
      %s820 = sshll.u32 [#allocation4], 4
      %s821 = int_to_ptr.vmem [resolvable:$true] %s820
      %826 = dma.vmem_to_hbm [thread:$0]  %s821, 2048, %s3, [#allocation5], 64, 64, 4
    $region25: #{_lambda_.8} parent=1 // pred_fallthru
      _
    // Predicated region
    $region26: #{_lambda_.8} parent=1 // pred_check
      _
    $region27: #{_lambda_.8} parent=1 // pred_check_branch
      %828 = sbr.rel (0) target = $region29
    $region28: #{_lambda_.8} parent=1 // pred_region
      _
    $region29: #{_lambda_.8} parent=1 // pred_fallthru
      _
    // Predicated region
    $region30: #{_lambda_.8} parent=1 // pred_check
      _
    $region31: #{_lambda_.8} parent=1 // pred_check_branch
      %830 = sbr.rel (0) target = $region33
    $region32: #{_lambda_.8} parent=1 // pred_region
      _
    $region33: #{_lambda_.8} parent=1 // pred_fallthru
      _
    // Predicated region
    $region34: #{_lambda_.8} parent=1 // pred_check
      _
    $region35: #{_lambda_.8} parent=1 // pred_check_branch
      %832 = sbr.rel (0) target = $region37
    $region36: #{_lambda_.8} parent=1 // pred_region
      %833 = dma.done [#allocation5], 2048
    $region37: #{_lambda_.8} parent=1 // pred_fallthru
      _
    // Predicated region
    $region38: #{_lambda_.8} parent=1 // pred_check
      _
    $region39: #{_lambda_.8} parent=1 // pred_check_branch
      %835 = sbr.rel (0) target = $region41
    $region40: #{_lambda_.8} parent=1 // pred_region
      _
    $region41: #{_lambda_.8} parent=1 // pred_fallthru
      _
    // Predicated region
    $region42: #{_lambda_.8} parent=1 // pred_check
      _
    $region43: #{_lambda_.8} parent=1 // pred_check_branch
      %837 = sbr.rel (0) target = $region45
    $region44: #{_lambda_.8} parent=1 // pred_region
      _
    $region45: #{_lambda_.8} parent=1 // pred_fallthru
      _
    %838 = vsyncpa [#allocation5], 1

// kernel: _lambda_.7
$region0: #{_lambda_.7}
  #allocation0 [shape = 'u32[]', space=smem, size = 0x4, offset = 0x4, fixed_abs, tag = 'smem constant byte address 0x4 - core index']
  #allocation1 [shape = 'u32[144,128]{1,0:T(1,128)}', space=vmem, size = 0x12000, scoped, tag = 'internal scratch']
  #allocation2 [shape = 'bf16[256,128]{1,0:T(8,128)(2,1)}', space=vmem, size = 0x10000, scoped, tag = 'scratch operand']
  #allocation3 [shape = 'f32[128,128]{1,0:T(8,128)}', space=vmem, size = 0x10000, scoped, tag = 'scratch operand']
  %s0 = inlined_call_operand.vmem [shape: bf16[256,256], index: 0, kind: input, shape index: {}]
  %s1 = inlined_call_operand.vmem [shape: f32[256,1], index: 1, kind: input, shape index: {}]
  %s2 = inlined_call_operand.vmem [shape: f32[1,256], index: 2, kind: input, shape index: {}]
  %s3 = inlined_call_operand.vmem [shape: bf16[256,128], index: 3, kind: input, shape index: {}]
  %s4 = inlined_call_operand.vmem [shape: bf16[128,128], index: 4, kind: input, shape index: {}]
  %s5 = inlined_call_operand.vmem [shape: f32[1,128], index: 5, kind: input, shape index: {}]
  %s6 = inlined_call_operand.vmem [shape: f32[256,128], index: 6, kind: input, shape index: {}]
  %s7 = inlined_call_operand.vmem [shape: bf16[256,128], index: 7, kind: output, shape index: {}]
  %s8 = sld [smem:[#allocation0]]
  $region73: #{_lambda_.7} parent=0
    _
  %s10 = ssub.s32 1, %s8
  %s11 = scalar_select 0, %s10, %s8
  loop: start=0, step=1, limit=4
  $region2: #{_lambda_.7} parent=0 // loop_pre_header
    _
  $region3: #{_lambda_.7} parent=0 // loop_header
    %s13 = sphi 0, %s17
    %p14 = scmp.ge.s32.totalorder %s13, 4
    %s20 = sphi 0, %s32
    %s21 = sphi 0, %s28
    %s22 = sphi 0, %s20
    %s23 = sphi 0, %s21
    %s24 = sphi 0, %s22
    %s25 = sphi 0, %s23
    %s37 = sphi 0, %s39
    %s40 = sphi 0, %s37
    %s41 = sphi 0, %s40
    %s57 = sphi 0, %s41
    %s63 = sphi 0, %s65
    %s66 = sphi 0, %s63
    %s67 = sphi 0, %s66
    %s83 = sphi 0, %s67
    %s89 = sphi 0, %s91
    %s92 = sphi 0, %s89
    %s93 = sphi 0, %s92
    %s109 = sphi 0, %s93
    %s115 = sphi 0, %s117
    %s118 = sphi 0, %s115
    %s119 = sphi 0, %s118
    %s135 = sphi 0, %s119
    %s139 = sphi 0, %s139
    %s141 = sphi 0, %s139
    %s142 = sphi 0, %s141
    %s156 = sphi 0, %s142
    %s160 = sphi 0, %s160
    %s162 = sphi 0, %s160
    %s163 = sphi 0, %s162
    %s177 = sphi 0, %s163
    %s183 = sphi 0, %s185
    %s186 = sphi 0, %s183
    %s187 = sphi 0, %s186
    %s203 = sphi 0, %s187
    %s209 = sphi 0, %s211
    %s212 = sphi 0, %s209
    %s213 = sphi 0, %s212
    %s229 = sphi 0, %s213
  $region4: #{_lambda_.7} parent=0 // loop_header_branch
    %16 = sbr.rel (%p14) target = $region8
  $region5: #{_lambda_.7} parent=0 // loop_body
    %s18 = ssub.s32 %s13, 1
    %s19 = ssub.s32 %s13, 2
    %s26 = sadd.s32 1, %s21
    %p27 = scmp.ge.s32.totalorder %s26, 1
    %s28 = scalar_select %p27, 0, %s26
    %s29 = sadd.s32 1, %s20
    %s30 = scalar_select %p27, %s29, %s20
    %p31 = scmp.ge.s32.totalorder %s30, 2
    %s32 = scalar_select %p31, 0, %s30
    %s33 = ssub.s32 %s20, %s32
    %s34 = ssub.s32 %s21, %s28
    %s35 = sor.u32 %s33, %s34
    %p36 = scmp.eq.s32.totalorder %s35, 0
    %s38 = sadd.s32 %s37, 1
    %s39 = scalar_select %p36, %s37, %s38
    %p42 = pneg %p36
    %p43 = scmp.eq.s32.totalorder %s13, 1
    %p44 = por %p42, %p43
    %p45 = scmp.ne.s32.totalorder %s37, %s40
    %p46 = scmp.eq.s32.totalorder %s13, 0
    %p47 = por %p45, %p46
    %p48 = scmp.ne.s32.totalorder %s37, %s40
    %p49 = scmp.eq.s32.totalorder %s18, 1
    %p50 = por %p48, %p49
    %p51 = scmp.ne.s32.totalorder %s40, %s41
    %p52 = scmp.eq.s32.totalorder %s18, 0
    %p53 = por %p51, %p52
    %p54 = scmp.ne.s32.totalorder %s40, %s41
    %p55 = scmp.eq.s32.totalorder %s19, 1
    %p56 = por %p54, %p55
    %p58 = scmp.ne.s32.totalorder %s41, %s57
    %p59 = scmp.eq.s32.totalorder %s19, 0
    %p60 = por %p58, %p59
    %s61 = ssub.s32 %s20, %s32
    %p62 = scmp.eq.s32.totalorder %s61, 0
    %s64 = sadd.s32 %s63, 1
    %s65 = scalar_select %p62, %s63, %s64
    %p68 = pneg %p62
    %p69 = scmp.eq.s32.totalorder %s13, 1
    %p70 = por %p68, %p69
    %p71 = scmp.ne.s32.totalorder %s63, %s66
    %p72 = scmp.eq.s32.totalorder %s13, 0
    %p73 = por %p71, %p72
    %p74 = scmp.ne.s32.totalorder %s63, %s66
    %p75 = scmp.eq.s32.totalorder %s18, 1
    %p76 = por %p74, %p75
    %p77 = scmp.ne.s32.totalorder %s66, %s67
    %p78 = scmp.eq.s32.totalorder %s18, 0
    %p79 = por %p77, %p78
    %p80 = scmp.ne.s32.totalorder %s66, %s67
    %p81 = scmp.eq.s32.totalorder %s19, 1
    %p82 = por %p80, %p81
    %p84 = scmp.ne.s32.totalorder %s67, %s83
    %p85 = scmp.eq.s32.totalorder %s19, 0
    %p86 = por %p84, %p85
    %s87 = ssub.s32 %s21, %s28
    %p88 = scmp.eq.s32.totalorder %s87, 0
    %s90 = sadd.s32 %s89, 1
    %s91 = scalar_select %p88, %s89, %s90
    %p94 = pneg %p88
    %p95 = scmp.eq.s32.totalorder %s13, 1
    %p96 = por %p94, %p95
    %p97 = scmp.ne.s32.totalorder %s89, %s92
    %p98 = scmp.eq.s32.totalorder %s13, 0
    %p99 = por %p97, %p98
    %p100 = scmp.ne.s32.totalorder %s89, %s92
    %p101 = scmp.eq.s32.totalorder %s18, 1
    %p102 = por %p100, %p101
    %p103 = scmp.ne.s32.totalorder %s92, %s93
    %p104 = scmp.eq.s32.totalorder %s18, 0
    %p105 = por %p103, %p104
    %p106 = scmp.ne.s32.totalorder %s92, %s93
    %p107 = scmp.eq.s32.totalorder %s19, 1
    %p108 = por %p106, %p107
    %p110 = scmp.ne.s32.totalorder %s93, %s109
    %p111 = scmp.eq.s32.totalorder %s19, 0
    %p112 = por %p110, %p111
    %s113 = ssub.s32 %s21, %s28
    %p114 = scmp.eq.s32.totalorder %s113, 0
    %s116 = sadd.s32 %s115, 1
    %s117 = scalar_select %p114, %s115, %s116
    %p120 = pneg %p114
    %p121 = scmp.eq.s32.totalorder %s13, 1
    %p122 = por %p120, %p121
    %p123 = scmp.ne.s32.totalorder %s115, %s118
    %p124 = scmp.eq.s32.totalorder %s13, 0
    %p125 = por %p123, %p124
    %p126 = scmp.ne.s32.totalorder %s115, %s118
    %p127 = scmp.eq.s32.totalorder %s18, 1
    %p128 = por %p126, %p127
    %p129 = scmp.ne.s32.totalorder %s118, %s119
    %p130 = scmp.eq.s32.totalorder %s18, 0
    %p131 = por %p129, %p130
    %p132 = scmp.ne.s32.totalorder %s118, %s119
    %p133 = scmp.eq.s32.totalorder %s19, 1
    %p134 = por %p132, %p133
    %p136 = scmp.ne.s32.totalorder %s119, %s135
    %p137 = scmp.eq.s32.totalorder %s19, 0
    %p138 = por %p136, %p137
    %s140 = sadd.s32 %s139, 1
    %p143 = scmp.eq.s32.totalorder %s13, 1
    %p144 = scmp.ne.s32.totalorder %s139, %s141
    %p145 = scmp.eq.s32.totalorder %s13, 0
    %p146 = por %p144, %p145
    %p147 = scmp.ne.s32.totalorder %s139, %s141
    %p148 = scmp.eq.s32.totalorder %s18, 1
    %p149 = por %p147, %p148
    %p150 = scmp.ne.s32.totalorder %s141, %s142
    %p151 = scmp.eq.s32.totalorder %s18, 0
    %p152 = por %p150, %p151
    %p153 = scmp.ne.s32.totalorder %s141, %s142
    %p154 = scmp.eq.s32.totalorder %s19, 1
    %p155 = por %p153, %p154
    %p157 = scmp.ne.s32.totalorder %s142, %s156
    %p158 = scmp.eq.s32.totalorder %s19, 0
    %p159 = por %p157, %p158
    %s161 = sadd.s32 %s160, 1
    %p164 = scmp.eq.s32.totalorder %s13, 1
    %p165 = scmp.ne.s32.totalorder %s160, %s162
    %p166 = scmp.eq.s32.totalorder %s13, 0
    %p167 = por %p165, %p166
    %p168 = scmp.ne.s32.totalorder %s160, %s162
    %p169 = scmp.eq.s32.totalorder %s18, 1
    %p170 = por %p168, %p169
    %p171 = scmp.ne.s32.totalorder %s162, %s163
    %p172 = scmp.eq.s32.totalorder %s18, 0
    %p173 = por %p171, %p172
    %p174 = scmp.ne.s32.totalorder %s162, %s163
    %p175 = scmp.eq.s32.totalorder %s19, 1
    %p176 = por %p174, %p175
    %p178 = scmp.ne.s32.totalorder %s163, %s177
    %p179 = scmp.eq.s32.totalorder %s19, 0
    %p180 = por %p178, %p179
    %s181 = ssub.s32 %s20, %s32
    %p182 = scmp.eq.s32.totalorder %s181, 0
    %s184 = sadd.s32 %s183, 1
    %s185 = scalar_select %p182, %s183, %s184
    %p188 = pneg %p182
    %p189 = scmp.eq.s32.totalorder %s13, 1
    %p190 = por %p188, %p189
    %p191 = scmp.ne.s32.totalorder %s183, %s186
    %p192 = scmp.eq.s32.totalorder %s13, 0
    %p193 = por %p191, %p192
    %p194 = scmp.ne.s32.totalorder %s183, %s186
    %p195 = scmp.eq.s32.totalorder %s18, 1
    %p196 = por %p194, %p195
    %p197 = scmp.ne.s32.totalorder %s186, %s187
    %p198 = scmp.eq.s32.totalorder %s18, 0
    %p199 = por %p197, %p198
    %p200 = scmp.ne.s32.totalorder %s186, %s187
    %p201 = scmp.eq.s32.totalorder %s19, 1
    %p202 = por %p200, %p201
    %p204 = scmp.ne.s32.totalorder %s187, %s203
    %p205 = scmp.eq.s32.totalorder %s19, 0
    %p206 = por %p204, %p205
    %s207 = ssub.s32 %s20, %s32
    %p208 = scmp.eq.s32.totalorder %s207, 0
    %s210 = sadd.s32 %s209, 1
    %s211 = scalar_select %p208, %s209, %s210
    %p214 = pneg %p208
    %p215 = scmp.eq.s32.totalorder %s13, 1
    %p216 = por %p214, %p215
    %p217 = scmp.ne.s32.totalorder %s209, %s212
    %p218 = scmp.eq.s32.totalorder %s13, 0
    %p219 = por %p217, %p218
    %p220 = scmp.ne.s32.totalorder %s209, %s212
    %p221 = scmp.eq.s32.totalorder %s18, 1
    %p222 = por %p220, %p221
    %p223 = scmp.ne.s32.totalorder %s212, %s213
    %p224 = scmp.eq.s32.totalorder %s18, 0
    %p225 = por %p223, %p224
    %p226 = scmp.ne.s32.totalorder %s212, %s213
    %p227 = scmp.eq.s32.totalorder %s19, 1
    %p228 = por %p226, %p227
    %p230 = scmp.ne.s32.totalorder %s213, %s229
    %p231 = scmp.eq.s32.totalorder %s19, 0
    %p232 = por %p230, %p231
    %p233 = scmp.le.s32.totalorder 1, %s13
    %p234 = scmp.lt.s32.totalorder %s13, 3
    %p235 = pnand %p233, %p234
    %p236 = pneg %p235
    // Predicated region
    $region9: #{_lambda_.7} parent=5 // pred_check
      _
    $region10: #{_lambda_.7} parent=5 // pred_check_branch
      %238 = sbr.rel (%p235) target = $region12
    $region11: #{_lambda_.7} parent=5 // pred_region
      %s239 = ssub.s32 %s13, 1
      // Predicated region
      $region13: #{_lambda_.7} parent=11 // pred_check
        %p240 = pneg %p105
      $region14: #{_lambda_.7} parent=11 // pred_check_branch
        %242 = sbr.rel (%p240) target = $region16
      $region15: #{_lambda_.7} parent=11 // pred_region
        %s243 = smul.u32 2, %s23
        %p244 = scmp.lt.s32.totalorder %s243, 1
        %s245 = scalar_select %p244, %s243, 1
        %s246 = scalar_lea.vmem %s2, %s245
        %s247 = smul.u32 2, %s23
      $region16: #{_lambda_.7} parent=11 // pred_fallthru
        _
      // Predicated region
      $region17: #{_lambda_.7} parent=11 // pred_check
        %p248 = pneg %p131
      $region18: #{_lambda_.7} parent=11 // pred_check_branch
        %250 = sbr.rel (%p248) target = $region20
      $region19: #{_lambda_.7} parent=11 // pred_region
        %s251 = smul.u32 32, %s23
        %p252 = scmp.lt.s32.totalorder %s251, 31
        %s253 = scalar_select %p252, %s251, 31
        %s254 = smul.addr %s253, 4
        %s255 = scalar_lea.vmem %s3, %s254
        %s256 = smul.u32 32, %s23
      $region20: #{_lambda_.7} parent=11 // pred_fallthru
        _
      // Predicated region
      $region21: #{_lambda_.7} parent=11 // pred_check
        %p257 = pneg %p152
      $region22: #{_lambda_.7} parent=11 // pred_check_branch
        %259 = sbr.rel (%p257) target = $region24
      $region23: #{_lambda_.7} parent=11 // pred_region
        _
      $region24: #{_lambda_.7} parent=11 // pred_fallthru
        _
      // Predicated region
      $region25: #{_lambda_.7} parent=11 // pred_check
        %p260 = pneg %p173
      $region26: #{_lambda_.7} parent=11 // pred_check_branch
        %262 = sbr.rel (%p260) target = $region28
      $region27: #{_lambda_.7} parent=11 // pred_region
        _
      $region28: #{_lambda_.7} parent=11 // pred_fallthru
        _
    $region12: #{_lambda_.7} parent=5 // pred_fallthru
      _
    %p263 = scmp.lt.s32.totalorder %s13, 2
    // Predicated region
    $region29: #{_lambda_.7} parent=5 // pred_check
      %p264 = pneg %p263
    $region30: #{_lambda_.7} parent=5 // pred_check_branch
      %266 = sbr.rel (%p264) target = $region32
    $region31: #{_lambda_.7} parent=5 // pred_region
      // Predicated region
      $region33: #{_lambda_.7} parent=31 // pred_check
        %p267 = pneg %p47
      $region34: #{_lambda_.7} parent=31 // pred_check_branch
        %269 = sbr.rel (%p267) target = $region36
      $region35: #{_lambda_.7} parent=31 // pred_region
        %s270 = smul.u32 16, %s20
        %s271 = smul.u32 2, %s21
        %p272 = scmp.lt.s32.totalorder %s270, 31
        %s273 = scalar_select %p272, %s270, 31
        %p274 = scmp.lt.s32.totalorder %s271, 1
        %s275 = scalar_select %p274, %s271, 1
        %s276 = smul.addr %s273, 2
        %s277 = sadd.s32 %s275, %s276
        %s278 = smul.addr %s277, 4
        %s279 = scalar_lea.vmem %s0, %s278
        %s280 = smul.u32 16, %s20
        %s281 = smul.u32 2, %s21
      $region36: #{_lambda_.7} parent=31 // pred_fallthru
        _
      // Predicated region
      $region37: #{_lambda_.7} parent=31 // pred_check
        %p282 = pneg %p73
      $region38: #{_lambda_.7} parent=31 // pred_check_branch
        %284 = sbr.rel (%p282) target = $region40
      $region39: #{_lambda_.7} parent=31 // pred_region
        %s285 = smul.u32 16, %s20
        %p286 = scmp.lt.s32.totalorder %s285, 31
        %s287 = scalar_select %p286, %s285, 31
        %s288 = smul.addr %s287, 8
        %s289 = scalar_lea.vmem %s1, %s288
        %s290 = smul.u32 16, %s20
      $region40: #{_lambda_.7} parent=31 // pred_fallthru
        _
      // Predicated region
      $region41: #{_lambda_.7} parent=31 // pred_check
        %p291 = pneg %p193
      $region42: #{_lambda_.7} parent=31 // pred_check_branch
        %293 = sbr.rel (%p291) target = $region44
      $region43: #{_lambda_.7} parent=31 // pred_region
        %s294 = smul.u32 16, %s20
        %p295 = scmp.lt.s32.totalorder %s294, 31
        %s296 = scalar_select %p295, %s294, 31
        %s297 = smul.addr %s296, 8
        %s298 = scalar_lea.vmem %s6, %s297
        %s299 = smul.u32 16, %s20
      $region44: #{_lambda_.7} parent=31 // pred_fallthru
        _
    $region32: #{_lambda_.7} parent=5 // pred_fallthru
      _
    %p300 = scmp.le.s32.totalorder 1, %s13
    %p301 = scmp.lt.s32.totalorder %s13, 3
    %p302 = pnand %p300, %p301
    %p303 = pneg %p302
    // Predicated region
    $region45: #{_lambda_.7} parent=5 // pred_check
      _
    $region46: #{_lambda_.7} parent=5 // pred_check_branch
      %305 = sbr.rel (%p302) target = $region48
    $region47: #{_lambda_.7} parent=5 // pred_region
      %s306 = ssub.s32 %s13, 1
      %s307 = smul.u32 16, %s22
      %s308 = smul.u32 2, %s23
      %p309 = scmp.lt.s32.totalorder %s307, 31
      %s310 = scalar_select %p309, %s307, 31
      %p311 = scmp.lt.s32.totalorder %s308, 1
      %s312 = scalar_select %p311, %s308, 1
      %s313 = smul.addr %s310, 2
      %s314 = sadd.s32 %s312, %s313
      %s315 = smul.addr %s314, 4
      %s316 = scalar_lea.vmem %s0, %s315
      %p317 = pneg %p53
      %p318 = pneg %p50
      %s319 = smul.u32 16, %s22
      %p320 = scmp.lt.s32.totalorder %s319, 31
      %s321 = scalar_select %p320, %s319, 31
      %s322 = smul.addr %s321, 8
      %s323 = scalar_lea.vmem %s1, %s322
      %p324 = pneg %p79
      %p325 = pneg %p76
      %s326 = smul.u32 2, %s23
      %p327 = scmp.lt.s32.totalorder %s326, 1
      %s328 = scalar_select %p327, %s326, 1
      %s329 = scalar_lea.vmem %s2, %s328
      %p330 = pneg %p105
      %p331 = pneg %p102
      %s332 = smul.u32 32, %s23
      %p333 = scmp.lt.s32.totalorder %s332, 31
      %s334 = scalar_select %p333, %s332, 31
      %s335 = smul.addr %s334, 4
      %s336 = scalar_lea.vmem %s3, %s335
      %p337 = pneg %p131
      %p338 = pneg %p128
      %p339 = pneg %p152
      %p340 = pneg %p149
      %p341 = pneg %p173
      %p342 = pneg %p170
      %s343 = smul.u32 16, %s22
      %p344 = scmp.lt.s32.totalorder %s343, 31
      %s345 = scalar_select %p344, %s343, 31
      %s346 = smul.addr %s345, 8
      %s347 = scalar_lea.vmem %s6, %s346
      %p348 = pneg %p199
      %p349 = pneg %p196
      %p350 = pneg %p225
      %p351 = pneg %p222
      %s352 = smul.u32 16, %s22
      %p353 = scmp.lt.s32.totalorder %s352, 31
      %s354 = scalar_select %p353, %s352, 31
      %s355 = smul.addr %s354, 4
      %s356 = scalar_lea.vmem %s7, %s355
      %s357 = smul.u32 16, %s22
      %s358 = smul.u32 2, %s23
      %p359 = scmp.lt.s32.totalorder %s357, 31
      %s360 = scalar_select %p359, %s357, 31
      %p361 = scmp.lt.s32.totalorder %s358, 1
      %s362 = scalar_select %p361, %s358, 1
      %s363 = smul.addr %s360, 2
      %s364 = sadd.s32 %s362, %s363
      %s365 = smul.addr %s364, 4
      %s366 = scalar_lea.vmem %s0, %s365
      %s367 = smul.u32 16, %s22
      %s368 = smul.u32 2, %s23
      %s369 = smul.u32 16, %s22
      %p370 = scmp.lt.s32.totalorder %s369, 31
      %s371 = scalar_select %p370, %s369, 31
      %s372 = smul.addr %s371, 8
      %s373 = scalar_lea.vmem %s1, %s372
      %s374 = smul.u32 16, %s22
      %s375 = smul.u32 2, %s23
      %p376 = scmp.lt.s32.totalorder %s375, 1
      %s377 = scalar_select %p376, %s375, 1
      %s378 = scalar_lea.vmem %s2, %s377
      %s379 = smul.u32 2, %s23
      %s380 = smul.u32 32, %s23
      %p381 = scmp.lt.s32.totalorder %s380, 31
      %s382 = scalar_select %p381, %s380, 31
      %s383 = smul.addr %s382, 4
      %s384 = scalar_lea.vmem %s3, %s383
      %s385 = smul.u32 32, %s23
      %s386 = smul.u32 16, %s22
      %p387 = scmp.lt.s32.totalorder %s386, 31
      %s388 = scalar_select %p387, %s386, 31
      %s389 = smul.addr %s388, 8
      %s390 = scalar_lea.vmem %s6, %s389
      %s391 = smul.u32 16, %s22
      %s392 = smul.u32 16, %s22
      %p393 = scmp.lt.s32.totalorder %s392, 31
      %s394 = scalar_select %p393, %s392, 31
      %s395 = smul.addr %s394, 4
      %s396 = scalar_lea.vmem %s7, %s395
      %s397 = smul.u32 16, %s22
      %p399 = scmp.eq.s32.totalorder %s22, 0
      // Predicated region
      $region49: #{_lambda_.7} parent=47 // pred_check
        %p400 = pneg %p399
      $region50: #{_lambda_.7} parent=47 // pred_check_branch
        %402 = sbr.rel (%p400) target = $region52
      $region51: #{_lambda_.7} parent=47 // pred_region
        %v403 = vld [vmem:[%s384] sm:$0xf]
        %v404 = vld [vmem:[%s384 + $0x4] sm:$0xf]
        %v405 = vld [vmem:[%s384 + $0x8] sm:$0xf]
        %v406 = vld [vmem:[%s384 + $0xc] sm:$0xf]
        %v407 = vld [vmem:[%s384 + $0x10] sm:$0xf]
        %v408 = vld [vmem:[%s384 + $0x14] sm:$0xf]
        %v409 = vld [vmem:[%s384 + $0x18] sm:$0xf]
        %v410 = vld [vmem:[%s384 + $0x1c] sm:$0xf]
        %v411 = vld [vmem:[%s384 + $0x20] sm:$0xf]
        %v412 = vld [vmem:[%s384 + $0x24] sm:$0xf]
        %v413 = vld [vmem:[%s384 + $0x28] sm:$0xf]
        %v414 = vld [vmem:[%s384 + $0x2c] sm:$0xf]
        %v415 = vld [vmem:[%s384 + $0x30] sm:$0xf]
        %v416 = vld [vmem:[%s384 + $0x34] sm:$0xf]
        %v417 = vld [vmem:[%s384 + $0x38] sm:$0xf]
        %v418 = vld [vmem:[%s384 + $0x3c] sm:$0xf]
        %v419 = vld [vmem:[%s384 + $0x40] sm:$0xf]
        %v420 = vld [vmem:[%s384 + $0x44] sm:$0xf]
        %v421 = vld [vmem:[%s384 + $0x48] sm:$0xf]
        %v422 = vld [vmem:[%s384 + $0x4c] sm:$0xf]
        %v423 = vld [vmem:[%s384 + $0x50] sm:$0xf]
        %v424 = vld [vmem:[%s384 + $0x54] sm:$0xf]
        %v425 = vld [vmem:[%s384 + $0x58] sm:$0xf]
        %v426 = vld [vmem:[%s384 + $0x5c] sm:$0xf]
        %v427 = vld [vmem:[%s384 + $0x60] sm:$0xf]
        %v428 = vld [vmem:[%s384 + $0x64] sm:$0xf]
        %v429 = vld [vmem:[%s384 + $0x68] sm:$0xf]
        %v430 = vld [vmem:[%s384 + $0x6c] sm:$0xf]
        %v431 = vld [vmem:[%s384 + $0x70] sm:$0xf]
        %v432 = vld [vmem:[%s384 + $0x74] sm:$0xf]
        %v433 = vld [vmem:[%s384 + $0x78] sm:$0xf]
        %v434 = vld [vmem:[%s384 + $0x7c] sm:$0xf]
        %v435 = vld [vmem:[%s4] sm:$0xf]
        %v436 = vld [vmem:[%s4 + $0x4] sm:$0xf]
        %v437 = vld [vmem:[%s4 + $0x8] sm:$0xf]
        %v438 = vld [vmem:[%s4 + $0xc] sm:$0xf]
        %v439 = vld [vmem:[%s4 + $0x10] sm:$0xf]
        %v440 = vld [vmem:[%s4 + $0x14] sm:$0xf]
        %v441 = vld [vmem:[%s4 + $0x18] sm:$0xf]
        %v442 = vld [vmem:[%s4 + $0x1c] sm:$0xf]
        %v443 = vld [vmem:[%s4 + $0x20] sm:$0xf]
        %v444 = vld [vmem:[%s4 + $0x24] sm:$0xf]
        %v445 = vld [vmem:[%s4 + $0x28] sm:$0xf]
        %v446 = vld [vmem:[%s4 + $0x2c] sm:$0xf]
        %v447 = vld [vmem:[%s4 + $0x30] sm:$0xf]
        %v448 = vld [vmem:[%s4 + $0x34] sm:$0xf]
        %v449 = vld [vmem:[%s4 + $0x38] sm:$0xf]
        %v450 = vld [vmem:[%s4 + $0x3c] sm:$0xf]
        %v483 = vunpack.c.l.b16 %v403
        %v484 = vunpack.c.l.b16 %v404
        %v485 = vunpack.c.l.b16 %v405
        %v486 = vunpack.c.l.b16 %v406
        %v487 = vunpack.c.l.b16 %v407
        %v488 = vunpack.c.l.b16 %v408
        %v489 = vunpack.c.l.b16 %v409
        %v490 = vunpack.c.l.b16 %v410
        %v491 = vunpack.c.l.b16 %v411
        %v492 = vunpack.c.l.b16 %v412
        %v493 = vunpack.c.l.b16 %v413
        %v494 = vunpack.c.l.b16 %v414
        %v495 = vunpack.c.l.b16 %v415
        %v496 = vunpack.c.l.b16 %v416
        %v497 = vunpack.c.l.b16 %v417
        %v498 = vunpack.c.l.b16 %v418
        %v499 = vunpack.c.l.b16 %v419
        %v500 = vunpack.c.l.b16 %v420
        %v501 = vunpack.c.l.b16 %v421
        %v502 = vunpack.c.l.b16 %v422
        %v503 = vunpack.c.l.b16 %v423
        %v504 = vunpack.c.l.b16 %v424
        %v505 = vunpack.c.l.b16 %v425
        %v506 = vunpack.c.l.b16 %v426
        %v507 = vunpack.c.l.b16 %v427
        %v508 = vunpack.c.l.b16 %v428
        %v509 = vunpack.c.l.b16 %v429
        %v510 = vunpack.c.l.b16 %v430
        %v511 = vunpack.c.l.b16 %v431
        %v512 = vunpack.c.l.b16 %v432
        %v513 = vunpack.c.l.b16 %v433
        %v514 = vunpack.c.l.b16 %v434
        %v515 = vpack.c.b16 %v484, %v483
        %v516 = vpack.c.b16 %v486, %v485
        %v517 = vpack.c.b16 %v488, %v487
        %v518 = vpack.c.b16 %v490, %v489
        %v519 = vpack.c.b16 %v492, %v491
        %v520 = vpack.c.b16 %v494, %v493
        %v521 = vpack.c.b16 %v496, %v495
        %v522 = vpack.c.b16 %v498, %v497
        %v523 = vpack.c.b16 %v500, %v499
        %v524 = vpack.c.b16 %v502, %v501
        %v525 = vpack.c.b16 %v504, %v503
        %v526 = vpack.c.b16 %v506, %v505
        %v527 = vpack.c.b16 %v508, %v507
        %v528 = vpack.c.b16 %v510, %v509
        %v529 = vpack.c.b16 %v512, %v511
        %v530 = vpack.c.b16 %v514, %v513
        %v563 = vunpack.c.l.b16 %v435
        %v564 = vunpack.c.l.b16 %v436
        %v565 = vunpack.c.l.b16 %v437
        %v566 = vunpack.c.l.b16 %v438
        %v567 = vunpack.c.l.b16 %v439
        %v568 = vunpack.c.l.b16 %v440
        %v569 = vunpack.c.l.b16 %v441
        %v570 = vunpack.c.l.b16 %v442
        %v571 = vunpack.c.l.b16 %v443
        %v572 = vunpack.c.l.b16 %v444
        %v573 = vunpack.c.l.b16 %v445
        %v574 = vunpack.c.l.b16 %v446
        %v575 = vunpack.c.l.b16 %v447
        %v576 = vunpack.c.l.b16 %v448
        %v577 = vunpack.c.l.b16 %v449
        %v578 = vunpack.c.l.b16 %v450
        %v579 = vpack.c.b16 %v564, %v563
        %v580 = vpack.c.b16 %v566, %v565
        %v581 = vpack.c.b16 %v568, %v567
        %v582 = vpack.c.b16 %v570, %v569
        %v583 = vpack.c.b16 %v572, %v571
        %v584 = vpack.c.b16 %v574, %v573
        %v585 = vpack.c.b16 %v576, %v575
        %v586 = vpack.c.b16 %v578, %v577
        %595 = vmatprep.subr.bf16.mxu0 0
        %596 = vmatpush1.bf16.msra.mxu0 %v586
        %597 = vmatprep.subr.bf16.mxu0 0
        %598 = vmatpush1.bf16.msra.mxu0 %v585
        %599 = vmatprep.subr.bf16.mxu0 0
        %600 = vmatpush1.bf16.msra.mxu0 %v584
        %601 = vmatprep.subr.bf16.mxu0 0
        %602 = vmatpush1.bf16.msra.mxu0 %v583
        %603 = vmatprep.subr.bf16.mxu0 0
        %604 = vmatpush1.bf16.msra.mxu0 %v582
        %605 = vmatprep.subr.bf16.mxu0 0
        %606 = vmatpush1.bf16.msra.mxu0 %v581
        %607 = vmatprep.subr.bf16.mxu0 0
        %608 = vmatpush1.bf16.msra.mxu0 %v580
        %609 = vmatprep.subr.bf16.mxu0 0
        %610 = vmatpush1.bf16.msra.mxu0 %v579
        %611 = vmatprep.subr.bf16.mxu0 0
        %612 = vmatpush2.bf16.msra.mxu0 0
        %613 = vmatprep.subr.bf16.mxu0 0
        %614 = vmatpush2.bf16.msra.mxu0 0
        %615 = vmatprep.subr.bf16.mxu0 0
        %616 = vmatpush2.bf16.msra.mxu0 0
        %617 = vmatprep.subr.bf16.mxu0 0
        %618 = vmatpush2.bf16.msra.mxu0 0
        %619 = vmatprep.subr.bf16.mxu0 0
        %620 = vmatpush2.bf16.msra.mxu0 0
        %621 = vmatprep.subr.bf16.mxu0 0
        %622 = vmatpush2.bf16.msra.mxu0 0
        %623 = vmatprep.subr.bf16.mxu0 0
        %624 = vmatpush2.bf16.msra.mxu0 0
        %625 = vmatprep.subr.bf16.mxu0 0
        %626 = vmatpush2.bf16.msra.mxu0 0
        %627 = vmatprep.mubr.bf16.mxu0 0
        %628 = vmatmul.mubr.bf16.gmra.mxu0 %v515
        %v629 = vpop.f32.mrf.mxu0
        %v630 = vadd.f32 0.0, %v629
        %v631 = vpop.f32.mrf.mxu0
        %v632 = vpop.f32.mrf.mxu0
        %v633 = vadd.f32 0.0, %v632
        %v634 = vpop.f32.mrf.mxu0
        %635 = vmatprep.mubr.bf16.mxu0 0
        %636 = vmatmul.mubr.bf16.gmra.mxu0 %v516
        %v637 = vpop.f32.mrf.mxu0
        %v638 = vadd.f32 0.0, %v637
        %v639 = vpop.f32.mrf.mxu0
        %v640 = vpop.f32.mrf.mxu0
        %v641 = vadd.f32 0.0, %v640
        %v642 = vpop.f32.mrf.mxu0
        %643 = vmatprep.mubr.bf16.mxu0 0
        %644 = vmatmul.mubr.bf16.gmra.mxu0 %v517
        %v645 = vpop.f32.mrf.mxu0
        %v646 = vadd.f32 0.0, %v645
        %v647 = vpop.f32.mrf.mxu0
        %v648 = vpop.f32.mrf.mxu0
        %v649 = vadd.f32 0.0, %v648
        %v650 = vpop.f32.mrf.mxu0
        %651 = vmatprep.mubr.bf16.mxu0 0
        %652 = vmatmul.mubr.bf16.gmra.mxu0 %v518
        %v653 = vpop.f32.mrf.mxu0
        %v654 = vadd.f32 0.0, %v653
        %v655 = vpop.f32.mrf.mxu0
        %v656 = vpop.f32.mrf.mxu0
        %v657 = vadd.f32 0.0, %v656
        %v658 = vpop.f32.mrf.mxu0
        %659 = vmatprep.mubr.bf16.mxu0 0
        %660 = vmatmul.mubr.bf16.gmra.mxu0 %v519
        %v661 = vpop.f32.mrf.mxu0
        %v662 = vadd.f32 0.0, %v661
        %v663 = vpop.f32.mrf.mxu0
        %v664 = vpop.f32.mrf.mxu0
        %v665 = vadd.f32 0.0, %v664
        %v666 = vpop.f32.mrf.mxu0
        %667 = vmatprep.mubr.bf16.mxu0 0
        %668 = vmatmul.mubr.bf16.gmra.mxu0 %v520
        %v669 = vpop.f32.mrf.mxu0
        %v670 = vadd.f32 0.0, %v669
        %v671 = vpop.f32.mrf.mxu0
        %v672 = vpop.f32.mrf.mxu0
        %v673 = vadd.f32 0.0, %v672
        %v674 = vpop.f32.mrf.mxu0
        %675 = vmatprep.mubr.bf16.mxu0 0
        %676 = vmatmul.mubr.bf16.gmra.mxu0 %v521
        %v677 = vpop.f32.mrf.mxu0
        %v678 = vadd.f32 0.0, %v677
        %v679 = vpop.f32.mrf.mxu0
        %v680 = vpop.f32.mrf.mxu0
        %v681 = vadd.f32 0.0, %v680
        %v682 = vpop.f32.mrf.mxu0
        %683 = vmatprep.mubr.bf16.mxu0 0
        %684 = vmatmul.mubr.bf16.gmra.mxu0 %v522
        %v685 = vpop.f32.mrf.mxu0
        %v686 = vadd.f32 0.0, %v685
        %v687 = vpop.f32.mrf.mxu0
        %v688 = vpop.f32.mrf.mxu0
        %v689 = vadd.f32 0.0, %v688
        %v690 = vpop.f32.mrf.mxu0
        %691 = vmatprep.mubr.bf16.mxu0 0
        %692 = vmatmul.mubr.bf16.gmra.mxu0 %v523
        %v693 = vpop.f32.mrf.mxu0
        %v694 = vadd.f32 0.0, %v693
        %v695 = vpop.f32.mrf.mxu0
        %v696 = vpop.f32.mrf.mxu0
        %v697 = vadd.f32 0.0, %v696
        %v698 = vpop.f32.mrf.mxu0
        %699 = vmatprep.mubr.bf16.mxu0 0
        %700 = vmatmul.mubr.bf16.gmra.mxu0 %v524
        %v701 = vpop.f32.mrf.mxu0
        %v702 = vadd.f32 0.0, %v701
        %v703 = vpop.f32.mrf.mxu0
        %v704 = vpop.f32.mrf.mxu0
        %v705 = vadd.f32 0.0, %v704
        %v706 = vpop.f32.mrf.mxu0
        %707 = vmatprep.mubr.bf16.mxu0 0
        %708 = vmatmul.mubr.bf16.gmra.mxu0 %v525
        %v709 = vpop.f32.mrf.mxu0
        %v710 = vadd.f32 0.0, %v709
        %v711 = vpop.f32.mrf.mxu0
        %v712 = vpop.f32.mrf.mxu0
        %v713 = vadd.f32 0.0, %v712
        %v714 = vpop.f32.mrf.mxu0
        %715 = vmatprep.mubr.bf16.mxu0 0
        %716 = vmatmul.mubr.bf16.gmra.mxu0 %v526
        %v717 = vpop.f32.mrf.mxu0
        %v718 = vadd.f32 0.0, %v717
        %v719 = vpop.f32.mrf.mxu0
        %v720 = vpop.f32.mrf.mxu0
        %v721 = vadd.f32 0.0, %v720
        %v722 = vpop.f32.mrf.mxu0
        %723 = vmatprep.mubr.bf16.mxu0 0
        %724 = vmatmul.mubr.bf16.gmra.mxu0 %v527
        %v725 = vpop.f32.mrf.mxu0
        %v726 = vadd.f32 0.0, %v725
        %v727 = vpop.f32.mrf.mxu0
        %v728 = vpop.f32.mrf.mxu0
        %v729 = vadd.f32 0.0, %v728
        %v730 = vpop.f32.mrf.mxu0
        %731 = vmatprep.mubr.bf16.mxu0 0
        %732 = vmatmul.mubr.bf16.gmra.mxu0 %v528
        %v733 = vpop.f32.mrf.mxu0
        %v734 = vadd.f32 0.0, %v733
        %v735 = vpop.f32.mrf.mxu0
        %v736 = vpop.f32.mrf.mxu0
        %v737 = vadd.f32 0.0, %v736
        %v738 = vpop.f32.mrf.mxu0
        %739 = vmatprep.mubr.bf16.mxu0 0
        %740 = vmatmul.mubr.bf16.gmra.mxu0 %v529
        %v741 = vpop.f32.mrf.mxu0
        %v742 = vadd.f32 0.0, %v741
        %v743 = vpop.f32.mrf.mxu0
        %v744 = vpop.f32.mrf.mxu0
        %v745 = vadd.f32 0.0, %v744
        %v746 = vpop.f32.mrf.mxu0
        %747 = vmatprep.mubr.bf16.mxu0 0
        %748 = vmatmul.mubr.bf16.gmra.mxu0 %v530
        %v749 = vpop.f32.mrf.mxu0
        %v750 = vadd.f32 0.0, %v749
        %v751 = vpop.f32.mrf.mxu0
        %v752 = vpop.f32.mrf.mxu0
        %v753 = vadd.f32 0.0, %v752
        %v754 = vpop.f32.mrf.mxu0
        %755 = vdwg.mxu0
        %v756 = vpack.c.bf16 %v633, %v630
        %v757 = vpack.c.bf16 %v641, %v638
        %v758 = vpack.c.bf16 %v649, %v646
        %v759 = vpack.c.bf16 %v657, %v654
        %v760 = vpack.c.bf16 %v665, %v662
        %v761 = vpack.c.bf16 %v673, %v670
        %v762 = vpack.c.bf16 %v681, %v678
        %v763 = vpack.c.bf16 %v689, %v686
        %v764 = vpack.c.bf16 %v697, %v694
        %v765 = vpack.c.bf16 %v705, %v702
        %v766 = vpack.c.bf16 %v713, %v710
        %v767 = vpack.c.bf16 %v721, %v718
        %v768 = vpack.c.bf16 %v729, %v726
        %v769 = vpack.c.bf16 %v737, %v734
        %v770 = vpack.c.bf16 %v745, %v742
        %v771 = vpack.c.bf16 %v753, %v750
        %s772 = smul.u32 %s23, 256
        %v789 = vunpack.c.l.b16 %v756
        %v790 = vunpack.c.h.b16 %v756
        %v791 = vunpack.c.l.b16 %v757
        %v792 = vunpack.c.h.b16 %v757
        %v793 = vunpack.c.l.b16 %v758
        %v794 = vunpack.c.h.b16 %v758
        %v795 = vunpack.c.l.b16 %v759
        %v796 = vunpack.c.h.b16 %v759
        %v797 = vunpack.c.l.b16 %v760
        %v798 = vunpack.c.h.b16 %v760
        %v799 = vunpack.c.l.b16 %v761
        %v800 = vunpack.c.h.b16 %v761
        %v801 = vunpack.c.l.b16 %v762
        %v802 = vunpack.c.h.b16 %v762
        %v803 = vunpack.c.l.b16 %v763
        %v804 = vunpack.c.h.b16 %v763
        %v805 = vunpack.c.l.b16 %v764
        %v806 = vunpack.c.h.b16 %v764
        %v807 = vunpack.c.l.b16 %v765
        %v808 = vunpack.c.h.b16 %v765
        %v809 = vunpack.c.l.b16 %v766
        %v810 = vunpack.c.h.b16 %v766
        %v811 = vunpack.c.l.b16 %v767
        %v812 = vunpack.c.h.b16 %v767
        %v813 = vunpack.c.l.b16 %v768
        %v814 = vunpack.c.h.b16 %v768
        %v815 = vunpack.c.l.b16 %v769
        %v816 = vunpack.c.h.b16 %v769
        %v817 = vunpack.c.l.b16 %v770
        %v818 = vunpack.c.h.b16 %v770
        %v819 = vunpack.c.l.b16 %v771
        %v820 = vunpack.c.h.b16 %v771
        %v821 = vpack.c.b16 %v789, %v789
        %v822 = vpack.c.b16 %v790, %v790
        %v823 = vpack.c.b16 %v791, %v791
        %v824 = vpack.c.b16 %v792, %v792
        %v825 = vpack.c.b16 %v793, %v793
        %v826 = vpack.c.b16 %v794, %v794
        %v827 = vpack.c.b16 %v795, %v795
        %v828 = vpack.c.b16 %v796, %v796
        %v829 = vpack.c.b16 %v797, %v797
        %v830 = vpack.c.b16 %v798, %v798
        %v831 = vpack.c.b16 %v799, %v799
        %v832 = vpack.c.b16 %v800, %v800
        %v833 = vpack.c.b16 %v801, %v801
        %v834 = vpack.c.b16 %v802, %v802
        %v835 = vpack.c.b16 %v803, %v803
        %v836 = vpack.c.b16 %v804, %v804
        %v837 = vpack.c.b16 %v805, %v805
        %v838 = vpack.c.b16 %v806, %v806
        %v839 = vpack.c.b16 %v807, %v807
        %v840 = vpack.c.b16 %v808, %v808
        %v841 = vpack.c.b16 %v809, %v809
        %v842 = vpack.c.b16 %v810, %v810
        %v843 = vpack.c.b16 %v811, %v811
        %v844 = vpack.c.b16 %v812, %v812
        %v845 = vpack.c.b16 %v813, %v813
        %v846 = vpack.c.b16 %v814, %v814
        %v847 = vpack.c.b16 %v815, %v815
        %v848 = vpack.c.b16 %v816, %v816
        %v849 = vpack.c.b16 %v817, %v817
        %v850 = vpack.c.b16 %v818, %v818
        %v851 = vpack.c.b16 %v819, %v819
        %v852 = vpack.c.b16 %v820, %v820
        %s885 = sshra.s32 %s772, 3
        %s886 = sand.u32 %s772, 7
        %s887 = smul.addr %s885, 4
        %s888 = scalar_lea.vmem [#allocation2], %s887
        %889 = vst [vmem:[%s888] sm:$0xf] %v821
        %890 = vst [vmem:[%s888 + $0x4] sm:$0xf] %v822
        %891 = vst [vmem:[%s888 + $0x8] sm:$0xf] %v823
        %892 = vst [vmem:[%s888 + $0xc] sm:$0xf] %v824
        %893 = vst [vmem:[%s888 + $0x10] sm:$0xf] %v825
        %894 = vst [vmem:[%s888 + $0x14] sm:$0xf] %v826
        %895 = vst [vmem:[%s888 + $0x18] sm:$0xf] %v827
        %896 = vst [vmem:[%s888 + $0x1c] sm:$0xf] %v828
        %897 = vst [vmem:[%s888 + $0x20] sm:$0xf] %v829
        %898 = vst [vmem:[%s888 + $0x24] sm:$0xf] %v830
        %899 = vst [vmem:[%s888 + $0x28] sm:$0xf] %v831
        %900 = vst [vmem:[%s888 + $0x2c] sm:$0xf] %v832
        %901 = vst [vmem:[%s888 + $0x30] sm:$0xf] %v833
        %902 = vst [vmem:[%s888 + $0x34] sm:$0xf] %v834
        %903 = vst [vmem:[%s888 + $0x38] sm:$0xf] %v835
        %904 = vst [vmem:[%s888 + $0x3c] sm:$0xf] %v836
        %905 = vst [vmem:[%s888 + $0x40] sm:$0xf] %v837
        %906 = vst [vmem:[%s888 + $0x44] sm:$0xf] %v838
        %907 = vst [vmem:[%s888 + $0x48] sm:$0xf] %v839
        %908 = vst [vmem:[%s888 + $0x4c] sm:$0xf] %v840
        %909 = vst [vmem:[%s888 + $0x50] sm:$0xf] %v841
        %910 = vst [vmem:[%s888 + $0x54] sm:$0xf] %v842
        %911 = vst [vmem:[%s888 + $0x58] sm:$0xf] %v843
        %912 = vst [vmem:[%s888 + $0x5c] sm:$0xf] %v844
        %913 = vst [vmem:[%s888 + $0x60] sm:$0xf] %v845
        %914 = vst [vmem:[%s888 + $0x64] sm:$0xf] %v846
        %915 = vst [vmem:[%s888 + $0x68] sm:$0xf] %v847
        %916 = vst [vmem:[%s888 + $0x6c] sm:$0xf] %v848
        %917 = vst [vmem:[%s888 + $0x70] sm:$0xf] %v849
        %918 = vst [vmem:[%s888 + $0x74] sm:$0xf] %v850
        %919 = vst [vmem:[%s888 + $0x78] sm:$0xf] %v851
        %920 = vst [vmem:[%s888 + $0x7c] sm:$0xf] %v852
      $region52: #{_lambda_.7} parent=47 // pred_fallthru
        _
      %p921 = scmp.eq.s32.totalorder %s23, 0
      // Predicated region
      $region53: #{_lambda_.7} parent=47 // pred_check
        %p922 = pneg %p921
      $region54: #{_lambda_.7} parent=47 // pred_check_branch
        %924 = sbr.rel (%p922) target = $region56
      $region55: #{_lambda_.7} parent=47 // pred_region
        %925 = vst [vmem:[#allocation3] sm:$0xff] 0.0
        %926 = vst [vmem:[#allocation3 + $0x8] sm:$0xff] 0.0
        %927 = vst [vmem:[#allocation3 + $0x10] sm:$0xff] 0.0
        %928 = vst [vmem:[#allocation3 + $0x18] sm:$0xff] 0.0
        %929 = vst [vmem:[#allocation3 + $0x20] sm:$0xff] 0.0
        %930 = vst [vmem:[#allocation3 + $0x28] sm:$0xff] 0.0
        %931 = vst [vmem:[#allocation3 + $0x30] sm:$0xff] 0.0
        %932 = vst [vmem:[#allocation3 + $0x38] sm:$0xff] 0.0
        %933 = vst [vmem:[#allocation3 + $0x40] sm:$0xff] 0.0
        %934 = vst [vmem:[#allocation3 + $0x48] sm:$0xff] 0.0
        %935 = vst [vmem:[#allocation3 + $0x50] sm:$0xff] 0.0
        %936 = vst [vmem:[#allocation3 + $0x58] sm:$0xff] 0.0
        %937 = vst [vmem:[#allocation3 + $0x60] sm:$0xff] 0.0
        %938 = vst [vmem:[#allocation3 + $0x68] sm:$0xff] 0.0
        %939 = vst [vmem:[#allocation3 + $0x70] sm:$0xff] 0.0
        %940 = vst [vmem:[#allocation3 + $0x78] sm:$0xff] 0.0
      $region56: #{_lambda_.7} parent=47 // pred_fallthru
        _
      %v941 = vld [vmem:[%s366] sm:$0xff]
      %v942 = vld [vmem:[%s366 + $0x8] sm:$0xff]
      %v943 = vld [vmem:[%s366 + $0x10] sm:$0xff]
      %v944 = vld [vmem:[%s366 + $0x18] sm:$0xff]
      %v945 = vld [vmem:[%s366 + $0x20] sm:$0xff]
      %v946 = vld [vmem:[%s366 + $0x28] sm:$0xff]
      %v947 = vld [vmem:[%s366 + $0x30] sm:$0xff]
      %v948 = vld [vmem:[%s366 + $0x38] sm:$0xff]
      %v949 = vld [vmem:[%s366 + $0x40] sm:$0xff]
      %v950 = vld [vmem:[%s366 + $0x48] sm:$0xff]
      %v951 = vld [vmem:[%s366 + $0x50] sm:$0xff]
      %v952 = vld [vmem:[%s366 + $0x58] sm:$0xff]
      %v953 = vld [vmem:[%s366 + $0x60] sm:$0xff]
      %v954 = vld [vmem:[%s366 + $0x68] sm:$0xff]
      %v955 = vld [vmem:[%s366 + $0x70] sm:$0xff]
      %v956 = vld [vmem:[%s366 + $0x78] sm:$0xff]
      %v957 = vunpack.c.l.bf16 %v941
      %v958 = vunpack.c.h.bf16 %v941
      %v959 = vunpack.c.l.bf16 %v942
      %v960 = vunpack.c.h.bf16 %v942
      %v961 = vunpack.c.l.bf16 %v943
      %v962 = vunpack.c.h.bf16 %v943
      %v963 = vunpack.c.l.bf16 %v944
      %v964 = vunpack.c.h.bf16 %v944
      %v965 = vunpack.c.l.bf16 %v945
      %v966 = vunpack.c.h.bf16 %v945
      %v967 = vunpack.c.l.bf16 %v946
      %v968 = vunpack.c.h.bf16 %v946
      %v969 = vunpack.c.l.bf16 %v947
      %v970 = vunpack.c.h.bf16 %v947
      %v971 = vunpack.c.l.bf16 %v948
      %v972 = vunpack.c.h.bf16 %v948
      %v973 = vunpack.c.l.bf16 %v949
      %v974 = vunpack.c.h.bf16 %v949
      %v975 = vunpack.c.l.bf16 %v950
      %v976 = vunpack.c.h.bf16 %v950
      %v977 = vunpack.c.l.bf16 %v951
      %v978 = vunpack.c.h.bf16 %v951
      %v979 = vunpack.c.l.bf16 %v952
      %v980 = vunpack.c.h.bf16 %v952
      %v981 = vunpack.c.l.bf16 %v953
      %v982 = vunpack.c.h.bf16 %v953
      %v983 = vunpack.c.l.bf16 %v954
      %v984 = vunpack.c.h.bf16 %v954
      %v985 = vunpack.c.l.bf16 %v955
      %v986 = vunpack.c.h.bf16 %v955
      %v987 = vunpack.c.l.bf16 %v956
      %v988 = vunpack.c.h.bf16 %v956
      %v989 = vld [vmem:[%s373] sm:$0xff]
      %v990 = vld [vmem:[%s373 + $0x8] sm:$0xff]
      %v991 = vld [vmem:[%s373 + $0x10] sm:$0xff]
      %v992 = vld [vmem:[%s373 + $0x18] sm:$0xff]
      %v993 = vld [vmem:[%s373 + $0x20] sm:$0xff]
      %v994 = vld [vmem:[%s373 + $0x28] sm:$0xff]
      %v995 = vld [vmem:[%s373 + $0x30] sm:$0xff]
      %v996 = vld [vmem:[%s373 + $0x38] sm:$0xff]
      %v997 = vld [vmem:[%s373 + $0x40] sm:$0xff]
      %v998 = vld [vmem:[%s373 + $0x48] sm:$0xff]
      %v999 = vld [vmem:[%s373 + $0x50] sm:$0xff]
      %v1000 = vld [vmem:[%s373 + $0x58] sm:$0xff]
      %v1001 = vld [vmem:[%s373 + $0x60] sm:$0xff]
      %v1002 = vld [vmem:[%s373 + $0x68] sm:$0xff]
      %v1003 = vld [vmem:[%s373 + $0x70] sm:$0xff]
      %v1004 = vld [vmem:[%s373 + $0x78] sm:$0xff]
      %1006 = vset.pattern.permute.xlu0 0
      %1007 = vperm.xlu0 %1006, %v989
      %v1008 = vpop.permute.xlu0 %1007
      %1011 = vset.pattern.permute.xlu0 0
      %1012 = vperm.xlu0 %1011, %v990
      %v1013 = vpop.permute.xlu0 %1012
      %1016 = vset.pattern.permute.xlu0 0
      %1017 = vperm.xlu0 %1016, %v991
      %v1018 = vpop.permute.xlu0 %1017
      %1021 = vset.pattern.permute.xlu0 0
      %1022 = vperm.xlu0 %1021, %v992
      %v1023 = vpop.permute.xlu0 %1022
      %1026 = vset.pattern.permute.xlu0 0
      %1027 = vperm.xlu0 %1026, %v993
      %v1028 = vpop.permute.xlu0 %1027
      %1031 = vset.pattern.permute.xlu0 0
      %1032 = vperm.xlu0 %1031, %v994
      %v1033 = vpop.permute.xlu0 %1032
      %1036 = vset.pattern.permute.xlu0 0
      %1037 = vperm.xlu0 %1036, %v995
      %v1038 = vpop.permute.xlu0 %1037
      %1041 = vset.pattern.permute.xlu0 0
      %1042 = vperm.xlu0 %1041, %v996
      %v1043 = vpop.permute.xlu0 %1042
      %1046 = vset.pattern.permute.xlu0 0
      %1047 = vperm.xlu0 %1046, %v997
      %v1048 = vpop.permute.xlu0 %1047
      %1051 = vset.pattern.permute.xlu0 0
      %1052 = vperm.xlu0 %1051, %v998
      %v1053 = vpop.permute.xlu0 %1052
      %1056 = vset.pattern.permute.xlu0 0
      %1057 = vperm.xlu0 %1056, %v999
      %v1058 = vpop.permute.xlu0 %1057
      %1061 = vset.pattern.permute.xlu0 0
      %1062 = vperm.xlu0 %1061, %v1000
      %v1063 = vpop.permute.xlu0 %1062
      %1066 = vset.pattern.permute.xlu0 0
      %1067 = vperm.xlu0 %1066, %v1001
      %v1068 = vpop.permute.xlu0 %1067
      %1071 = vset.pattern.permute.xlu0 0
      %1072 = vperm.xlu0 %1071, %v1002
      %v1073 = vpop.permute.xlu0 %1072
      %1076 = vset.pattern.permute.xlu0 0
      %1077 = vperm.xlu0 %1076, %v1003
      %v1078 = vpop.permute.xlu0 %1077
      %1081 = vset.pattern.permute.xlu0 0
      %1082 = vperm.xlu0 %1081, %v1004
      %v1083 = vpop.permute.xlu0 %1082
      %v1085 = vmul.f32 %v957, %v1008
      %v1086 = vmul.f32 %v958, %v1008
      %v1087 = vmul.f32 %v959, %v1013
      %v1088 = vmul.f32 %v960, %v1013
      %v1089 = vmul.f32 %v961, %v1018
      %v1090 = vmul.f32 %v962, %v1018
      %v1091 = vmul.f32 %v963, %v1023
      %v1092 = vmul.f32 %v964, %v1023
      %v1093 = vmul.f32 %v965, %v1028
      %v1094 = vmul.f32 %v966, %v1028
      %v1095 = vmul.f32 %v967, %v1033
      %v1096 = vmul.f32 %v968, %v1033
      %v1097 = vmul.f32 %v969, %v1038
      %v1098 = vmul.f32 %v970, %v1038
      %v1099 = vmul.f32 %v971, %v1043
      %v1100 = vmul.f32 %v972, %v1043
      %v1101 = vmul.f32 %v973, %v1048
      %v1102 = vmul.f32 %v974, %v1048
      %v1103 = vmul.f32 %v975, %v1053
      %v1104 = vmul.f32 %v976, %v1053
      %v1105 = vmul.f32 %v977, %v1058
      %v1106 = vmul.f32 %v978, %v1058
      %v1107 = vmul.f32 %v979, %v1063
      %v1108 = vmul.f32 %v980, %v1063
      %v1109 = vmul.f32 %v981, %v1068
      %v1110 = vmul.f32 %v982, %v1068
      %v1111 = vmul.f32 %v983, %v1073
      %v1112 = vmul.f32 %v984, %v1073
      %v1113 = vmul.f32 %v985, %v1078
      %v1114 = vmul.f32 %v986, %v1078
      %v1115 = vmul.f32 %v987, %v1083
      %v1116 = vmul.f32 %v988, %v1083
      %v1117 = vld [vmem:[%s378] sm:$0x3]
      %v1119 = vlaneseq
      %v1120 = vshrl.u32 %v1119, 7
      %v1121 = vsub.s32 0, %v1120
      %v1122 = vrot.slane %v1117, %v1121
      %v1123 = vlaneseq
      %v1124 = vshrl.u32 %v1123, 7
      %v1125 = vsub.s32 1, %v1124
      %v1126 = vrot.slane %v1117, %v1125
      %v1129 = vmul.f32 %v1085, %v1122
      %v1130 = vmul.f32 %v1086, %v1126
      %v1131 = vmul.f32 %v1087, %v1122
      %v1132 = vmul.f32 %v1088, %v1126
      %v1133 = vmul.f32 %v1089, %v1122
      %v1134 = vmul.f32 %v1090, %v1126
      %v1135 = vmul.f32 %v1091, %v1122
      %v1136 = vmul.f32 %v1092, %v1126
      %v1137 = vmul.f32 %v1093, %v1122
      %v1138 = vmul.f32 %v1094, %v1126
      %v1139 = vmul.f32 %v1095, %v1122
      %v1140 = vmul.f32 %v1096, %v1126
      %v1141 = vmul.f32 %v1097, %v1122
      %v1142 = vmul.f32 %v1098, %v1126
      %v1143 = vmul.f32 %v1099, %v1122
      %v1144 = vmul.f32 %v1100, %v1126
      %v1145 = vmul.f32 %v1101, %v1122
      %v1146 = vmul.f32 %v1102, %v1126
      %v1147 = vmul.f32 %v1103, %v1122
      %v1148 = vmul.f32 %v1104, %v1126
      %v1149 = vmul.f32 %v1105, %v1122
      %v1150 = vmul.f32 %v1106, %v1126
      %v1151 = vmul.f32 %v1107, %v1122
      %v1152 = vmul.f32 %v1108, %v1126
      %v1153 = vmul.f32 %v1109, %v1122
      %v1154 = vmul.f32 %v1110, %v1126
      %v1155 = vmul.f32 %v1111, %v1122
      %v1156 = vmul.f32 %v1112, %v1126
      %v1157 = vmul.f32 %v1113, %v1122
      %v1158 = vmul.f32 %v1114, %v1126
      %v1159 = vmul.f32 %v1115, %v1122
      %v1160 = vmul.f32 %v1116, %v1126
      %s1161 = smul.u32 %s23, 256
      %s1162 = sshra.s32 %s1161, 3
      %s1163 = sand.u32 %s1161, 7
      %s1164 = smul.addr %s1162, 4
      %s1165 = scalar_lea.vmem [#allocation2], %s1164
      %v1166 = vld [vmem:[%s1165] sm:$0xf]
      %v1167 = vld [vmem:[%s1165 + $0x4] sm:$0xf]
      %v1168 = vld [vmem:[%s1165 + $0x8] sm:$0xf]
      %v1169 = vld [vmem:[%s1165 + $0xc] sm:$0xf]
      %v1170 = vld [vmem:[%s1165 + $0x10] sm:$0xf]
      %v1171 = vld [vmem:[%s1165 + $0x14] sm:$0xf]
      %v1172 = vld [vmem:[%s1165 + $0x18] sm:$0xf]
      %v1173 = vld [vmem:[%s1165 + $0x1c] sm:$0xf]
      %v1174 = vld [vmem:[%s1165 + $0x20] sm:$0xf]
      %v1175 = vld [vmem:[%s1165 + $0x24] sm:$0xf]
      %v1176 = vld [vmem:[%s1165 + $0x28] sm:$0xf]
      %v1177 = vld [vmem:[%s1165 + $0x2c] sm:$0xf]
      %v1178 = vld [vmem:[%s1165 + $0x30] sm:$0xf]
      %v1179 = vld [vmem:[%s1165 + $0x34] sm:$0xf]
      %v1180 = vld [vmem:[%s1165 + $0x38] sm:$0xf]
      %v1181 = vld [vmem:[%s1165 + $0x3c] sm:$0xf]
      %v1182 = vld [vmem:[%s1165 + $0x40] sm:$0xf]
      %v1183 = vld [vmem:[%s1165 + $0x44] sm:$0xf]
      %v1184 = vld [vmem:[%s1165 + $0x48] sm:$0xf]
      %v1185 = vld [vmem:[%s1165 + $0x4c] sm:$0xf]
      %v1186 = vld [vmem:[%s1165 + $0x50] sm:$0xf]
      %v1187 = vld [vmem:[%s1165 + $0x54] sm:$0xf]
      %v1188 = vld [vmem:[%s1165 + $0x58] sm:$0xf]
      %v1189 = vld [vmem:[%s1165 + $0x5c] sm:$0xf]
      %v1190 = vld [vmem:[%s1165 + $0x60] sm:$0xf]
      %v1191 = vld [vmem:[%s1165 + $0x64] sm:$0xf]
      %v1192 = vld [vmem:[%s1165 + $0x68] sm:$0xf]
      %v1193 = vld [vmem:[%s1165 + $0x6c] sm:$0xf]
      %v1194 = vld [vmem:[%s1165 + $0x70] sm:$0xf]
      %v1195 = vld [vmem:[%s1165 + $0x74] sm:$0xf]
      %v1196 = vld [vmem:[%s1165 + $0x78] sm:$0xf]
      %v1197 = vld [vmem:[%s1165 + $0x7c] sm:$0xf]
      %v1198 = vld [vmem:[#allocation3] sm:$0xff]
      %v1199 = vld [vmem:[#allocation3 + $0x8] sm:$0xff]
      %v1200 = vld [vmem:[#allocation3 + $0x10] sm:$0xff]
      %v1201 = vld [vmem:[#allocation3 + $0x18] sm:$0xff]
      %v1202 = vld [vmem:[#allocation3 + $0x20] sm:$0xff]
      %v1203 = vld [vmem:[#allocation3 + $0x28] sm:$0xff]
      %v1204 = vld [vmem:[#allocation3 + $0x30] sm:$0xff]
      %v1205 = vld [vmem:[#allocation3 + $0x38] sm:$0xff]
      %v1206 = vld [vmem:[#allocation3 + $0x40] sm:$0xff]
      %v1207 = vld [vmem:[#allocation3 + $0x48] sm:$0xff]
      %v1208 = vld [vmem:[#allocation3 + $0x50] sm:$0xff]
      %v1209 = vld [vmem:[#allocation3 + $0x58] sm:$0xff]
      %v1210 = vld [vmem:[#allocation3 + $0x60] sm:$0xff]
      %v1211 = vld [vmem:[#allocation3 + $0x68] sm:$0xff]
      %v1212 = vld [vmem:[#allocation3 + $0x70] sm:$0xff]
      %v1213 = vld [vmem:[#allocation3 + $0x78] sm:$0xff]
      %v1214 = vpack.c.bf16 %v1131, %v1129
      %v1215 = vpack.c.bf16 %v1132, %v1130
      %v1216 = vpack.c.bf16 %v1135, %v1133
      %v1217 = vpack.c.bf16 %v1136, %v1134
      %v1218 = vpack.c.bf16 %v1139, %v1137
      %v1219 = vpack.c.bf16 %v1140, %v1138
      %v1220 = vpack.c.bf16 %v1143, %v1141
      %v1221 = vpack.c.bf16 %v1144, %v1142
      %v1222 = vpack.c.bf16 %v1147, %v1145
      %v1223 = vpack.c.bf16 %v1148, %v1146
      %v1224 = vpack.c.bf16 %v1151, %v1149
      %v1225 = vpack.c.bf16 %v1152, %v1150
      %v1226 = vpack.c.bf16 %v1155, %v1153
      %v1227 = vpack.c.bf16 %v1156, %v1154
      %v1228 = vpack.c.bf16 %v1159, %v1157
      %v1229 = vpack.c.bf16 %v1160, %v1158
      %v1262 = vunpack.c.l.b16 %v1166
      %v1263 = vunpack.c.l.b16 %v1167
      %v1264 = vunpack.c.l.b16 %v1168
      %v1265 = vunpack.c.l.b16 %v1169
      %v1266 = vunpack.c.l.b16 %v1170
      %v1267 = vunpack.c.l.b16 %v1171
      %v1268 = vunpack.c.l.b16 %v1172
      %v1269 = vunpack.c.l.b16 %v1173
      %v1270 = vunpack.c.l.b16 %v1174
      %v1271 = vunpack.c.l.b16 %v1175
      %v1272 = vunpack.c.l.b16 %v1176
      %v1273 = vunpack.c.l.b16 %v1177
      %v1274 = vunpack.c.l.b16 %v1178
      %v1275 = vunpack.c.l.b16 %v1179
      %v1276 = vunpack.c.l.b16 %v1180
      %v1277 = vunpack.c.l.b16 %v1181
      %v1278 = vunpack.c.l.b16 %v1182
      %v1279 = vunpack.c.l.b16 %v1183
      %v1280 = vunpack.c.l.b16 %v1184
      %v1281 = vunpack.c.l.b16 %v1185
      %v1282 = vunpack.c.l.b16 %v1186
      %v1283 = vunpack.c.l.b16 %v1187
      %v1284 = vunpack.c.l.b16 %v1188
      %v1285 = vunpack.c.l.b16 %v1189
      %v1286 = vunpack.c.l.b16 %v1190
      %v1287 = vunpack.c.l.b16 %v1191
      %v1288 = vunpack.c.l.b16 %v1192
      %v1289 = vunpack.c.l.b16 %v1193
      %v1290 = vunpack.c.l.b16 %v1194
      %v1291 = vunpack.c.l.b16 %v1195
      %v1292 = vunpack.c.l.b16 %v1196
      %v1293 = vunpack.c.l.b16 %v1197
      %v1294 = vpack.c.b16 %v1263, %v1262
      %v1295 = vpack.c.b16 %v1265, %v1264
      %v1296 = vpack.c.b16 %v1267, %v1266
      %v1297 = vpack.c.b16 %v1269, %v1268
      %v1298 = vpack.c.b16 %v1271, %v1270
      %v1299 = vpack.c.b16 %v1273, %v1272
      %v1300 = vpack.c.b16 %v1275, %v1274
      %v1301 = vpack.c.b16 %v1277, %v1276
      %v1302 = vpack.c.b16 %v1279, %v1278
      %v1303 = vpack.c.b16 %v1281, %v1280
      %v1304 = vpack.c.b16 %v1283, %v1282
      %v1305 = vpack.c.b16 %v1285, %v1284
      %v1306 = vpack.c.b16 %v1287, %v1286
      %v1307 = vpack.c.b16 %v1289, %v1288
      %v1308 = vpack.c.b16 %v1291, %v1290
      %v1309 = vpack.c.b16 %v1293, %v1292
      %1326 = vmatprep.subr.bf16.mxu0 0
      %1327 = vmatpush1.bf16.msra.mxu0 %v1301
      %1328 = vmatprep.subr.bf16.mxu0 0
      %1329 = vmatpush1.bf16.msra.mxu0 %v1300
      %1330 = vmatprep.subr.bf16.mxu0 0
      %1331 = vmatpush1.bf16.msra.mxu0 %v1299
      %1332 = vmatprep.subr.bf16.mxu0 0
      %1333 = vmatpush1.bf16.msra.mxu0 %v1298
      %1334 = vmatprep.subr.bf16.mxu0 0
      %1335 = vmatpush1.bf16.msra.mxu0 %v1297
      %1336 = vmatprep.subr.bf16.mxu0 0
      %1337 = vmatpush1.bf16.msra.mxu0 %v1296
      %1338 = vmatprep.subr.bf16.mxu0 0
      %1339 = vmatpush1.bf16.msra.mxu0 %v1295
      %1340 = vmatprep.subr.bf16.mxu0 0
      %1341 = vmatpush1.bf16.msra.mxu0 %v1294
      %1342 = vmatprep.subr.bf16.mxu0 0
      %1343 = vmatpush2.bf16.msra.mxu0 %v1309
      %1344 = vmatprep.subr.bf16.mxu0 0
      %1345 = vmatpush2.bf16.msra.mxu0 %v1308
      %1346 = vmatprep.subr.bf16.mxu0 0
      %1347 = vmatpush2.bf16.msra.mxu0 %v1307
      %1348 = vmatprep.subr.bf16.mxu0 0
      %1349 = vmatpush2.bf16.msra.mxu0 %v1306
      %1350 = vmatprep.subr.bf16.mxu0 0
      %1351 = vmatpush2.bf16.msra.mxu0 %v1305
      %1352 = vmatprep.subr.bf16.mxu0 0
      %1353 = vmatpush2.bf16.msra.mxu0 %v1304
      %1354 = vmatprep.subr.bf16.mxu0 0
      %1355 = vmatpush2.bf16.msra.mxu0 %v1303
      %1356 = vmatprep.subr.bf16.mxu0 0
      %1357 = vmatpush2.bf16.msra.mxu0 %v1302
      %1358 = vmatprep.mubr.bf16.mxu0 %v1215
      %1359 = vmatmul.mubr.bf16.gmra.mxu0 %v1214
      %v1360 = vpop.f32.mrf.mxu0
      %v1361 = vadd.f32 0.0, %v1360
      %v1362 = vpop.f32.mrf.mxu0
      %v1363 = vpop.f32.mrf.mxu0
      %v1364 = vadd.f32 0.0, %v1363
      %v1365 = vpop.f32.mrf.mxu0
      %1366 = vmatprep.mubr.bf16.mxu0 %v1217
      %1367 = vmatmul.mubr.bf16.gmra.mxu0 %v1216
      %v1368 = vpop.f32.mrf.mxu0
      %v1369 = vadd.f32 0.0, %v1368
      %v1370 = vpop.f32.mrf.mxu0
      %v1371 = vpop.f32.mrf.mxu0
      %v1372 = vadd.f32 0.0, %v1371
      %v1373 = vpop.f32.mrf.mxu0
      %1374 = vmatprep.mubr.bf16.mxu0 %v1219
      %1375 = vmatmul.mubr.bf16.gmra.mxu0 %v1218
      %v1376 = vpop.f32.mrf.mxu0
      %v1377 = vadd.f32 0.0, %v1376
      %v1378 = vpop.f32.mrf.mxu0
      %v1379 = vpop.f32.mrf.mxu0
      %v1380 = vadd.f32 0.0, %v1379
      %v1381 = vpop.f32.mrf.mxu0
      %1382 = vmatprep.mubr.bf16.mxu0 %v1221
      %1383 = vmatmul.mubr.bf16.gmra.mxu0 %v1220
      %v1384 = vpop.f32.mrf.mxu0
      %v1385 = vadd.f32 0.0, %v1384
      %v1386 = vpop.f32.mrf.mxu0
      %v1387 = vpop.f32.mrf.mxu0
      %v1388 = vadd.f32 0.0, %v1387
      %v1389 = vpop.f32.mrf.mxu0
      %1390 = vmatprep.mubr.bf16.mxu0 %v1223
      %1391 = vmatmul.mubr.bf16.gmra.mxu0 %v1222
      %v1392 = vpop.f32.mrf.mxu0
      %v1393 = vadd.f32 0.0, %v1392
      %v1394 = vpop.f32.mrf.mxu0
      %v1395 = vpop.f32.mrf.mxu0
      %v1396 = vadd.f32 0.0, %v1395
      %v1397 = vpop.f32.mrf.mxu0
      %1398 = vmatprep.mubr.bf16.mxu0 %v1225
      %1399 = vmatmul.mubr.bf16.gmra.mxu0 %v1224
      %v1400 = vpop.f32.mrf.mxu0
      %v1401 = vadd.f32 0.0, %v1400
      %v1402 = vpop.f32.mrf.mxu0
      %v1403 = vpop.f32.mrf.mxu0
      %v1404 = vadd.f32 0.0, %v1403
      %v1405 = vpop.f32.mrf.mxu0
      %1406 = vmatprep.mubr.bf16.mxu0 %v1227
      %1407 = vmatmul.mubr.bf16.gmra.mxu0 %v1226
      %v1408 = vpop.f32.mrf.mxu0
      %v1409 = vadd.f32 0.0, %v1408
      %v1410 = vpop.f32.mrf.mxu0
      %v1411 = vpop.f32.mrf.mxu0
      %v1412 = vadd.f32 0.0, %v1411
      %v1413 = vpop.f32.mrf.mxu0
      %1414 = vmatprep.mubr.bf16.mxu0 %v1229
      %1415 = vmatmul.mubr.bf16.gmra.mxu0 %v1228
      %v1416 = vpop.f32.mrf.mxu0
      %v1417 = vadd.f32 0.0, %v1416
      %v1418 = vpop.f32.mrf.mxu0
      %v1419 = vpop.f32.mrf.mxu0
      %v1420 = vadd.f32 0.0, %v1419
      %v1421 = vpop.f32.mrf.mxu0
      %1422 = vdwg.mxu0
      %v1423 = vadd.f32 %v1198, %v1361
      %v1424 = vadd.f32 %v1199, %v1364
      %v1425 = vadd.f32 %v1200, %v1369
      %v1426 = vadd.f32 %v1201, %v1372
      %v1427 = vadd.f32 %v1202, %v1377
      %v1428 = vadd.f32 %v1203, %v1380
      %v1429 = vadd.f32 %v1204, %v1385
      %v1430 = vadd.f32 %v1205, %v1388
      %v1431 = vadd.f32 %v1206, %v1393
      %v1432 = vadd.f32 %v1207, %v1396
      %v1433 = vadd.f32 %v1208, %v1401
      %v1434 = vadd.f32 %v1209, %v1404
      %v1435 = vadd.f32 %v1210, %v1409
      %v1436 = vadd.f32 %v1211, %v1412
      %v1437 = vadd.f32 %v1212, %v1417
      %v1438 = vadd.f32 %v1213, %v1420
      %1439 = vst [vmem:[#allocation3] sm:$0xff] %v1423
      %1440 = vst [vmem:[#allocation3 + $0x8] sm:$0xff] %v1424
      %1441 = vst [vmem:[#allocation3 + $0x10] sm:$0xff] %v1425
      %1442 = vst [vmem:[#allocation3 + $0x18] sm:$0xff] %v1426
      %1443 = vst [vmem:[#allocation3 + $0x20] sm:$0xff] %v1427
      %1444 = vst [vmem:[#allocation3 + $0x28] sm:$0xff] %v1428
      %1445 = vst [vmem:[#allocation3 + $0x30] sm:$0xff] %v1429
      %1446 = vst [vmem:[#allocation3 + $0x38] sm:$0xff] %v1430
      %1447 = vst [vmem:[#allocation3 + $0x40] sm:$0xff] %v1431
      %1448 = vst [vmem:[#allocation3 + $0x48] sm:$0xff] %v1432
      %1449 = vst [vmem:[#allocation3 + $0x50] sm:$0xff] %v1433
      %1450 = vst [vmem:[#allocation3 + $0x58] sm:$0xff] %v1434
      %1451 = vst [vmem:[#allocation3 + $0x60] sm:$0xff] %v1435
      %1452 = vst [vmem:[#allocation3 + $0x68] sm:$0xff] %v1436
      %1453 = vst [vmem:[#allocation3 + $0x70] sm:$0xff] %v1437
      %1454 = vst [vmem:[#allocation3 + $0x78] sm:$0xff] %v1438
      // Predicated region
      $region57: #{_lambda_.7} parent=47 // pred_check
        %p1455 = pneg %p921
      $region58: #{_lambda_.7} parent=47 // pred_check_branch
        %1457 = sbr.rel (%p1455) target = $region60
      $region59: #{_lambda_.7} parent=47 // pred_region
        %v1458 = vld [vmem:[#allocation3] sm:$0xff]
        %v1459 = vld [vmem:[#allocation3 + $0x8] sm:$0xff]
        %v1460 = vld [vmem:[#allocation3 + $0x10] sm:$0xff]
        %v1461 = vld [vmem:[#allocation3 + $0x18] sm:$0xff]
        %v1462 = vld [vmem:[#allocation3 + $0x20] sm:$0xff]
        %v1463 = vld [vmem:[#allocation3 + $0x28] sm:$0xff]
        %v1464 = vld [vmem:[#allocation3 + $0x30] sm:$0xff]
        %v1465 = vld [vmem:[#allocation3 + $0x38] sm:$0xff]
        %v1466 = vld [vmem:[#allocation3 + $0x40] sm:$0xff]
        %v1467 = vld [vmem:[#allocation3 + $0x48] sm:$0xff]
        %v1468 = vld [vmem:[#allocation3 + $0x50] sm:$0xff]
        %v1469 = vld [vmem:[#allocation3 + $0x58] sm:$0xff]
        %v1470 = vld [vmem:[#allocation3 + $0x60] sm:$0xff]
        %v1471 = vld [vmem:[#allocation3 + $0x68] sm:$0xff]
        %v1472 = vld [vmem:[#allocation3 + $0x70] sm:$0xff]
        %v1473 = vld [vmem:[#allocation3 + $0x78] sm:$0xff]
        %v1474 = vld [vmem:[%s5] sm:$0x1]
        %v1476 = vlaneseq
        %v1477 = vshrl.u32 %v1476, 7
        %v1478 = vsub.s32 0, %v1477
        %v1479 = vrot.slane %v1474, %v1478
        %v1481 = vadd.f32 %v1458, %v1479
        %v1482 = vadd.f32 %v1459, %v1479
        %v1483 = vadd.f32 %v1460, %v1479
        %v1484 = vadd.f32 %v1461, %v1479
        %v1485 = vadd.f32 %v1462, %v1479
        %v1486 = vadd.f32 %v1463, %v1479
        %v1487 = vadd.f32 %v1464, %v1479
        %v1488 = vadd.f32 %v1465, %v1479
        %v1489 = vadd.f32 %v1466, %v1479
        %v1490 = vadd.f32 %v1467, %v1479
        %v1491 = vadd.f32 %v1468, %v1479
        %v1492 = vadd.f32 %v1469, %v1479
        %v1493 = vadd.f32 %v1470, %v1479
        %v1494 = vadd.f32 %v1471, %v1479
        %v1495 = vadd.f32 %v1472, %v1479
        %v1496 = vadd.f32 %v1473, %v1479
        %v1497 = vmax.f32 %v1481, 0.0
        %v1498 = vmax.f32 %v1482, 0.0
        %v1499 = vmax.f32 %v1483, 0.0
        %v1500 = vmax.f32 %v1484, 0.0
        %v1501 = vmax.f32 %v1485, 0.0
        %v1502 = vmax.f32 %v1486, 0.0
        %v1503 = vmax.f32 %v1487, 0.0
        %v1504 = vmax.f32 %v1488, 0.0
        %v1505 = vmax.f32 %v1489, 0.0
        %v1506 = vmax.f32 %v1490, 0.0
        %v1507 = vmax.f32 %v1491, 0.0
        %v1508 = vmax.f32 %v1492, 0.0
        %v1509 = vmax.f32 %v1493, 0.0
        %v1510 = vmax.f32 %v1494, 0.0
        %v1511 = vmax.f32 %v1495, 0.0
        %v1512 = vmax.f32 %v1496, 0.0
        %v1513 = vld [vmem:[%s390] sm:$0xff]
        %v1514 = vld [vmem:[%s390 + $0x8] sm:$0xff]
        %v1515 = vld [vmem:[%s390 + $0x10] sm:$0xff]
        %v1516 = vld [vmem:[%s390 + $0x18] sm:$0xff]
        %v1517 = vld [vmem:[%s390 + $0x20] sm:$0xff]
        %v1518 = vld [vmem:[%s390 + $0x28] sm:$0xff]
        %v1519 = vld [vmem:[%s390 + $0x30] sm:$0xff]
        %v1520 = vld [vmem:[%s390 + $0x38] sm:$0xff]
        %v1521 = vld [vmem:[%s390 + $0x40] sm:$0xff]
        %v1522 = vld [vmem:[%s390 + $0x48] sm:$0xff]
        %v1523 = vld [vmem:[%s390 + $0x50] sm:$0xff]
        %v1524 = vld [vmem:[%s390 + $0x58] sm:$0xff]
        %v1525 = vld [vmem:[%s390 + $0x60] sm:$0xff]
        %v1526 = vld [vmem:[%s390 + $0x68] sm:$0xff]
        %v1527 = vld [vmem:[%s390 + $0x70] sm:$0xff]
        %v1528 = vld [vmem:[%s390 + $0x78] sm:$0xff]
        %v1529 = vmul.f32 %v1513, 0.25
        %v1530 = vmul.f32 %v1514, 0.25
        %v1531 = vmul.f32 %v1515, 0.25
        %v1532 = vmul.f32 %v1516, 0.25
        %v1533 = vmul.f32 %v1517, 0.25
        %v1534 = vmul.f32 %v1518, 0.25
        %v1535 = vmul.f32 %v1519, 0.25
        %v1536 = vmul.f32 %v1520, 0.25
        %v1537 = vmul.f32 %v1521, 0.25
        %v1538 = vmul.f32 %v1522, 0.25
        %v1539 = vmul.f32 %v1523, 0.25
        %v1540 = vmul.f32 %v1524, 0.25
        %v1541 = vmul.f32 %v1525, 0.25
        %v1542 = vmul.f32 %v1526, 0.25
        %v1543 = vmul.f32 %v1527, 0.25
        %v1544 = vmul.f32 %v1528, 0.25
        %v1545 = vadd.f32 %v1497, %v1529
        %v1546 = vadd.f32 %v1498, %v1530
        %v1547 = vadd.f32 %v1499, %v1531
        %v1548 = vadd.f32 %v1500, %v1532
        %v1549 = vadd.f32 %v1501, %v1533
        %v1550 = vadd.f32 %v1502, %v1534
        %v1551 = vadd.f32 %v1503, %v1535
        %v1552 = vadd.f32 %v1504, %v1536
        %v1553 = vadd.f32 %v1505, %v1537
        %v1554 = vadd.f32 %v1506, %v1538
        %v1555 = vadd.f32 %v1507, %v1539
        %v1556 = vadd.f32 %v1508, %v1540
        %v1557 = vadd.f32 %v1509, %v1541
        %v1558 = vadd.f32 %v1510, %v1542
        %v1559 = vadd.f32 %v1511, %v1543
        %v1560 = vadd.f32 %v1512, %v1544
        %v1561 = vpack.c.bf16 %v1546, %v1545
        %v1562 = vpack.c.bf16 %v1548, %v1547
        %v1563 = vpack.c.bf16 %v1550, %v1549
        %v1564 = vpack.c.bf16 %v1552, %v1551
        %v1565 = vpack.c.bf16 %v1554, %v1553
        %v1566 = vpack.c.bf16 %v1556, %v1555
        %v1567 = vpack.c.bf16 %v1558, %v1557
        %v1568 = vpack.c.bf16 %v1560, %v1559
        %v1577 = vunpack.c.l.b16 %v1561
        %v1578 = vunpack.c.h.b16 %v1561
        %v1579 = vunpack.c.l.b16 %v1562
        %v1580 = vunpack.c.h.b16 %v1562
        %v1581 = vunpack.c.l.b16 %v1563
        %v1582 = vunpack.c.h.b16 %v1563
        %v1583 = vunpack.c.l.b16 %v1564
        %v1584 = vunpack.c.h.b16 %v1564
        %v1585 = vunpack.c.l.b16 %v1565
        %v1586 = vunpack.c.h.b16 %v1565
        %v1587 = vunpack.c.l.b16 %v1566
        %v1588 = vunpack.c.h.b16 %v1566
        %v1589 = vunpack.c.l.b16 %v1567
        %v1590 = vunpack.c.h.b16 %v1567
        %v1591 = vunpack.c.l.b16 %v1568
        %v1592 = vunpack.c.h.b16 %v1568
        %v1593 = vpack.c.b16 %v1577, %v1577
        %v1594 = vpack.c.b16 %v1578, %v1578
        %v1595 = vpack.c.b16 %v1579, %v1579
        %v1596 = vpack.c.b16 %v1580, %v1580
        %v1597 = vpack.c.b16 %v1581, %v1581
        %v1598 = vpack.c.b16 %v1582, %v1582
        %v1599 = vpack.c.b16 %v1583, %v1583
        %v1600 = vpack.c.b16 %v1584, %v1584
        %v1601 = vpack.c.b16 %v1585, %v1585
        %v1602 = vpack.c.b16 %v1586, %v1586
        %v1603 = vpack.c.b16 %v1587, %v1587
        %v1604 = vpack.c.b16 %v1588, %v1588
        %v1605 = vpack.c.b16 %v1589, %v1589
        %v1606 = vpack.c.b16 %v1590, %v1590
        %v1607 = vpack.c.b16 %v1591, %v1591
        %v1608 = vpack.c.b16 %v1592, %v1592
        %1625 = vst [vmem:[%s396] sm:$0xf] %v1593
        %1626 = vst [vmem:[%s396 + $0x4] sm:$0xf] %v1594
        %1627 = vst [vmem:[%s396 + $0x8] sm:$0xf] %v1595
        %1628 = vst [vmem:[%s396 + $0xc] sm:$0xf] %v1596
        %1629 = vst [vmem:[%s396 + $0x10] sm:$0xf] %v1597
        %1630 = vst [vmem:[%s396 + $0x14] sm:$0xf] %v1598
        %1631 = vst [vmem:[%s396 + $0x18] sm:$0xf] %v1599
        %1632 = vst [vmem:[%s396 + $0x1c] sm:$0xf] %v1600
        %1633 = vst [vmem:[%s396 + $0x20] sm:$0xf] %v1601
        %1634 = vst [vmem:[%s396 + $0x24] sm:$0xf] %v1602
        %1635 = vst [vmem:[%s396 + $0x28] sm:$0xf] %v1603
        %1636 = vst [vmem:[%s396 + $0x2c] sm:$0xf] %v1604
        %1637 = vst [vmem:[%s396 + $0x30] sm:$0xf] %v1605
        %1638 = vst [vmem:[%s396 + $0x34] sm:$0xf] %v1606
        %1639 = vst [vmem:[%s396 + $0x38] sm:$0xf] %v1607
        %1640 = vst [vmem:[%s396 + $0x3c] sm:$0xf] %v1608
      $region60: #{_lambda_.7} parent=47 // pred_fallthru
        _
      %s1641 = smul.u32 16, %s22
      %p1642 = scmp.lt.s32.totalorder %s1641, 31
      %s1643 = scalar_select %p1642, %s1641, 31
      %s1644 = smul.addr %s1643, 4
      %s1645 = scalar_lea.vmem %s7, %s1644
      // Predicated region
      $region61: #{_lambda_.7} parent=47 // pred_check
        %p1646 = pneg %p222
      $region62: #{_lambda_.7} parent=47 // pred_check_branch
        %1648 = sbr.rel (%p1646) target = $region64
      $region63: #{_lambda_.7} parent=47 // pred_region
        %s1649 = smul.u32 16, %s22
      $region64: #{_lambda_.7} parent=47 // pred_fallthru
        _
    $region48: #{_lambda_.7} parent=5 // pred_fallthru
      _
    %p1650 = scmp.le.s32.totalorder 2, %s13
    // Predicated region
    $region65: #{_lambda_.7} parent=5 // pred_check
      %p1651 = pneg %p1650
    $region66: #{_lambda_.7} parent=5 // pred_check_branch
      %1653 = sbr.rel (%p1651) target = $region68
    $region67: #{_lambda_.7} parent=5 // pred_region
      %s1654 = ssub.s32 %s13, 2
      // Predicated region
      $region69: #{_lambda_.7} parent=67 // pred_check
        %p1655 = pneg %p228
      $region70: #{_lambda_.7} parent=67 // pred_check_branch
        %1657 = sbr.rel (%p1655) target = $region72
      $region71: #{_lambda_.7} parent=67 // pred_region
        %s1658 = smul.u32 16, %s24
        %p1659 = scmp.lt.s32.totalorder %s1658, 31
        %s1660 = scalar_select %p1659, %s1658, 31
        %s1661 = smul.addr %s1660, 4
        %s1662 = scalar_lea.vmem %s7, %s1661
      $region72: #{_lambda_.7} parent=67 // pred_fallthru
        _
    $region68: #{_lambda_.7} parent=5 // pred_fallthru
      _
  $region6: #{_lambda_.7} parent=0 // loop_footer
    %s17 = sadd.s32 1, %s13
  $region7: #{_lambda_.7} parent=0 // loop_footer_branch
    %12 = sbr.rel target = $region3
  $region8: #{_lambda_.7} parent=0 // loop_exit
    _

// kernel: _lambda_.9
$region0: #{_lambda_.9}
  #allocation0 [shape = 'u32[]', space=smem, size = 0x4, offset = 0x4, fixed_abs, tag = 'smem constant byte address 0x4 - core index']
  #allocation1 [shape = 'u32[144,128]{1,0:T(1,128)}', space=vmem, size = 0x12000, scoped, tag = 'internal scratch']
  %s0 = inlined_call_operand.vmem [shape: bf16[8,256], index: 0, kind: input, shape index: {}]
  %s1 = inlined_call_operand.vmem [shape: bf16[256,128], index: 1, kind: input, shape index: {}]
  %s2 = inlined_call_operand.vmem [shape: f32[1,128], index: 2, kind: input, shape index: {}]
  %s3 = inlined_call_operand.vmem [shape: bf16[128,128], index: 3, kind: input, shape index: {}]
  %s4 = inlined_call_operand.vmem [shape: f32[1,128], index: 4, kind: input, shape index: {}]
  %s5 = inlined_call_operand.vmem [shape: f32[8,128], index: 5, kind: output, shape index: {}]
  %s6 = sld [smem:[#allocation0]]
  $region30: #{_lambda_.9} parent=0
    _
  %s8 = ssub.s32 1, %s6
  %s9 = scalar_select 0, %s8, %s6
  // Predicated region
  $region2: #{_lambda_.9} parent=0 // pred_check
    _
  $region3: #{_lambda_.9} parent=0 // pred_check_branch
    %11 = sbr.rel (0) target = $region5
  $region4: #{_lambda_.9} parent=0 // pred_region
    _
  $region5: #{_lambda_.9} parent=0 // pred_fallthru
    _
  // Predicated region
  $region6: #{_lambda_.9} parent=0 // pred_check
    _
  $region7: #{_lambda_.9} parent=0 // pred_check_branch
    %13 = sbr.rel (0) target = $region9
  $region8: #{_lambda_.9} parent=0 // pred_region
    _
  $region9: #{_lambda_.9} parent=0 // pred_fallthru
    _
  // Predicated region
  $region10: #{_lambda_.9} parent=0 // pred_check
    _
  $region11: #{_lambda_.9} parent=0 // pred_check_branch
    %15 = sbr.rel (0) target = $region13
  $region12: #{_lambda_.9} parent=0 // pred_region
    _
  $region13: #{_lambda_.9} parent=0 // pred_fallthru
    _
  // Predicated region
  $region14: #{_lambda_.9} parent=0 // pred_check
    _
  $region15: #{_lambda_.9} parent=0 // pred_check_branch
    %17 = sbr.rel (0) target = $region17
  $region16: #{_lambda_.9} parent=0 // pred_region
    _
  $region17: #{_lambda_.9} parent=0 // pred_fallthru
    _
  // Predicated region
  $region18: #{_lambda_.9} parent=0 // pred_check
    _
  $region19: #{_lambda_.9} parent=0 // pred_check_branch
    %19 = sbr.rel (0) target = $region21
  $region20: #{_lambda_.9} parent=0 // pred_region
    _
  $region21: #{_lambda_.9} parent=0 // pred_fallthru
    _
  %v21 = vld [vmem:[%s0] sm:$0xff]
  %v22 = vld [vmem:[%s1] sm:$0xf]
  %v23 = vld [vmem:[%s1 + $0x4] sm:$0xf]
  %v24 = vld [vmem:[%s1 + $0x8] sm:$0xf]
  %v25 = vld [vmem:[%s1 + $0xc] sm:$0xf]
  %v26 = vld [vmem:[%s1 + $0x10] sm:$0xf]
  %v27 = vld [vmem:[%s1 + $0x14] sm:$0xf]
  %v28 = vld [vmem:[%s1 + $0x18] sm:$0xf]
  %v29 = vld [vmem:[%s1 + $0x1c] sm:$0xf]
  %v30 = vld [vmem:[%s1 + $0x20] sm:$0xf]
  %v31 = vld [vmem:[%s1 + $0x24] sm:$0xf]
  %v32 = vld [vmem:[%s1 + $0x28] sm:$0xf]
  %v33 = vld [vmem:[%s1 + $0x2c] sm:$0xf]
  %v34 = vld [vmem:[%s1 + $0x30] sm:$0xf]
  %v35 = vld [vmem:[%s1 + $0x34] sm:$0xf]
  %v36 = vld [vmem:[%s1 + $0x38] sm:$0xf]
  %v37 = vld [vmem:[%s1 + $0x3c] sm:$0xf]
  %v38 = vld [vmem:[%s1 + $0x40] sm:$0xf]
  %v39 = vld [vmem:[%s1 + $0x44] sm:$0xf]
  %v40 = vld [vmem:[%s1 + $0x48] sm:$0xf]
  %v41 = vld [vmem:[%s1 + $0x4c] sm:$0xf]
  %v42 = vld [vmem:[%s1 + $0x50] sm:$0xf]
  %v43 = vld [vmem:[%s1 + $0x54] sm:$0xf]
  %v44 = vld [vmem:[%s1 + $0x58] sm:$0xf]
  %v45 = vld [vmem:[%s1 + $0x5c] sm:$0xf]
  %v46 = vld [vmem:[%s1 + $0x60] sm:$0xf]
  %v47 = vld [vmem:[%s1 + $0x64] sm:$0xf]
  %v48 = vld [vmem:[%s1 + $0x68] sm:$0xf]
  %v49 = vld [vmem:[%s1 + $0x6c] sm:$0xf]
  %v50 = vld [vmem:[%s1 + $0x70] sm:$0xf]
  %v51 = vld [vmem:[%s1 + $0x74] sm:$0xf]
  %v52 = vld [vmem:[%s1 + $0x78] sm:$0xf]
  %v53 = vld [vmem:[%s1 + $0x7c] sm:$0xf]
  %v54 = vld [vmem:[%s2] sm:$0x1]
  %v56 = vlaneseq
  %v57 = vshrl.u32 %v56, 7
  %v58 = vsub.s32 0, %v57
  %v59 = vrot.slane %v54, %v58
  %v62 = vunpack.c.l.b16 %v21
  %v63 = vunpack.c.h.b16 %v21
  %v64 = vpack.c.b16 %v62, %v62
  %v65 = vpack.c.b16 %v63, %v63
  %v100 = vunpack.c.l.b16 %v22
  %v101 = vunpack.c.l.b16 %v23
  %v102 = vunpack.c.l.b16 %v24
  %v103 = vunpack.c.l.b16 %v25
  %v104 = vunpack.c.l.b16 %v26
  %v105 = vunpack.c.l.b16 %v27
  %v106 = vunpack.c.l.b16 %v28
  %v107 = vunpack.c.l.b16 %v29
  %v108 = vunpack.c.l.b16 %v30
  %v109 = vunpack.c.l.b16 %v31
  %v110 = vunpack.c.l.b16 %v32
  %v111 = vunpack.c.l.b16 %v33
  %v112 = vunpack.c.l.b16 %v34
  %v113 = vunpack.c.l.b16 %v35
  %v114 = vunpack.c.l.b16 %v36
  %v115 = vunpack.c.l.b16 %v37
  %v116 = vunpack.c.l.b16 %v38
  %v117 = vunpack.c.l.b16 %v39
  %v118 = vunpack.c.l.b16 %v40
  %v119 = vunpack.c.l.b16 %v41
  %v120 = vunpack.c.l.b16 %v42
  %v121 = vunpack.c.l.b16 %v43
  %v122 = vunpack.c.l.b16 %v44
  %v123 = vunpack.c.l.b16 %v45
  %v124 = vunpack.c.l.b16 %v46
  %v125 = vunpack.c.l.b16 %v47
  %v126 = vunpack.c.l.b16 %v48
  %v127 = vunpack.c.l.b16 %v49
  %v128 = vunpack.c.l.b16 %v50
  %v129 = vunpack.c.l.b16 %v51
  %v130 = vunpack.c.l.b16 %v52
  %v131 = vunpack.c.l.b16 %v53
  %v132 = vpack.c.b16 %v101, %v100
  %v133 = vpack.c.b16 %v103, %v102
  %v134 = vpack.c.b16 %v105, %v104
  %v135 = vpack.c.b16 %v107, %v106
  %v136 = vpack.c.b16 %v109, %v108
  %v137 = vpack.c.b16 %v111, %v110
  %v138 = vpack.c.b16 %v113, %v112
  %v139 = vpack.c.b16 %v115, %v114
  %v140 = vpack.c.b16 %v117, %v116
  %v141 = vpack.c.b16 %v119, %v118
  %v142 = vpack.c.b16 %v121, %v120
  %v143 = vpack.c.b16 %v123, %v122
  %v144 = vpack.c.b16 %v125, %v124
  %v145 = vpack.c.b16 %v127, %v126
  %v146 = vpack.c.b16 %v129, %v128
  %v147 = vpack.c.b16 %v131, %v130
  %164 = vmatprep.subr.bf16.mxu0 0
  %165 = vmatpush1.bf16.msra.mxu0 %v139
  %166 = vmatprep.subr.bf16.mxu0 0
  %167 = vmatpush1.bf16.msra.mxu0 %v138
  %168 = vmatprep.subr.bf16.mxu0 0
  %169 = vmatpush1.bf16.msra.mxu0 %v137
  %170 = vmatprep.subr.bf16.mxu0 0
  %171 = vmatpush1.bf16.msra.mxu0 %v136
  %172 = vmatprep.subr.bf16.mxu0 0
  %173 = vmatpush1.bf16.msra.mxu0 %v135
  %174 = vmatprep.subr.bf16.mxu0 0
  %175 = vmatpush1.bf16.msra.mxu0 %v134
  %176 = vmatprep.subr.bf16.mxu0 0
  %177 = vmatpush1.bf16.msra.mxu0 %v133
  %178 = vmatprep.subr.bf16.mxu0 0
  %179 = vmatpush1.bf16.msra.mxu0 %v132
  %180 = vmatprep.subr.bf16.mxu0 0
  %181 = vmatpush2.bf16.msra.mxu0 %v147
  %182 = vmatprep.subr.bf16.mxu0 0
  %183 = vmatpush2.bf16.msra.mxu0 %v146
  %184 = vmatprep.subr.bf16.mxu0 0
  %185 = vmatpush2.bf16.msra.mxu0 %v145
  %186 = vmatprep.subr.bf16.mxu0 0
  %187 = vmatpush2.bf16.msra.mxu0 %v144
  %188 = vmatprep.subr.bf16.mxu0 0
  %189 = vmatpush2.bf16.msra.mxu0 %v143
  %190 = vmatprep.subr.bf16.mxu0 0
  %191 = vmatpush2.bf16.msra.mxu0 %v142
  %192 = vmatprep.subr.bf16.mxu0 0
  %193 = vmatpush2.bf16.msra.mxu0 %v141
  %194 = vmatprep.subr.bf16.mxu0 0
  %195 = vmatpush2.bf16.msra.mxu0 %v140
  %196 = vmatprep.mubr.bf16.mxu0 %v65
  %197 = vmatmul.mubr.bf16.gmra.mxu0 %v64
  %v198 = vpop.f32.mrf.mxu0
  %v199 = vadd.f32 %v59, %v198
  %v200 = vpop.f32.mrf.mxu0
  %v201 = vpop.f32.mrf.mxu0
  %v202 = vpop.f32.mrf.mxu0
  %203 = vdwg.mxu0
  %v204 = vmax.f32 %v199, 0.0
  %v205 = vpack.c.bf16 %v204, %v204
  %v206 = vld [vmem:[%s3] sm:$0xf]
  %v207 = vld [vmem:[%s3 + $0x4] sm:$0xf]
  %v208 = vld [vmem:[%s3 + $0x8] sm:$0xf]
  %v209 = vld [vmem:[%s3 + $0xc] sm:$0xf]
  %v210 = vld [vmem:[%s3 + $0x10] sm:$0xf]
  %v211 = vld [vmem:[%s3 + $0x14] sm:$0xf]
  %v212 = vld [vmem:[%s3 + $0x18] sm:$0xf]
  %v213 = vld [vmem:[%s3 + $0x1c] sm:$0xf]
  %v214 = vld [vmem:[%s3 + $0x20] sm:$0xf]
  %v215 = vld [vmem:[%s3 + $0x24] sm:$0xf]
  %v216 = vld [vmem:[%s3 + $0x28] sm:$0xf]
  %v217 = vld [vmem:[%s3 + $0x2c] sm:$0xf]
  %v218 = vld [vmem:[%s3 + $0x30] sm:$0xf]
  %v219 = vld [vmem:[%s3 + $0x34] sm:$0xf]
  %v220 = vld [vmem:[%s3 + $0x38] sm:$0xf]
  %v221 = vld [vmem:[%s3 + $0x3c] sm:$0xf]
  %v222 = vld [vmem:[%s4] sm:$0x1]
  %v224 = vlaneseq
  %v225 = vshrl.u32 %v224, 7
  %v226 = vsub.s32 0, %v225
  %v227 = vrot.slane %v222, %v226
  %v245 = vunpack.c.l.b16 %v206
  %v246 = vunpack.c.l.b16 %v207
  %v247 = vunpack.c.l.b16 %v208
  %v248 = vunpack.c.l.b16 %v209
  %v249 = vunpack.c.l.b16 %v210
  %v250 = vunpack.c.l.b16 %v211
  %v251 = vunpack.c.l.b16 %v212
  %v252 = vunpack.c.l.b16 %v213
  %v253 = vunpack.c.l.b16 %v214
  %v254 = vunpack.c.l.b16 %v215
  %v255 = vunpack.c.l.b16 %v216
  %v256 = vunpack.c.l.b16 %v217
  %v257 = vunpack.c.l.b16 %v218
  %v258 = vunpack.c.l.b16 %v219
  %v259 = vunpack.c.l.b16 %v220
  %v260 = vunpack.c.l.b16 %v221
  %v261 = vpack.c.b16 %v246, %v245
  %v262 = vpack.c.b16 %v248, %v247
  %v263 = vpack.c.b16 %v250, %v249
  %v264 = vpack.c.b16 %v252, %v251
  %v265 = vpack.c.b16 %v254, %v253
  %v266 = vpack.c.b16 %v256, %v255
  %v267 = vpack.c.b16 %v258, %v257
  %v268 = vpack.c.b16 %v260, %v259
  %277 = vmatprep.subr.bf16.mxu0 0
  %278 = vmatpush1.bf16.msra.mxu0 %v268
  %279 = vmatprep.subr.bf16.mxu0 0
  %280 = vmatpush1.bf16.msra.mxu0 %v267
  %281 = vmatprep.subr.bf16.mxu0 0
  %282 = vmatpush1.bf16.msra.mxu0 %v266
  %283 = vmatprep.subr.bf16.mxu0 0
  %284 = vmatpush1.bf16.msra.mxu0 %v265
  %285 = vmatprep.subr.bf16.mxu0 0
  %286 = vmatpush1.bf16.msra.mxu0 %v264
  %287 = vmatprep.subr.bf16.mxu0 0
  %288 = vmatpush1.bf16.msra.mxu0 %v263
  %289 = vmatprep.subr.bf16.mxu0 0
  %290 = vmatpush1.bf16.msra.mxu0 %v262
  %291 = vmatprep.subr.bf16.mxu0 0
  %292 = vmatpush1.bf16.msra.mxu0 %v261
  %293 = vmatprep.subr.bf16.mxu0 0
  %294 = vmatpush2.bf16.msra.mxu0 0
  %295 = vmatprep.subr.bf16.mxu0 0
  %296 = vmatpush2.bf16.msra.mxu0 0
  %297 = vmatprep.subr.bf16.mxu0 0
  %298 = vmatpush2.bf16.msra.mxu0 0
  %299 = vmatprep.subr.bf16.mxu0 0
  %300 = vmatpush2.bf16.msra.mxu0 0
  %301 = vmatprep.subr.bf16.mxu0 0
  %302 = vmatpush2.bf16.msra.mxu0 0
  %303 = vmatprep.subr.bf16.mxu0 0
  %304 = vmatpush2.bf16.msra.mxu0 0
  %305 = vmatprep.subr.bf16.mxu0 0
  %306 = vmatpush2.bf16.msra.mxu0 0
  %307 = vmatprep.subr.bf16.mxu0 0
  %308 = vmatpush2.bf16.msra.mxu0 0
  %309 = vmatprep.mubr.bf16.mxu0 0
  %310 = vmatmul.mubr.bf16.gmra.mxu0 %v205
  %v311 = vpop.f32.mrf.mxu0
  %v312 = vadd.f32 %v227, %v311
  %v313 = vpop.f32.mrf.mxu0
  %v314 = vpop.f32.mrf.mxu0
  %v315 = vpop.f32.mrf.mxu0
  %316 = vdwg.mxu0
  %317 = vst [vmem:[%s5] sm:$0xff] %v312
  // Predicated region
  $region22: #{_lambda_.9} parent=0 // pred_check
    _
  $region23: #{_lambda_.9} parent=0 // pred_check_branch
    %319 = sbr.rel (0) target = $region25
  $region24: #{_lambda_.9} parent=0 // pred_region
    _
  $region25: #{_lambda_.9} parent=0 // pred_fallthru
    _
  // Predicated region
  $region26: #{_lambda_.9} parent=0 // pred_check
    _
  $region27: #{_lambda_.9} parent=0 // pred_check_branch
    %321 = sbr.rel (0) target = $region29
  $region28: #{_lambda_.9} parent=0 // pred_region
    _
  $region29: #{_lambda_.9} parent=0 // pred_fallthru
    _

</llo_original>
